<compile_context>
chip_gen: v7x
topology: tpu7x:2x2x1
jax: 0.10.0
libtpu: 0.0.40
codegen_flags: <defaults>
</compile_context>

<pallas_src>
import jax
import jax.numpy as jnp
from jax.experimental import pallas as pl
from jax.experimental.pallas import tpu as pltpu

_LANE = 128


def _round_up(n, m):
    return (n + m - 1) // m * m


def _pad_channels(c):
    # v6e/v7x MXUs are 256 wide on the output dim: keep >=256 counts 256-aligned.
    return _round_up(c, 256) if c >= 256 else _round_up(c, _LANE)


def _pick_row_tile(ho, max_rows=32):
    th = 1
    for d in range(1, min(ho, max_rows) + 1):
        if ho % d == 0:
            th = d
    return th


# ------------------------------ Pallas kernel -------------------------------


def _zero_w_halo(ref, wo):
    # Zero the 1-pixel halo columns (conv zero padding along W).
    rows, _, ch = ref.shape
    z = jnp.zeros((rows, 1, ch), ref.dtype)
    ref[:, 0:1, :] = z
    ref[:, wo + 1:wo + 2, :] = z


def _down_fused_kernel(x_ref, w1_ref, b1_ref, w2_ref, b2_ref, o_ref, pad1, pad2):
    # x_ref : (1, 1, TH+4, 2, Wo, 2*Cin) bf16  pooled-row chunk (+2-row halo,
    #                                           zero rows at the image border);
    #                                           W pair packed on the lane axis.
    # w1_ref: (3, 3*Cin_p, Cm_p)          bf16 BN1 scale folded in, dx packed.
    # b1_ref: (1, Cm_p)                   f32
    # w2_ref: (3, 3*Cm_p, Co_p)           bf16 BN2 scale folded in, dx packed.
    # b2_ref: (1, Co_p)                   f32
    # o_ref : (1, TH, Wo, Co_p)           bf16
    # pad1  : (TH+4, W1p, Cin_p)          bf16 scratch (conv1 input + W halo)
    # pad2  : (TH+2, W1p, Cm_p)           bf16 scratch (conv2 input + W halo)
    TH, Wo, Co_p = o_ref.shape[1], o_ref.shape[2], o_ref.shape[3]
    Cin_p = pad1.shape[2]
    Cm_p = pad2.shape[2]
    Cin = x_ref.shape[-1] // 2
    chunk = pl.program_id(1)

    # ---- MaxPool2d(2): H pair on a leading axis, W pair on the lane axis ----
    xc = x_ref[0, 0]                                      # (TH+4, 2, Wo, 2*Cin)
    r = jnp.maximum(xc[:, 0], xc[:, 1])                   # (TH+4, Wo, 2*Cin)
    pooled = jnp.maximum(r[:, :, :Cin], r[:, :, Cin:])    # (TH+4, Wo, Cin) bf16

    # ---- Stage the pooled chunk into the bf16 conv1 halo buffer ----
    if Cin == Cin_p:
        _zero_w_halo(pad1, Wo)                            # halo columns only
        pad1[:, 1:Wo + 1, :] = pooled
    else:
        # Small-channel level: clear so the lane-padding channels are zero.
        pad1[...] = jnp.zeros(pad1.shape, pad1.dtype)
        pad1[:, 1:Wo + 1, :Cin] = pooled

    def conv3x3_bias_relu(pad_ref, rows, w_ref, b_ref, cin_p, cout_p):
        # 3 MXU matmuls (one per kernel row dy); 3 dx taps packed along lanes.
        acc = jnp.zeros((rows * Wo, cout_p), jnp.float32)
        for dy in range(3):
            patch = jnp.concatenate(
                [pad_ref[dy:dy + rows, 0:Wo, :],
                 pad_ref[dy:dy + rows, 1:Wo + 1, :],
                 pad_ref[dy:dy + rows, 2:Wo + 2, :]],
                axis=-1).reshape(rows * Wo, 3 * cin_p)    # already bf16
            acc = acc + jnp.dot(patch, w_ref[dy],
                                preferred_element_type=jnp.float32)
        # BN scale is folded into the weights: bias + ReLU in f32.
        return jnp.maximum(acc + b_ref[...], 0.0)

    # ---- Conv1 on TH+2 rows (1-row halo for conv2); stage into pad2 (bf16) ----
    y1 = conv3x3_bias_relu(pad1, TH + 2, w1_ref, b1_ref, Cin_p, Cm_p)
    _zero_w_halo(pad2, Wo)
    pad2[:, 1:Wo + 1, :] = y1.reshape(TH + 2, Wo, Cm_p).astype(pad2.dtype)

    # Conv2's zero padding in H at the image borders: the halo rows computed
    # above from zero-extended pooled rows are NOT zero (ReLU(bias)), so
    # overwrite them on the first / last chunk.
    @pl.when(chunk == 0)
    def _():
        pad2[0] = jnp.zeros(pad2.shape[1:], pad2.dtype)

    @pl.when(chunk == pl.num_programs(1) - 1)
    def _():
        pad2[TH + 1] = jnp.zeros(pad2.shape[1:], pad2.dtype)

    # ---- Conv2 on the TH output rows ----
    y2 = conv3x3_bias_relu(pad2, TH, w2_ref, b2_ref, Cm_p, Co_p)
    o_ref[0] = y2.reshape(TH, Wo, Co_p).astype(o_ref.dtype)


# -------------------------------- Wrapper -----------------------------------


def down_forward(x_nchw, params, row_tile=None):
    """Down.forward: MaxPool2d(2) -> (Conv3x3 -> BN -> ReLU) x 2. NCHW in/out."""
    N, Cin, H, W = x_nchw.shape
    assert H % 2 == 0 and W % 2 == 0, "MaxPool2d(2) expects even H, W"
    Ho, Wo = H // 2, W // 2
    Cmid = params["w1"].shape[-1]
    Cout = params["w2"].shape[-1]
    Cin_p = _round_up(Cin, _LANE)
    Cm_p = _pad_channels(Cmid)
    Co_p = _pad_channels(Cout)

    if row_tile is None:
        row_tile = _pick_row_tile(Ho)
    TH = row_tile
    assert Ho % TH == 0, "row_tile must divide the pooled height"
    n_chunks = Ho // TH
    W1p = _round_up(Wo + 2, 8)        # scratch W rounded to a sublane multiple

    # NCHW -> NHWC bf16 (true Cin only: no HBM channel padding), reshape so the
    # 2x2 pool window sits on a leading axis (H pair) and on the lane axis at
    # offset Cin (W pair), then gather overlapping row chunks with a
    # 2-pooled-row zero halo at the image borders.
    x = jnp.transpose(x_nchw, (0, 2, 3, 1)).astype(jnp.bfloat16)
    x = x.reshape(N, Ho, 2, Wo, 2 * Cin)
    x = jnp.pad(x, ((0, 0), (2, 2), (0, 0), (0, 0), (0, 0)))
    row_idx = jnp.arange(n_chunks)[:, None] * TH + jnp.arange(TH + 4)[None, :]
    x = x[:, row_idx]                 # (N, n_chunks, TH+4, 2, Wo, 2*Cin)

    # Fold BN scale into the conv weights, pad channels, pack the 3 dx taps
    # with Cin into one contraction axis per dy, cast to bf16.
    def prep_w(w, scale, cin, cin_p, cout, cout_p):
        w = (w * scale.reshape(1, 1, 1, -1)).astype(jnp.bfloat16)
        w = jnp.pad(w, ((0, 0), (0, 0), (0, cin_p - cin), (0, cout_p - cout)))
        return w.reshape(3, 3 * cin_p, cout_p)

    w1 = prep_w(params["w1"], params["scale1"], Cin, Cin_p, Cmid, Cm_p)
    w2 = prep_w(params["w2"], params["scale2"], Cmid, Cm_p, Cout, Co_p)
    b1 = jnp.pad(params["bias1"], ((0, 0), (0, Cm_p - Cmid))).astype(jnp.float32)
    b2 = jnp.pad(params["bias2"], ((0, 0), (0, Co_p - Cout))).astype(jnp.float32)

    # VMEM budget estimate -> explicit scoped limit (capped at v7x's 64 MiB).
    bpe = 2
    x_blk = (TH + 4) * 2 * Wo * 2 * Cin * bpe
    o_blk = TH * Wo * Co_p * bpe
    w_bytes = (3 * 3 * Cin_p * Cm_p + 3 * 3 * Cm_p * Co_p) * bpe
    pad_bytes = (TH + 4) * W1p * Cin_p * bpe + (TH + 2) * W1p * Cm_p * bpe
    stage = ((TH + 2) * Wo * (3 * Cin_p * bpe + 4 * Cm_p)
             + TH * Wo * (3 * Cm_p * bpe + 4 * Co_p))
    need = 2 * (x_blk + o_blk) + 2 * w_bytes + pad_bytes + stage + (Cm_p + Co_p) * 8
    vmem_limit = int(min(max(2 * need, 32 * 1024 * 1024), 64 * 1024 * 1024))

    cost = pl.CostEstimate(
        flops=int(2 * N * Ho * Wo * 9 * (Cin_p * Cm_p + Cm_p * Co_p)),
        transcendentals=0,
        bytes_accessed=int(x.size * bpe + (w1.size + w2.size) * bpe
                           + (b1.size + b2.size) * 4 + N * Ho * Wo * Co_p * bpe))

    out = pl.pallas_call(
        _down_fused_kernel,
        out_shape=jax.ShapeDtypeStruct((N, Ho, Wo, Co_p), jnp.bfloat16),
        grid=(N, n_chunks),
        in_specs=[
            pl.BlockSpec((1, 1, TH + 4, 2, Wo, 2 * Cin),
                         lambda n, c: (n, c, 0, 0, 0, 0)),
            pl.BlockSpec((3, 3 * Cin_p, Cm_p), lambda n, c: (0, 0, 0)),
            pl.BlockSpec((1, Cm_p), lambda n, c: (0, 0)),
            pl.BlockSpec((3, 3 * Cm_p, Co_p), lambda n, c: (0, 0, 0)),
            pl.BlockSpec((1, Co_p), lambda n, c: (0, 0)),
        ],
        out_specs=pl.BlockSpec((1, TH, Wo, Co_p), lambda n, c: (n, c, 0, 0)),
        scratch_shapes=[
            pltpu.VMEM((TH + 4, W1p, Cin_p), jnp.bfloat16),
            pltpu.VMEM((TH + 2, W1p, Cm_p), jnp.bfloat16),
        ],
        compiler_params=pltpu.CompilerParams(
            dimension_semantics=("parallel", "parallel"),
            vmem_limit_bytes=vmem_limit,
        ),
        cost_estimate=cost,
    )(x, w1, b1, w2, b2)

    # Drop channel padding and transpose while still bf16; cast at the end.
    out = jnp.transpose(out[..., :Cout], (0, 3, 1, 2))
    return out.astype(jnp.float32)


# ----------------------- Deterministic parameter init -----------------------


def _fold_bn(gamma, beta, mean, var, eps=1e-5):
    scale = gamma / jnp.sqrt(var + eps)
    bias = beta - mean * scale
    return scale.reshape(1, -1), bias.reshape(1, -1)


def init_params(key, in_channels, out_channels, mid_channels=None):
    if mid_channels is None:
        mid_channels = out_channels
    ks = jax.random.split(key, 10)
    w1 = 0.1 * jax.random.normal(ks[0], (3, 3, in_channels, mid_channels), jnp.float32)
    w2 = 0.1 * jax.random.normal(ks[1], (3, 3, mid_channels, out_channels), jnp.float32)
    g1 = 1.0 + 0.1 * jax.random.normal(ks[2], (mid_channels,), jnp.float32)
    b1 = 0.1 * jax.random.normal(ks[3], (mid_channels,), jnp.float32)
    m1 = 0.1 * jax.random.normal(ks[4], (mid_channels,), jnp.float32)
    v1 = 1.0 + 0.1 * jax.random.uniform(ks[5], (mid_channels,), jnp.float32)
    g2 = 1.0 + 0.1 * jax.random.normal(ks[6], (out_channels,), jnp.float32)
    b2 = 0.1 * jax.random.normal(ks[7], (out_channels,), jnp.float32)
    m2 = 0.1 * jax.random.normal(ks[8], (out_channels,), jnp.float32)
    v2 = 1.0 + 0.1 * jax.random.uniform(ks[9], (out_channels,), jnp.float32)
    s1, bias1 = _fold_bn(g1, b1, m1, v1)
    s2, bias2 = _fold_bn(g2, b2, m2, v2)
    return {"w1": w1, "scale1": s1, "bias1": bias1,
            "w2": w2, "scale2": s2, "bias2": bias2}


# ----------------------------- JAX references --------------------------------


def down_reference_matched(x_nchw, params):
    """XLA reference with numerics matched to the kernel (bf16 MXU operands and
    bf16-staged activations, f32 accumulation, BN scale folded into weights)."""
    x = jnp.transpose(x_nchw, (0, 2, 3, 1)).astype(jnp.bfloat16)
    x = jax.lax.reduce_window(x, jnp.array(-jnp.inf, x.dtype), jax.lax.max,
                              (1, 2, 2, 1), (1, 2, 2, 1), "VALID")

    def conv_bn_relu(x, w, scale, bias):
        w = (w * scale.reshape(1, 1, 1, -1)).astype(jnp.bfloat16)
        y = jax.lax.conv_general_dilated(
            x, w, window_strides=(1, 1), padding="SAME",
            dimension_numbers=("NHWC", "HWIO", "NHWC"),
            preferred_element_type=jnp.float32)
        y = jnp.maximum(y + bias.reshape(1, 1, 1, -1), 0.0)
        return y.astype(jnp.bfloat16)   # kernel stages/stores activations in bf16

    x = conv_bn_relu(x, params["w1"], params["scale1"], params["bias1"])
    x = conv_bn_relu(x, params["w2"], params["scale2"], params["bias2"])
    return jnp.transpose(x, (0, 3, 1, 2)).astype(jnp.float32)


def down_reference_f32(x_nchw, params):
    """Full-f32 (HIGHEST precision) reference of the PyTorch semantics."""
    x = jnp.transpose(x_nchw, (0, 2, 3, 1))
    x = jax.lax.reduce_window(x, -jnp.inf, jax.lax.max,
                              (1, 2, 2, 1), (1, 2, 2, 1), "VALID")

    def conv_bn_relu(x, w, scale, bias):
        y = jax.lax.conv_general_dilated(
            x, w, window_strides=(1, 1), padding="SAME",
            dimension_numbers=("NHWC", "HWIO", "NHWC"),
            precision=jax.lax.Precision.HIGHEST)
        y = y * scale.reshape(1, 1, 1, -1) + bias.reshape(1, 1, 1, -1)
        return jnp.maximum(y, 0.0)

    x = conv_bn_relu(x, params["w1"], params["scale1"], params["bias1"])
    x = conv_bn_relu(x, params["w2"], params["scale2"], params["bias2"])
    return jnp.transpose(x, (0, 3, 1, 2))


# ---------------------------------- Main -------------------------------------


if __name__ == "__main__":
    key = jax.random.PRNGKey(0)
    kx, kp = jax.random.split(key)

    # Small shapes consistent with Down(in_channels=4, out_channels=8), NCHW input.
    N, C_in, H, W = 2, 4, 16, 16
    C_out = 8
    x = jax.random.normal(kx, (N, C_in, H, W), jnp.float32)
    params = init_params(kp, C_in, C_out)

    fwd = jax.jit(down_forward)
    y = jax.block_until_ready(fwd(x, params))
    assert y.shape == (N, C_out, H // 2, W // 2), y.shape

    # Exercise the multi-chunk row-tiled path (2 chunks of 4 pooled rows) and
    # check it agrees with the single-chunk result (validates the halo logic).
    fwd_tiled = jax.jit(lambda a, p: down_forward(a, p, row_tile=4))
    y_tiled = jax.block_until_ready(fwd_tiled(x, params))
    err_t = float(jnp.max(jnp.abs(y - y_tiled)))
    assert jnp.allclose(y, y_tiled, atol=1e-3, rtol=1e-3), err_t

    # Tight check vs an XLA reference with the same numerics (bf16 operands,
    # f32 accumulation, bf16-staged activations).
    y_match = jax.block_until_ready(down_reference_matched(x, params))
    err = float(jnp.max(jnp.abs(y - y_match)))
    assert jnp.allclose(y, y_match, atol=3e-2, rtol=3e-2), err

    # Loose sanity check vs the full-f32 HIGHEST-precision reference (bounds
    # the bf16 rounding of the fast path; structural bugs are O(1)).
    y_f32 = jax.block_until_ready(down_reference_f32(x, params))
    err32 = float(jnp.max(jnp.abs(y - y_f32)))
    assert jnp.allclose(y, y_f32, atol=1.5e-1, rtol=1e-1), err32

    print("KERNEL_OK")
</pallas_src>

<mosaic_0001>
module attributes {stable_mosaic.version = 11 : i64} {
  func.func @_down_fused_kernel(%arg0: i32, %arg1: i32, %arg2: memref<1x1x12x2x8x8xbf16, #tpu.memory_space<vmem>>, %arg3: memref<3x384x128xbf16, #tpu.memory_space<vmem>>, %arg4: memref<1x128xf32, #tpu.memory_space<vmem>>, %arg5: memref<3x384x128xbf16, #tpu.memory_space<vmem>>, %arg6: memref<1x128xf32, #tpu.memory_space<vmem>>, %arg7: memref<1x8x8x128xbf16, #tpu.memory_space<vmem>>, %arg8: memref<12x16x128xbf16, #tpu.memory_space<vmem>>, %arg9: memref<10x16x128xbf16, #tpu.memory_space<vmem>>) attributes {dimension_semantics = [#tpu.dimension_semantics<parallel>, #tpu.dimension_semantics<parallel>], iteration_bounds = array<i64: 2, 1>, scalar_prefetch = 0 : i64, scratch_operands = 2 : i64, tpu.core_type = #tpu.core_type<tc>, window_params = [{transform_indices = @transform_0, window_bounds = array<i64: 1, 1, 12, 2, 8, 8>}, {pipeline_mode = #tpu.pipeline_mode<synchronous>, transform_indices = @transform_1, window_bounds = array<i64: 3, 384, 128>}, {pipeline_mode = #tpu.pipeline_mode<synchronous>, transform_indices = @transform_2, window_bounds = array<i64: 1, 128>}, {pipeline_mode = #tpu.pipeline_mode<synchronous>, transform_indices = @transform_3, window_bounds = array<i64: 3, 384, 128>}, {pipeline_mode = #tpu.pipeline_mode<synchronous>, transform_indices = @transform_4, window_bounds = array<i64: 1, 128>}, {transform_indices = @transform_5, window_bounds = array<i64: 1, 8, 8, 128>}]} {
    %c0 = arith.constant 0 : index
    %c0_0 = arith.constant 0 : index
    %c0_1 = arith.constant 0 : index
    %c0_2 = arith.constant 0 : index
    %c0_3 = arith.constant 0 : index
    %c0_4 = arith.constant 0 : index
    %0 = vector.load %arg2[%c0, %c0_0, %c0_1, %c0_2, %c0_3, %c0_4] : memref<1x1x12x2x8x8xbf16, #tpu.memory_space<vmem>>, vector<1x1x12x2x8x8xbf16>
    %1 = vector.shape_cast %0 : vector<1x1x12x2x8x8xbf16> to vector<12x2x8x8xbf16>
    %2 = vector.extract_strided_slice %1 {offsets = [0, 0, 0, 0], sizes = [12, 1, 8, 8], strides = [1, 1, 1, 1]} : vector<12x2x8x8xbf16> to vector<12x1x8x8xbf16>
    %3 = vector.shape_cast %2 : vector<12x1x8x8xbf16> to vector<12x8x8xbf16>
    %4 = vector.extract_strided_slice %1 {offsets = [0, 1, 0, 0], sizes = [12, 1, 8, 8], strides = [1, 1, 1, 1]} : vector<12x2x8x8xbf16> to vector<12x1x8x8xbf16>
    %5 = vector.shape_cast %4 : vector<12x1x8x8xbf16> to vector<12x8x8xbf16>
    %6 = arith.maximumf %3, %5 : vector<12x8x8xbf16>
    %7 = vector.extract_strided_slice %6 {offsets = [0, 0, 0], sizes = [12, 8, 4], strides = [1, 1, 1]} : vector<12x8x8xbf16> to vector<12x8x4xbf16>
    %8 = vector.extract_strided_slice %6 {offsets = [0, 0, 4], sizes = [12, 8, 4], strides = [1, 1, 1]} : vector<12x8x8xbf16> to vector<12x8x4xbf16>
    %9 = arith.maximumf %7, %8 : vector<12x8x4xbf16>
    %cst = arith.constant 0.000000e+00 : bf16
    %10 = vector.broadcast %cst : bf16 to vector<12x16x128xbf16>
    %c0_5 = arith.constant 0 : index
    %c0_6 = arith.constant 0 : index
    %c0_7 = arith.constant 0 : index
    %11 = vector.load %arg8[%c0_5, %c0_6, %c0_7] : memref<12x16x128xbf16, #tpu.memory_space<vmem>>, vector<12x16x128xbf16>
    tpu.vector_store %arg8[%c0_5, %c0_6, %c0_7], %10 {strides = array<i32>} : memref<12x16x128xbf16, #tpu.memory_space<vmem>>, vector<12x16x128xbf16>,
    %c0_8 = arith.constant 0 : index
    %c1 = arith.constant 1 : index
    %c0_9 = arith.constant 0 : index
    %12 = vector.load %arg8[%c0_8, %c1, %c0_9] : memref<12x16x128xbf16, #tpu.memory_space<vmem>>, vector<12x8x4xbf16>
    tpu.vector_store %arg8[%c0_8, %c1, %c0_9], %9 {strides = array<i32>} : memref<12x16x128xbf16, #tpu.memory_space<vmem>>, vector<12x8x4xbf16>,
    %cst_10 = arith.constant 0.000000e+00 : f32
    %13 = vector.broadcast %cst_10 : f32 to vector<80x128xf32>
    %c0_11 = arith.constant 0 : index
    %c0_12 = arith.constant 0 : index
    %c0_13 = arith.constant 0 : index
    %14 = vector.load %arg8[%c0_11, %c0_12, %c0_13] : memref<12x16x128xbf16, #tpu.memory_space<vmem>>, vector<10x8x128xbf16>
    %c0_14 = arith.constant 0 : index
    %c1_15 = arith.constant 1 : index
    %c0_16 = arith.constant 0 : index
    %15 = vector.load %arg8[%c0_14, %c1_15, %c0_16] : memref<12x16x128xbf16, #tpu.memory_space<vmem>>, vector<10x8x128xbf16>
    %c0_17 = arith.constant 0 : index
    %c2 = arith.constant 2 : index
    %c0_18 = arith.constant 0 : index
    %16 = vector.load %arg8[%c0_17, %c2, %c0_18] : memref<12x16x128xbf16, #tpu.memory_space<vmem>>, vector<10x8x128xbf16>
    %17 = tpu.concatenate %14, %15, %16 in 2 : vector<10x8x128xbf16>, vector<10x8x128xbf16>, vector<10x8x128xbf16> -> vector<10x8x384xbf16>
    %18 = vector.shape_cast %17 : vector<10x8x384xbf16> to vector<80x384xbf16>
    %c0_19 = arith.constant 0 : index
    %c0_20 = arith.constant 0 : index
    %c0_21 = arith.constant 0 : index
    %19 = vector.load %arg3[%c0_19, %c0_20, %c0_21] : memref<3x384x128xbf16, #tpu.memory_space<vmem>>, vector<1x384x128xbf16>
    %20 = vector.shape_cast %19 : vector<1x384x128xbf16> to vector<384x128xbf16>
    %cst_22 = arith.constant dense<0.000000e+00> : vector<80x128xf32>
    %21 = tpu.matmul %18, %20, %cst_22 {dimension_numbers = #tpu.dot_dimension_numbers<[1], [0], [0], [1], [0, 0, 1, 1], [], []>} : vector<80x384xbf16>, vector<384x128xbf16>, vector<80x128xf32> -> vector<80x128xf32>
    %22 = arith.addf %13, %21 : vector<80x128xf32>
    %c1_23 = arith.constant 1 : index
    %c0_24 = arith.constant 0 : index
    %c0_25 = arith.constant 0 : index
    %23 = vector.load %arg8[%c1_23, %c0_24, %c0_25] : memref<12x16x128xbf16, #tpu.memory_space<vmem>>, vector<10x8x128xbf16>
    %c1_26 = arith.constant 1 : index
    %c1_27 = arith.constant 1 : index
    %c0_28 = arith.constant 0 : index
    %24 = vector.load %arg8[%c1_26, %c1_27, %c0_28] : memref<12x16x128xbf16, #tpu.memory_space<vmem>>, vector<10x8x128xbf16>
    %c1_29 = arith.constant 1 : index
    %c2_30 = arith.constant 2 : index
    %c0_31 = arith.constant 0 : index
    %25 = vector.load %arg8[%c1_29, %c2_30, %c0_31] : memref<12x16x128xbf16, #tpu.memory_space<vmem>>, vector<10x8x128xbf16>
    %26 = tpu.concatenate %23, %24, %25 in 2 : vector<10x8x128xbf16>, vector<10x8x128xbf16>, vector<10x8x128xbf16> -> vector<10x8x384xbf16>
    %27 = vector.shape_cast %26 : vector<10x8x384xbf16> to vector<80x384xbf16>
    %c1_32 = arith.constant 1 : index
    %c0_33 = arith.constant 0 : index
    %c0_34 = arith.constant 0 : index
    %28 = vector.load %arg3[%c1_32, %c0_33, %c0_34] : memref<3x384x128xbf16, #tpu.memory_space<vmem>>, vector<1x384x128xbf16>
    %29 = vector.shape_cast %28 : vector<1x384x128xbf16> to vector<384x128xbf16>
    %cst_35 = arith.constant dense<0.000000e+00> : vector<80x128xf32>
    %30 = tpu.matmul %27, %29, %cst_35 {dimension_numbers = #tpu.dot_dimension_numbers<[1], [0], [0], [1], [0, 0, 1, 1], [], []>} : vector<80x384xbf16>, vector<384x128xbf16>, vector<80x128xf32> -> vector<80x128xf32>
    %31 = arith.addf %22, %30 : vector<80x128xf32>
    %c2_36 = arith.constant 2 : index
    %c0_37 = arith.constant 0 : index
    %c0_38 = arith.constant 0 : index
    %32 = vector.load %arg8[%c2_36, %c0_37, %c0_38] : memref<12x16x128xbf16, #tpu.memory_space<vmem>>, vector<10x8x128xbf16>
    %c2_39 = arith.constant 2 : index
    %c1_40 = arith.constant 1 : index
    %c0_41 = arith.constant 0 : index
    %33 = vector.load %arg8[%c2_39, %c1_40, %c0_41] : memref<12x16x128xbf16, #tpu.memory_space<vmem>>, vector<10x8x128xbf16>
    %c2_42 = arith.constant 2 : index
    %c2_43 = arith.constant 2 : index
    %c0_44 = arith.constant 0 : index
    %34 = vector.load %arg8[%c2_42, %c2_43, %c0_44] : memref<12x16x128xbf16, #tpu.memory_space<vmem>>, vector<10x8x128xbf16>
    %35 = tpu.concatenate %32, %33, %34 in 2 : vector<10x8x128xbf16>, vector<10x8x128xbf16>, vector<10x8x128xbf16> -> vector<10x8x384xbf16>
    %36 = vector.shape_cast %35 : vector<10x8x384xbf16> to vector<80x384xbf16>
    %c2_45 = arith.constant 2 : index
    %c0_46 = arith.constant 0 : index
    %c0_47 = arith.constant 0 : index
    %37 = vector.load %arg3[%c2_45, %c0_46, %c0_47] : memref<3x384x128xbf16, #tpu.memory_space<vmem>>, vector<1x384x128xbf16>
    %38 = vector.shape_cast %37 : vector<1x384x128xbf16> to vector<384x128xbf16>
    %cst_48 = arith.constant dense<0.000000e+00> : vector<80x128xf32>
    %39 = tpu.matmul %36, %38, %cst_48 {dimension_numbers = #tpu.dot_dimension_numbers<[1], [0], [0], [1], [0, 0, 1, 1], [], []>} : vector<80x384xbf16>, vector<384x128xbf16>, vector<80x128xf32> -> vector<80x128xf32>
    %40 = arith.addf %31, %39 : vector<80x128xf32>
    %c0_49 = arith.constant 0 : index
    %c0_50 = arith.constant 0 : index
    %41 = vector.load %arg4[%c0_49, %c0_50] : memref<1x128xf32, #tpu.memory_space<vmem>>, vector<1x128xf32>
    %42 = vector.broadcast %41 : vector<1x128xf32> to vector<80x128xf32>
    %43 = arith.addf %40, %42 : vector<80x128xf32>
    %cst_51 = arith.constant 0.000000e+00 : f32
    %44 = vector.broadcast %cst_51 : f32 to vector<80x128xf32>
    %45 = arith.maximumf %43, %44 : vector<80x128xf32>
    %cst_52 = arith.constant 0.000000e+00 : bf16
    %46 = vector.broadcast %cst_52 : bf16 to vector<10x1x128xbf16>
    %c0_53 = arith.constant 0 : index
    %c0_54 = arith.constant 0 : index
    %c0_55 = arith.constant 0 : index
    %47 = vector.load %arg9[%c0_53, %c0_54, %c0_55] : memref<10x16x128xbf16, #tpu.memory_space<vmem>>, vector<10x1x128xbf16>
    tpu.vector_store %arg9[%c0_53, %c0_54, %c0_55], %46 {strides = array<i32>} : memref<10x16x128xbf16, #tpu.memory_space<vmem>>, vector<10x1x128xbf16>,
    %c0_56 = arith.constant 0 : index
    %c9 = arith.constant 9 : index
    %c0_57 = arith.constant 0 : index
    %48 = vector.load %arg9[%c0_56, %c9, %c0_57] : memref<10x16x128xbf16, #tpu.memory_space<vmem>>, vector<10x1x128xbf16>
    tpu.vector_store %arg9[%c0_56, %c9, %c0_57], %46 {strides = array<i32>} : memref<10x16x128xbf16, #tpu.memory_space<vmem>>, vector<10x1x128xbf16>,
    %49 = vector.shape_cast %45 : vector<80x128xf32> to vector<10x8x128xf32>
    %50 = arith.truncf %49 : vector<10x8x128xf32> to vector<10x8x128xbf16>
    %c0_58 = arith.constant 0 : index
    %c1_59 = arith.constant 1 : index
    %c0_60 = arith.constant 0 : index
    %51 = vector.load %arg9[%c0_58, %c1_59, %c0_60] : memref<10x16x128xbf16, #tpu.memory_space<vmem>>, vector<10x8x128xbf16>
    tpu.vector_store %arg9[%c0_58, %c1_59, %c0_60], %50 {strides = array<i32>} : memref<10x16x128xbf16, #tpu.memory_space<vmem>>, vector<10x8x128xbf16>,
    %c0_i32 = arith.constant 0 : i32
    %52 = arith.cmpi eq, %arg1, %c0_i32 : i32
    %53 = arith.extui %52 : i1 to i32
    %c0_i32_61 = arith.constant 0 : i32
    %54 = arith.cmpi ne, %53, %c0_i32_61 : i32
    scf.if %54 {
      %cst_111 = arith.constant 0.000000e+00 : bf16
      %96 = vector.broadcast %cst_111 : bf16 to vector<16x128xbf16>
      %c0_112 = arith.constant 0 : index
      %c0_113 = arith.constant 0 : index
      %c0_114 = arith.constant 0 : index
      %97 = vector.load %arg9[%c0_112, %c0_113, %c0_114] : memref<10x16x128xbf16, #tpu.memory_space<vmem>>, vector<1x16x128xbf16>
      %98 = vector.shape_cast %97 : vector<1x16x128xbf16> to vector<16x128xbf16>
      %99 = vector.shape_cast %96 : vector<16x128xbf16> to vector<1x16x128xbf16>
      tpu.vector_store %arg9[%c0_112, %c0_113, %c0_114], %99 {strides = array<i32>} : memref<10x16x128xbf16, #tpu.memory_space<vmem>>, vector<1x16x128xbf16>,
    } else {
    }
    %c0_i32_62 = arith.constant 0 : i32
    %55 = arith.cmpi eq, %arg1, %c0_i32_62 : i32
    %56 = arith.extui %55 : i1 to i32
    %c0_i32_63 = arith.constant 0 : i32
    %57 = arith.cmpi ne, %56, %c0_i32_63 : i32
    scf.if %57 {
      %cst_111 = arith.constant 0.000000e+00 : bf16
      %96 = vector.broadcast %cst_111 : bf16 to vector<16x128xbf16>
      %c9_112 = arith.constant 9 : index
      %c0_113 = arith.constant 0 : index
      %c0_114 = arith.constant 0 : index
      %97 = vector.load %arg9[%c9_112, %c0_113, %c0_114] : memref<10x16x128xbf16, #tpu.memory_space<vmem>>, vector<1x16x128xbf16>
      %98 = vector.shape_cast %97 : vector<1x16x128xbf16> to vector<16x128xbf16>
      %99 = vector.shape_cast %96 : vector<16x128xbf16> to vector<1x16x128xbf16>
      tpu.vector_store %arg9[%c9_112, %c0_113, %c0_114], %99 {strides = array<i32>} : memref<10x16x128xbf16, #tpu.memory_space<vmem>>, vector<1x16x128xbf16>,
    } else {
    }
    %cst_64 = arith.constant 0.000000e+00 : f32
    %58 = vector.broadcast %cst_64 : f32 to vector<64x128xf32>
    %c0_65 = arith.constant 0 : index
    %c0_66 = arith.constant 0 : index
    %c0_67 = arith.constant 0 : index
    %59 = vector.load %arg9[%c0_65, %c0_66, %c0_67] : memref<10x16x128xbf16, #tpu.memory_space<vmem>>, vector<8x8x128xbf16>
    %c0_68 = arith.constant 0 : index
    %c1_69 = arith.constant 1 : index
    %c0_70 = arith.constant 0 : index
    %60 = vector.load %arg9[%c0_68, %c1_69, %c0_70] : memref<10x16x128xbf16, #tpu.memory_space<vmem>>, vector<8x8x128xbf16>
    %c0_71 = arith.constant 0 : index
    %c2_72 = arith.constant 2 : index
    %c0_73 = arith.constant 0 : index
    %61 = vector.load %arg9[%c0_71, %c2_72, %c0_73] : memref<10x16x128xbf16, #tpu.memory_space<vmem>>, vector<8x8x128xbf16>
    %62 = tpu.concatenate %59, %60, %61 in 2 : vector<8x8x128xbf16>, vector<8x8x128xbf16>, vector<8x8x128xbf16> -> vector<8x8x384xbf16>
    %63 = vector.shape_cast %62 : vector<8x8x384xbf16> to vector<64x384xbf16>
    %c0_74 = arith.constant 0 : index
    %c0_75 = arith.constant 0 : index
    %c0_76 = arith.constant 0 : index
    %64 = vector.load %arg5[%c0_74, %c0_75, %c0_76] : memref<3x384x128xbf16, #tpu.memory_space<vmem>>, vector<1x384x128xbf16>
    %65 = vector.shape_cast %64 : vector<1x384x128xbf16> to vector<384x128xbf16>
    %cst_77 = arith.constant dense<0.000000e+00> : vector<64x128xf32>
    %66 = tpu.matmul %63, %65, %cst_77 {dimension_numbers = #tpu.dot_dimension_numbers<[1], [0], [0], [1], [0, 0, 1, 1], [], []>} : vector<64x384xbf16>, vector<384x128xbf16>, vector<64x128xf32> -> vector<64x128xf32>
    %67 = arith.addf %58, %66 : vector<64x128xf32>
    %c1_78 = arith.constant 1 : index
    %c0_79 = arith.constant 0 : index
    %c0_80 = arith.constant 0 : index
    %68 = vector.load %arg9[%c1_78, %c0_79, %c0_80] : memref<10x16x128xbf16, #tpu.memory_space<vmem>>, vector<8x8x128xbf16>
    %c1_81 = arith.constant 1 : index
    %c1_82 = arith.constant 1 : index
    %c0_83 = arith.constant 0 : index
    %69 = vector.load %arg9[%c1_81, %c1_82, %c0_83] : memref<10x16x128xbf16, #tpu.memory_space<vmem>>, vector<8x8x128xbf16>
    %c1_84 = arith.constant 1 : index
    %c2_85 = arith.constant 2 : index
    %c0_86 = arith.constant 0 : index
    %70 = vector.load %arg9[%c1_84, %c2_85, %c0_86] : memref<10x16x128xbf16, #tpu.memory_space<vmem>>, vector<8x8x128xbf16>
    %71 = tpu.concatenate %68, %69, %70 in 2 : vector<8x8x128xbf16>, vector<8x8x128xbf16>, vector<8x8x128xbf16> -> vector<8x8x384xbf16>
    %72 = vector.shape_cast %71 : vector<8x8x384xbf16> to vector<64x384xbf16>
    %c1_87 = arith.constant 1 : index
    %c0_88 = arith.constant 0 : index
    %c0_89 = arith.constant 0 : index
    %73 = vector.load %arg5[%c1_87, %c0_88, %c0_89] : memref<3x384x128xbf16, #tpu.memory_space<vmem>>, vector<1x384x128xbf16>
    %74 = vector.shape_cast %73 : vector<1x384x128xbf16> to vector<384x128xbf16>
    %cst_90 = arith.constant dense<0.000000e+00> : vector<64x128xf32>
    %75 = tpu.matmul %72, %74, %cst_90 {dimension_numbers = #tpu.dot_dimension_numbers<[1], [0], [0], [1], [0, 0, 1, 1], [], []>} : vector<64x384xbf16>, vector<384x128xbf16>, vector<64x128xf32> -> vector<64x128xf32>
    %76 = arith.addf %67, %75 : vector<64x128xf32>
    %c2_91 = arith.constant 2 : index
    %c0_92 = arith.constant 0 : index
    %c0_93 = arith.constant 0 : index
    %77 = vector.load %arg9[%c2_91, %c0_92, %c0_93] : memref<10x16x128xbf16, #tpu.memory_space<vmem>>, vector<8x8x128xbf16>
    %c2_94 = arith.constant 2 : index
    %c1_95 = arith.constant 1 : index
    %c0_96 = arith.constant 0 : index
    %78 = vector.load %arg9[%c2_94, %c1_95, %c0_96] : memref<10x16x128xbf16, #tpu.memory_space<vmem>>, vector<8x8x128xbf16>
    %c2_97 = arith.constant 2 : index
    %c2_98 = arith.constant 2 : index
    %c0_99 = arith.constant 0 : index
    %79 = vector.load %arg9[%c2_97, %c2_98, %c0_99] : memref<10x16x128xbf16, #tpu.memory_space<vmem>>, vector<8x8x128xbf16>
    %80 = tpu.concatenate %77, %78, %79 in 2 : vector<8x8x128xbf16>, vector<8x8x128xbf16>, vector<8x8x128xbf16> -> vector<8x8x384xbf16>
    %81 = vector.shape_cast %80 : vector<8x8x384xbf16> to vector<64x384xbf16>
    %c2_100 = arith.constant 2 : index
    %c0_101 = arith.constant 0 : index
    %c0_102 = arith.constant 0 : index
    %82 = vector.load %arg5[%c2_100, %c0_101, %c0_102] : memref<3x384x128xbf16, #tpu.memory_space<vmem>>, vector<1x384x128xbf16>
    %83 = vector.shape_cast %82 : vector<1x384x128xbf16> to vector<384x128xbf16>
    %cst_103 = arith.constant dense<0.000000e+00> : vector<64x128xf32>
    %84 = tpu.matmul %81, %83, %cst_103 {dimension_numbers = #tpu.dot_dimension_numbers<[1], [0], [0], [1], [0, 0, 1, 1], [], []>} : vector<64x384xbf16>, vector<384x128xbf16>, vector<64x128xf32> -> vector<64x128xf32>
    %85 = arith.addf %76, %84 : vector<64x128xf32>
    %c0_104 = arith.constant 0 : index
    %c0_105 = arith.constant 0 : index
    %86 = vector.load %arg6[%c0_104, %c0_105] : memref<1x128xf32, #tpu.memory_space<vmem>>, vector<1x128xf32>
    %87 = vector.broadcast %86 : vector<1x128xf32> to vector<64x128xf32>
    %88 = arith.addf %85, %87 : vector<64x128xf32>
    %cst_106 = arith.constant 0.000000e+00 : f32
    %89 = vector.broadcast %cst_106 : f32 to vector<64x128xf32>
    %90 = arith.maximumf %88, %89 : vector<64x128xf32>
    %91 = vector.shape_cast %90 : vector<64x128xf32> to vector<8x8x128xf32>
    %92 = arith.truncf %91 : vector<8x8x128xf32> to vector<8x8x128xbf16>
    %c0_107 = arith.constant 0 : index
    %c0_108 = arith.constant 0 : index
    %c0_109 = arith.constant 0 : index
    %c0_110 = arith.constant 0 : index
    %93 = vector.load %arg7[%c0_107, %c0_108, %c0_109, %c0_110] : memref<1x8x8x128xbf16, #tpu.memory_space<vmem>>, vector<1x8x8x128xbf16>
    %94 = vector.shape_cast %93 : vector<1x8x8x128xbf16> to vector<8x8x128xbf16>
    %95 = vector.shape_cast %92 : vector<8x8x128xbf16> to vector<1x8x8x128xbf16>
    tpu.vector_store %arg7[%c0_107, %c0_108, %c0_109, %c0_110], %95 {strides = array<i32>} : memref<1x8x8x128xbf16, #tpu.memory_space<vmem>>, vector<1x8x8x128xbf16>,
    return
  }
  func.func @transform_0(%arg0: i32, %arg1: i32) -> (i32, i32, i32, i32, i32, i32) {
    %c0_i32 = arith.constant 0 : i32
    %c0_i32_0 = arith.constant 0 : i32
    %c0_i32_1 = arith.constant 0 : i32
    %c0_i32_2 = arith.constant 0 : i32
    %c0_i32_3 = arith.constant 0 : i32
    return %arg0, %arg1, %c0_i32, %c0_i32_0, %c0_i32_1, %c0_i32_2 : i32, i32, i32, i32, i32, i32
  }
  func.func @transform_1(%arg0: i32, %arg1: i32) -> (i32, i32, i32) {
    %c0_i32 = arith.constant 0 : i32
    %c0_i32_0 = arith.constant 0 : i32
    %c0_i32_1 = arith.constant 0 : i32
    %c0_i32_2 = arith.constant 0 : i32
    return %c0_i32, %c0_i32_0, %c0_i32_1 : i32, i32, i32
  }
  func.func @transform_2(%arg0: i32, %arg1: i32) -> (i32, i32) {
    %c0_i32 = arith.constant 0 : i32
    %c0_i32_0 = arith.constant 0 : i32
    %c0_i32_1 = arith.constant 0 : i32
    return %c0_i32, %c0_i32_0 : i32, i32
  }
  func.func @transform_3(%arg0: i32, %arg1: i32) -> (i32, i32, i32) {
    %c0_i32 = arith.constant 0 : i32
    %c0_i32_0 = arith.constant 0 : i32
    %c0_i32_1 = arith.constant 0 : i32
    %c0_i32_2 = arith.constant 0 : i32
    return %c0_i32, %c0_i32_0, %c0_i32_1 : i32, i32, i32
  }
  func.func @transform_4(%arg0: i32, %arg1: i32) -> (i32, i32) {
    %c0_i32 = arith.constant 0 : i32
    %c0_i32_0 = arith.constant 0 : i32
    %c0_i32_1 = arith.constant 0 : i32
    return %c0_i32, %c0_i32_0 : i32, i32
  }
  func.func @transform_5(%arg0: i32, %arg1: i32) -> (i32, i32, i32, i32) {
    %c0_i32 = arith.constant 0 : i32
    %c0_i32_0 = arith.constant 0 : i32
    %c0_i32_1 = arith.constant 0 : i32
    return %arg0, %arg1, %c0_i32, %c0_i32_0 : i32, i32, i32, i32
  }
}

</mosaic_0001>

<llo_original>
// kernel: down_forward.1
$region0: #{down_forward.1}
  #allocation0 [shape = 'u32[]', space=smem, size = 0x4, offset = 0x4, fixed_abs, tag = 'smem constant byte address 0x4 - core index']
  #allocation1 [shape = 'u32[144,128]{1,0:T(1,128)}', space=vmem, size = 0x12000, scoped, tag = 'internal scratch']
  #allocation2 [shape = 'bf16[12,16,128]{2,1,0:T(16,128)(2,1)}', space=vmem, size = 0xc000, scoped, tag = 'scratch operand']
  #allocation3 [shape = 'bf16[10,16,128]{2,1,0:T(16,128)(2,1)}', space=vmem, size = 0xa000, scoped, tag = 'scratch operand']
  %s0 = inlined_call_operand.vmem [shape: bf16[2,1,12,2,8,8], index: 0, kind: input, shape index: {}]
  %s1 = inlined_call_operand.vmem [shape: bf16[3,384,128], index: 1, kind: input, shape index: {}]
  %s2 = inlined_call_operand.vmem [shape: f32[1,128], index: 2, kind: input, shape index: {}]
  %s3 = inlined_call_operand.vmem [shape: bf16[3,384,128], index: 3, kind: input, shape index: {}]
  %s4 = inlined_call_operand.vmem [shape: f32[1,128], index: 4, kind: input, shape index: {}]
  %s5 = inlined_call_operand.vmem [shape: bf16[2,8,8,128], index: 5, kind: output, shape index: {}]
  %s6 = sld [smem:[#allocation0]]
  $region57: #{down_forward.1} parent=0
    _
  %s8 = ssub.s32 1, %s6
  %s9 = scalar_select 0, %s8, %s6
  loop: start=0, step=1, limit=4
  $region2: #{down_forward.1} parent=0 // loop_pre_header
    _
  $region3: #{down_forward.1} parent=0 // loop_header
    %s11 = sphi 0, %s15
    %p12 = scmp.ge.s32.totalorder %s11, 4
    %s18 = sphi 0, %s30
    %s19 = sphi 0, %s26
    %s20 = sphi 0, %s18
    %s21 = sphi 0, %s19
    %s22 = sphi 0, %s20
    %s23 = sphi 0, %s21
    %s35 = sphi 0, %s37
    %s38 = sphi 0, %s35
    %s39 = sphi 0, %s38
    %s55 = sphi 0, %s39
    %s59 = sphi 0, %s59
    %s61 = sphi 0, %s59
    %s62 = sphi 0, %s61
    %s76 = sphi 0, %s62
    %s80 = sphi 0, %s80
    %s82 = sphi 0, %s80
    %s83 = sphi 0, %s82
    %s97 = sphi 0, %s83
    %s101 = sphi 0, %s101
    %s103 = sphi 0, %s101
    %s104 = sphi 0, %s103
    %s118 = sphi 0, %s104
    %s122 = sphi 0, %s122
    %s124 = sphi 0, %s122
    %s125 = sphi 0, %s124
    %s139 = sphi 0, %s125
    %s147 = sphi 0, %s149
    %s150 = sphi 0, %s147
    %s151 = sphi 0, %s150
    %s167 = sphi 0, %s151
  $region4: #{down_forward.1} parent=0 // loop_header_branch
    %14 = sbr.rel (%p12) target = $region8
  $region5: #{down_forward.1} parent=0 // loop_body
    %s16 = ssub.s32 %s11, 1
    %s17 = ssub.s32 %s11, 2
    %s24 = sadd.s32 1, %s19
    %p25 = scmp.ge.s32.totalorder %s24, 1
    %s26 = scalar_select %p25, 0, %s24
    %s27 = sadd.s32 1, %s18
    %s28 = scalar_select %p25, %s27, %s18
    %p29 = scmp.ge.s32.totalorder %s28, 2
    %s30 = scalar_select %p29, 0, %s28
    %s31 = ssub.s32 %s18, %s30
    %s32 = ssub.s32 %s19, %s26
    %s33 = sor.u32 %s31, %s32
    %p34 = scmp.eq.s32.totalorder %s33, 0
    %s36 = sadd.s32 %s35, 1
    %s37 = scalar_select %p34, %s35, %s36
    %p40 = pneg %p34
    %p41 = scmp.eq.s32.totalorder %s11, 1
    %p42 = por %p40, %p41
    %p43 = scmp.ne.s32.totalorder %s35, %s38
    %p44 = scmp.eq.s32.totalorder %s11, 0
    %p45 = por %p43, %p44
    %p46 = scmp.ne.s32.totalorder %s35, %s38
    %p47 = scmp.eq.s32.totalorder %s16, 1
    %p48 = por %p46, %p47
    %p49 = scmp.ne.s32.totalorder %s38, %s39
    %p50 = scmp.eq.s32.totalorder %s16, 0
    %p51 = por %p49, %p50
    %p52 = scmp.ne.s32.totalorder %s38, %s39
    %p53 = scmp.eq.s32.totalorder %s17, 1
    %p54 = por %p52, %p53
    %p56 = scmp.ne.s32.totalorder %s39, %s55
    %p57 = scmp.eq.s32.totalorder %s17, 0
    %p58 = por %p56, %p57
    %s60 = sadd.s32 %s59, 1
    %p63 = scmp.eq.s32.totalorder %s11, 1
    %p64 = scmp.ne.s32.totalorder %s59, %s61
    %p65 = scmp.eq.s32.totalorder %s11, 0
    %p66 = por %p64, %p65
    %p67 = scmp.ne.s32.totalorder %s59, %s61
    %p68 = scmp.eq.s32.totalorder %s16, 1
    %p69 = por %p67, %p68
    %p70 = scmp.ne.s32.totalorder %s61, %s62
    %p71 = scmp.eq.s32.totalorder %s16, 0
    %p72 = por %p70, %p71
    %p73 = scmp.ne.s32.totalorder %s61, %s62
    %p74 = scmp.eq.s32.totalorder %s17, 1
    %p75 = por %p73, %p74
    %p77 = scmp.ne.s32.totalorder %s62, %s76
    %p78 = scmp.eq.s32.totalorder %s17, 0
    %p79 = por %p77, %p78
    %s81 = sadd.s32 %s80, 1
    %p84 = scmp.eq.s32.totalorder %s11, 1
    %p85 = scmp.ne.s32.totalorder %s80, %s82
    %p86 = scmp.eq.s32.totalorder %s11, 0
    %p87 = por %p85, %p86
    %p88 = scmp.ne.s32.totalorder %s80, %s82
    %p89 = scmp.eq.s32.totalorder %s16, 1
    %p90 = por %p88, %p89
    %p91 = scmp.ne.s32.totalorder %s82, %s83
    %p92 = scmp.eq.s32.totalorder %s16, 0
    %p93 = por %p91, %p92
    %p94 = scmp.ne.s32.totalorder %s82, %s83
    %p95 = scmp.eq.s32.totalorder %s17, 1
    %p96 = por %p94, %p95
    %p98 = scmp.ne.s32.totalorder %s83, %s97
    %p99 = scmp.eq.s32.totalorder %s17, 0
    %p100 = por %p98, %p99
    %s102 = sadd.s32 %s101, 1
    %p105 = scmp.eq.s32.totalorder %s11, 1
    %p106 = scmp.ne.s32.totalorder %s101, %s103
    %p107 = scmp.eq.s32.totalorder %s11, 0
    %p108 = por %p106, %p107
    %p109 = scmp.ne.s32.totalorder %s101, %s103
    %p110 = scmp.eq.s32.totalorder %s16, 1
    %p111 = por %p109, %p110
    %p112 = scmp.ne.s32.totalorder %s103, %s104
    %p113 = scmp.eq.s32.totalorder %s16, 0
    %p114 = por %p112, %p113
    %p115 = scmp.ne.s32.totalorder %s103, %s104
    %p116 = scmp.eq.s32.totalorder %s17, 1
    %p117 = por %p115, %p116
    %p119 = scmp.ne.s32.totalorder %s104, %s118
    %p120 = scmp.eq.s32.totalorder %s17, 0
    %p121 = por %p119, %p120
    %s123 = sadd.s32 %s122, 1
    %p126 = scmp.eq.s32.totalorder %s11, 1
    %p127 = scmp.ne.s32.totalorder %s122, %s124
    %p128 = scmp.eq.s32.totalorder %s11, 0
    %p129 = por %p127, %p128
    %p130 = scmp.ne.s32.totalorder %s122, %s124
    %p131 = scmp.eq.s32.totalorder %s16, 1
    %p132 = por %p130, %p131
    %p133 = scmp.ne.s32.totalorder %s124, %s125
    %p134 = scmp.eq.s32.totalorder %s16, 0
    %p135 = por %p133, %p134
    %p136 = scmp.ne.s32.totalorder %s124, %s125
    %p137 = scmp.eq.s32.totalorder %s17, 1
    %p138 = por %p136, %p137
    %p140 = scmp.ne.s32.totalorder %s125, %s139
    %p141 = scmp.eq.s32.totalorder %s17, 0
    %p142 = por %p140, %p141
    %s143 = ssub.s32 %s18, %s30
    %s144 = ssub.s32 %s19, %s26
    %s145 = sor.u32 %s143, %s144
    %p146 = scmp.eq.s32.totalorder %s145, 0
    %s148 = sadd.s32 %s147, 1
    %s149 = scalar_select %p146, %s147, %s148
    %p152 = pneg %p146
    %p153 = scmp.eq.s32.totalorder %s11, 1
    %p154 = por %p152, %p153
    %p155 = scmp.ne.s32.totalorder %s147, %s150
    %p156 = scmp.eq.s32.totalorder %s11, 0
    %p157 = por %p155, %p156
    %p158 = scmp.ne.s32.totalorder %s147, %s150
    %p159 = scmp.eq.s32.totalorder %s16, 1
    %p160 = por %p158, %p159
    %p161 = scmp.ne.s32.totalorder %s150, %s151
    %p162 = scmp.eq.s32.totalorder %s16, 0
    %p163 = por %p161, %p162
    %p164 = scmp.ne.s32.totalorder %s150, %s151
    %p165 = scmp.eq.s32.totalorder %s17, 1
    %p166 = por %p164, %p165
    %p168 = scmp.ne.s32.totalorder %s151, %s167
    %p169 = scmp.eq.s32.totalorder %s17, 0
    %p170 = por %p168, %p169
    %p171 = scmp.le.s32.totalorder 1, %s11
    %p172 = scmp.lt.s32.totalorder %s11, 3
    %p173 = pnand %p171, %p172
    %p174 = pneg %p173
    // Predicated region
    $region9: #{down_forward.1} parent=5 // pred_check
      _
    $region10: #{down_forward.1} parent=5 // pred_check_branch
      %176 = sbr.rel (%p173) target = $region12
    $region11: #{down_forward.1} parent=5 // pred_region
      %s177 = ssub.s32 %s11, 1
      // Predicated region
      $region13: #{down_forward.1} parent=11 // pred_check
        %p178 = pneg %p72
      $region14: #{down_forward.1} parent=11 // pred_check_branch
        %180 = sbr.rel (%p178) target = $region16
      $region15: #{down_forward.1} parent=11 // pred_region
        _
      $region16: #{down_forward.1} parent=11 // pred_fallthru
        _
      // Predicated region
      $region17: #{down_forward.1} parent=11 // pred_check
        %p181 = pneg %p93
      $region18: #{down_forward.1} parent=11 // pred_check_branch
        %183 = sbr.rel (%p181) target = $region20
      $region19: #{down_forward.1} parent=11 // pred_region
        _
      $region20: #{down_forward.1} parent=11 // pred_fallthru
        _
      // Predicated region
      $region21: #{down_forward.1} parent=11 // pred_check
        %p184 = pneg %p114
      $region22: #{down_forward.1} parent=11 // pred_check_branch
        %186 = sbr.rel (%p184) target = $region24
      $region23: #{down_forward.1} parent=11 // pred_region
        _
      $region24: #{down_forward.1} parent=11 // pred_fallthru
        _
      // Predicated region
      $region25: #{down_forward.1} parent=11 // pred_check
        %p187 = pneg %p135
      $region26: #{down_forward.1} parent=11 // pred_check_branch
        %189 = sbr.rel (%p187) target = $region28
      $region27: #{down_forward.1} parent=11 // pred_region
        _
      $region28: #{down_forward.1} parent=11 // pred_fallthru
        _
    $region12: #{down_forward.1} parent=5 // pred_fallthru
      _
    %p190 = scmp.lt.s32.totalorder %s11, 2
    // Predicated region
    $region29: #{down_forward.1} parent=5 // pred_check
      %p191 = pneg %p190
    $region30: #{down_forward.1} parent=5 // pred_check_branch
      %193 = sbr.rel (%p191) target = $region32
    $region31: #{down_forward.1} parent=5 // pred_region
      // Predicated region
      $region33: #{down_forward.1} parent=31 // pred_check
        %p194 = pneg %p45
      $region34: #{down_forward.1} parent=31 // pred_check_branch
        %196 = sbr.rel (%p194) target = $region36
      $region35: #{down_forward.1} parent=31 // pred_region
        %p197 = scmp.lt.s32.totalorder %s18, 1
        %s198 = scalar_select %p197, %s18, 1
        %p199 = scmp.lt.s32.totalorder %s19, 0
        %s200 = scalar_select %p199, %s19, 0
        %s201 = smul.addr %s200, 24
        %s202 = smul.addr %s198, 24
        %s203 = sadd.s32 %s201, %s202
        %s204 = smul.addr %s203, 4
        %s205 = scalar_lea.vmem %s0, %s204
      $region36: #{down_forward.1} parent=31 // pred_fallthru
        _
    $region32: #{down_forward.1} parent=5 // pred_fallthru
      _
    %p206 = scmp.le.s32.totalorder 1, %s11
    %p207 = scmp.lt.s32.totalorder %s11, 3
    %p208 = pnand %p206, %p207
    %p209 = pneg %p208
    // Predicated region
    $region37: #{down_forward.1} parent=5 // pred_check
      _
    $region38: #{down_forward.1} parent=5 // pred_check_branch
      %211 = sbr.rel (%p208) target = $region40
    $region39: #{down_forward.1} parent=5 // pred_region
      %s212 = ssub.s32 %s11, 1
      %p213 = scmp.lt.s32.totalorder %s20, 1
      %s214 = scalar_select %p213, %s20, 1
      %p215 = scmp.lt.s32.totalorder %s21, 0
      %s216 = scalar_select %p215, %s21, 0
      %s217 = smul.addr %s216, 24
      %s218 = smul.addr %s214, 24
      %s219 = sadd.s32 %s217, %s218
      %s220 = smul.addr %s219, 4
      %s221 = scalar_lea.vmem %s0, %s220
      %p222 = pneg %p51
      %p223 = pneg %p48
      %p224 = pneg %p72
      %p225 = pneg %p69
      %p226 = pneg %p93
      %p227 = pneg %p90
      %p228 = pneg %p114
      %p229 = pneg %p111
      %p230 = pneg %p135
      %p231 = pneg %p132
      %p232 = pneg %p163
      %p233 = pneg %p160
      %s234 = smul.u32 8, %s21
      %p235 = scmp.lt.s32.totalorder %s20, 1
      %s236 = scalar_select %p235, %s20, 1
      %p237 = scmp.lt.s32.totalorder %s234, 7
      %s238 = scalar_select %p237, %s234, 7
      %s239 = smul.addr %s236, 8
      %s240 = sadd.s32 %s238, %s239
      %s241 = smul.addr %s240, 4
      %s242 = scalar_lea.vmem %s5, %s241
      %p243 = scmp.lt.s32.totalorder %s20, 1
      %s244 = scalar_select %p243, %s20, 1
      %p245 = scmp.lt.s32.totalorder %s21, 0
      %s246 = scalar_select %p245, %s21, 0
      %s247 = smul.addr %s246, 24
      %s248 = smul.addr %s244, 24
      %s249 = sadd.s32 %s247, %s248
      %s250 = smul.addr %s249, 4
      %s251 = scalar_lea.vmem %s0, %s250
      %s252 = smul.u32 8, %s21
      %p253 = scmp.lt.s32.totalorder %s20, 1
      %s254 = scalar_select %p253, %s20, 1
      %p255 = scmp.lt.s32.totalorder %s252, 7
      %s256 = scalar_select %p255, %s252, 7
      %s257 = smul.addr %s254, 8
      %s258 = sadd.s32 %s256, %s257
      %s259 = smul.addr %s258, 4
      %s260 = scalar_lea.vmem %s5, %s259
      %s261 = smul.u32 8, %s21
      %v263 = vld [vmem:[%s251] sm:$0xf]
      %v264 = vld [vmem:[%s251 + $0x4] sm:$0xf]
      %v265 = vld [vmem:[%s251 + $0x8] sm:$0xf]
      %v266 = vld [vmem:[%s251 + $0xc] sm:$0xf]
      %v267 = vld [vmem:[%s251 + $0x10] sm:$0xf]
      %v268 = vld [vmem:[%s251 + $0x14] sm:$0xf]
      %v269 = vld [vmem:[%s251 + $0x18] sm:$0xf]
      %v270 = vld [vmem:[%s251 + $0x1c] sm:$0xf]
      %v271 = vld [vmem:[%s251 + $0x20] sm:$0xf]
      %v272 = vld [vmem:[%s251 + $0x24] sm:$0xf]
      %v273 = vld [vmem:[%s251 + $0x28] sm:$0xf]
      %v274 = vld [vmem:[%s251 + $0x2c] sm:$0xf]
      %v275 = vld [vmem:[%s251 + $0x30] sm:$0xf]
      %v276 = vld [vmem:[%s251 + $0x34] sm:$0xf]
      %v277 = vld [vmem:[%s251 + $0x38] sm:$0xf]
      %v278 = vld [vmem:[%s251 + $0x3c] sm:$0xf]
      %v279 = vld [vmem:[%s251 + $0x40] sm:$0xf]
      %v280 = vld [vmem:[%s251 + $0x44] sm:$0xf]
      %v281 = vld [vmem:[%s251 + $0x48] sm:$0xf]
      %v282 = vld [vmem:[%s251 + $0x4c] sm:$0xf]
      %v283 = vld [vmem:[%s251 + $0x50] sm:$0xf]
      %v284 = vld [vmem:[%s251 + $0x54] sm:$0xf]
      %v285 = vld [vmem:[%s251 + $0x58] sm:$0xf]
      %v286 = vld [vmem:[%s251 + $0x5c] sm:$0xf]
      %v287 = vmax.bf16 %v263, %v264
      %v288 = vmax.bf16 %v265, %v266
      %v289 = vmax.bf16 %v267, %v268
      %v290 = vmax.bf16 %v269, %v270
      %v291 = vmax.bf16 %v271, %v272
      %v292 = vmax.bf16 %v273, %v274
      %v293 = vmax.bf16 %v275, %v276
      %v294 = vmax.bf16 %v277, %v278
      %v295 = vmax.bf16 %v279, %v280
      %v296 = vmax.bf16 %v281, %v282
      %v297 = vmax.bf16 %v283, %v284
      %v298 = vmax.bf16 %v285, %v286
      %311 = vrot.lane.b32.xlu0 %v287, 124
      %v312 = vpop.permute.xlu0 %311
      %313 = vrot.lane.b32.xlu0 %v288, 124
      %v314 = vpop.permute.xlu0 %313
      %315 = vrot.lane.b32.xlu0 %v289, 124
      %v316 = vpop.permute.xlu0 %315
      %317 = vrot.lane.b32.xlu0 %v290, 124
      %v318 = vpop.permute.xlu0 %317
      %319 = vrot.lane.b32.xlu0 %v291, 124
      %v320 = vpop.permute.xlu0 %319
      %321 = vrot.lane.b32.xlu0 %v292, 124
      %v322 = vpop.permute.xlu0 %321
      %323 = vrot.lane.b32.xlu0 %v293, 124
      %v324 = vpop.permute.xlu0 %323
      %325 = vrot.lane.b32.xlu0 %v294, 124
      %v326 = vpop.permute.xlu0 %325
      %327 = vrot.lane.b32.xlu0 %v295, 124
      %v328 = vpop.permute.xlu0 %327
      %329 = vrot.lane.b32.xlu0 %v296, 124
      %v330 = vpop.permute.xlu0 %329
      %331 = vrot.lane.b32.xlu0 %v297, 124
      %v332 = vpop.permute.xlu0 %331
      %333 = vrot.lane.b32.xlu0 %v298, 124
      %v334 = vpop.permute.xlu0 %333
      %v347 = vmax.bf16 %v287, %v312
      %v348 = vmax.bf16 %v288, %v314
      %v349 = vmax.bf16 %v289, %v316
      %v350 = vmax.bf16 %v290, %v318
      %v351 = vmax.bf16 %v291, %v320
      %v352 = vmax.bf16 %v292, %v322
      %v353 = vmax.bf16 %v293, %v324
      %v354 = vmax.bf16 %v294, %v326
      %v355 = vmax.bf16 %v295, %v328
      %v356 = vmax.bf16 %v296, %v330
      %v357 = vmax.bf16 %v297, %v332
      %v358 = vmax.bf16 %v298, %v334
      %359 = vst [vmem:[#allocation2] sm:$0xff] 0
      %360 = vst [vmem:[#allocation2 + $0x8] sm:$0xff] 0
      %361 = vst [vmem:[#allocation2 + $0x10] sm:$0xff] 0
      %362 = vst [vmem:[#allocation2 + $0x18] sm:$0xff] 0
      %363 = vst [vmem:[#allocation2 + $0x20] sm:$0xff] 0
      %364 = vst [vmem:[#allocation2 + $0x28] sm:$0xff] 0
      %365 = vst [vmem:[#allocation2 + $0x30] sm:$0xff] 0
      %366 = vst [vmem:[#allocation2 + $0x38] sm:$0xff] 0
      %367 = vst [vmem:[#allocation2 + $0x40] sm:$0xff] 0
      %368 = vst [vmem:[#allocation2 + $0x48] sm:$0xff] 0
      %369 = vst [vmem:[#allocation2 + $0x50] sm:$0xff] 0
      %370 = vst [vmem:[#allocation2 + $0x58] sm:$0xff] 0
      %v383 = vunpack.c.l.b16 %v347
      %v384 = vunpack.c.l.b16 %v348
      %v385 = vunpack.c.l.b16 %v349
      %v386 = vunpack.c.l.b16 %v350
      %v387 = vunpack.c.l.b16 %v351
      %v388 = vunpack.c.l.b16 %v352
      %v389 = vunpack.c.l.b16 %v353
      %v390 = vunpack.c.l.b16 %v354
      %v391 = vunpack.c.l.b16 %v355
      %v392 = vunpack.c.l.b16 %v356
      %v393 = vunpack.c.l.b16 %v357
      %v394 = vunpack.c.l.b16 %v358
      %v395 = vpack.c.b16 %v383, %v383
      %v396 = vpack.c.b16 %v384, %v384
      %v397 = vpack.c.b16 %v385, %v385
      %v398 = vpack.c.b16 %v386, %v386
      %v399 = vpack.c.b16 %v387, %v387
      %v400 = vpack.c.b16 %v388, %v388
      %v401 = vpack.c.b16 %v389, %v389
      %v402 = vpack.c.b16 %v390, %v390
      %v403 = vpack.c.b16 %v391, %v391
      %v404 = vpack.c.b16 %v392, %v392
      %v405 = vpack.c.b16 %v393, %v393
      %v406 = vpack.c.b16 %v394, %v394
      %v408 = vshrl.u32 %v395, 16
      %v410 = vrot.slane %v408, 7
      %v411 = vshll.u32 %v395, 16
      %v413 = vor.u32 %v410, %v411
      %v415 = vshrl.u32 %v396, 16
      %v417 = vrot.slane %v415, 7
      %v418 = vshll.u32 %v396, 16
      %v420 = vor.u32 %v417, %v418
      %v422 = vshrl.u32 %v397, 16
      %v424 = vrot.slane %v422, 7
      %v425 = vshll.u32 %v397, 16
      %v427 = vor.u32 %v424, %v425
      %v429 = vshrl.u32 %v398, 16
      %v431 = vrot.slane %v429, 7
      %v432 = vshll.u32 %v398, 16
      %v434 = vor.u32 %v431, %v432
      %v436 = vshrl.u32 %v399, 16
      %v438 = vrot.slane %v436, 7
      %v439 = vshll.u32 %v399, 16
      %v441 = vor.u32 %v438, %v439
      %v443 = vshrl.u32 %v400, 16
      %v445 = vrot.slane %v443, 7
      %v446 = vshll.u32 %v400, 16
      %v448 = vor.u32 %v445, %v446
      %v450 = vshrl.u32 %v401, 16
      %v452 = vrot.slane %v450, 7
      %v453 = vshll.u32 %v401, 16
      %v455 = vor.u32 %v452, %v453
      %v457 = vshrl.u32 %v402, 16
      %v459 = vrot.slane %v457, 7
      %v460 = vshll.u32 %v402, 16
      %v462 = vor.u32 %v459, %v460
      %v464 = vshrl.u32 %v403, 16
      %v466 = vrot.slane %v464, 7
      %v467 = vshll.u32 %v403, 16
      %v469 = vor.u32 %v466, %v467
      %v471 = vshrl.u32 %v404, 16
      %v473 = vrot.slane %v471, 7
      %v474 = vshll.u32 %v404, 16
      %v476 = vor.u32 %v473, %v474
      %v478 = vshrl.u32 %v405, 16
      %v480 = vrot.slane %v478, 7
      %v481 = vshll.u32 %v405, 16
      %v483 = vor.u32 %v480, %v481
      %v485 = vshrl.u32 %v406, 16
      %v487 = vrot.slane %v485, 7
      %v488 = vshll.u32 %v406, 16
      %v490 = vor.u32 %v487, %v488
      %vm503 = vcmask 28672
      %vm504 = vsmask.f32 4354
      %vm505 = vmand %vm503, %vm504
      %v506 = vld [vmem:[#allocation2] sm:$0x1f]
      %v507 = vsel %vm505, %v413, %v506
      %508 = vst [vmem:[#allocation2] sm:$0x1f] %v507
      %v509 = vld [vmem:[#allocation2 + $0x8] sm:$0x1f]
      %v510 = vsel %vm505, %v420, %v509
      %511 = vst [vmem:[#allocation2 + $0x8] sm:$0x1f] %v510
      %v512 = vld [vmem:[#allocation2 + $0x10] sm:$0x1f]
      %v513 = vsel %vm505, %v427, %v512
      %514 = vst [vmem:[#allocation2 + $0x10] sm:$0x1f] %v513
      %v515 = vld [vmem:[#allocation2 + $0x18] sm:$0x1f]
      %v516 = vsel %vm505, %v434, %v515
      %517 = vst [vmem:[#allocation2 + $0x18] sm:$0x1f] %v516
      %v518 = vld [vmem:[#allocation2 + $0x20] sm:$0x1f]
      %v519 = vsel %vm505, %v441, %v518
      %520 = vst [vmem:[#allocation2 + $0x20] sm:$0x1f] %v519
      %v521 = vld [vmem:[#allocation2 + $0x28] sm:$0x1f]
      %v522 = vsel %vm505, %v448, %v521
      %523 = vst [vmem:[#allocation2 + $0x28] sm:$0x1f] %v522
      %v524 = vld [vmem:[#allocation2 + $0x30] sm:$0x1f]
      %v525 = vsel %vm505, %v455, %v524
      %526 = vst [vmem:[#allocation2 + $0x30] sm:$0x1f] %v525
      %v527 = vld [vmem:[#allocation2 + $0x38] sm:$0x1f]
      %v528 = vsel %vm505, %v462, %v527
      %529 = vst [vmem:[#allocation2 + $0x38] sm:$0x1f] %v528
      %v530 = vld [vmem:[#allocation2 + $0x40] sm:$0x1f]
      %v531 = vsel %vm505, %v469, %v530
      %532 = vst [vmem:[#allocation2 + $0x40] sm:$0x1f] %v531
      %v533 = vld [vmem:[#allocation2 + $0x48] sm:$0x1f]
      %v534 = vsel %vm505, %v476, %v533
      %535 = vst [vmem:[#allocation2 + $0x48] sm:$0x1f] %v534
      %v536 = vld [vmem:[#allocation2 + $0x50] sm:$0x1f]
      %v537 = vsel %vm505, %v483, %v536
      %538 = vst [vmem:[#allocation2 + $0x50] sm:$0x1f] %v537
      %v539 = vld [vmem:[#allocation2 + $0x58] sm:$0x1f]
      %v540 = vsel %vm505, %v490, %v539
      %541 = vst [vmem:[#allocation2 + $0x58] sm:$0x1f] %v540
      %v542 = vld [vmem:[#allocation2] sm:$0xf]
      %v543 = vld [vmem:[#allocation2 + $0x8] sm:$0xf]
      %v544 = vld [vmem:[#allocation2 + $0x10] sm:$0xf]
      %v545 = vld [vmem:[#allocation2 + $0x18] sm:$0xf]
      %v546 = vld [vmem:[#allocation2 + $0x20] sm:$0xf]
      %v547 = vld [vmem:[#allocation2 + $0x28] sm:$0xf]
      %v548 = vld [vmem:[#allocation2 + $0x30] sm:$0xf]
      %v549 = vld [vmem:[#allocation2 + $0x38] sm:$0xf]
      %v550 = vld [vmem:[#allocation2 + $0x40] sm:$0xf]
      %v551 = vld [vmem:[#allocation2 + $0x48] sm:$0xf]
      %v552 = vld [vmem:[#allocation2] sm:$0x1f]
      %v553 = vld [vmem:[#allocation2 + $0x8] sm:$0x1f]
      %v554 = vld [vmem:[#allocation2 + $0x10] sm:$0x1f]
      %v555 = vld [vmem:[#allocation2 + $0x18] sm:$0x1f]
      %v556 = vld [vmem:[#allocation2 + $0x20] sm:$0x1f]
      %v557 = vld [vmem:[#allocation2 + $0x28] sm:$0x1f]
      %v558 = vld [vmem:[#allocation2 + $0x30] sm:$0x1f]
      %v559 = vld [vmem:[#allocation2 + $0x38] sm:$0x1f]
      %v560 = vld [vmem:[#allocation2 + $0x40] sm:$0x1f]
      %v561 = vld [vmem:[#allocation2 + $0x48] sm:$0x1f]
      %v562 = vld [vmem:[#allocation2] sm:$0x1e]
      %v563 = vld [vmem:[#allocation2 + $0x8] sm:$0x1e]
      %v564 = vld [vmem:[#allocation2 + $0x10] sm:$0x1e]
      %v565 = vld [vmem:[#allocation2 + $0x18] sm:$0x1e]
      %v566 = vld [vmem:[#allocation2 + $0x20] sm:$0x1e]
      %v567 = vld [vmem:[#allocation2 + $0x28] sm:$0x1e]
      %v568 = vld [vmem:[#allocation2 + $0x30] sm:$0x1e]
      %v569 = vld [vmem:[#allocation2 + $0x38] sm:$0x1e]
      %v570 = vld [vmem:[#allocation2 + $0x40] sm:$0x1e]
      %v571 = vld [vmem:[#allocation2 + $0x48] sm:$0x1e]
      %v573 = vshrl.u32 %v552, 16
      %v575 = vshll.u32 %v552, 16
      %v577 = vrot.slane %v575, 1
      %v578 = vor.u32 %v573, %v577
      %v580 = vshrl.u32 %v553, 16
      %v582 = vshll.u32 %v553, 16
      %v584 = vrot.slane %v582, 1
      %v585 = vor.u32 %v580, %v584
      %v587 = vshrl.u32 %v554, 16
      %v589 = vshll.u32 %v554, 16
      %v591 = vrot.slane %v589, 1
      %v592 = vor.u32 %v587, %v591
      %v594 = vshrl.u32 %v555, 16
      %v596 = vshll.u32 %v555, 16
      %v598 = vrot.slane %v596, 1
      %v599 = vor.u32 %v594, %v598
      %v601 = vshrl.u32 %v556, 16
      %v603 = vshll.u32 %v556, 16
      %v605 = vrot.slane %v603, 1
      %v606 = vor.u32 %v601, %v605
      %v608 = vshrl.u32 %v557, 16
      %v610 = vshll.u32 %v557, 16
      %v612 = vrot.slane %v610, 1
      %v613 = vor.u32 %v608, %v612
      %v615 = vshrl.u32 %v558, 16
      %v617 = vshll.u32 %v558, 16
      %v619 = vrot.slane %v617, 1
      %v620 = vor.u32 %v615, %v619
      %v622 = vshrl.u32 %v559, 16
      %v624 = vshll.u32 %v559, 16
      %v626 = vrot.slane %v624, 1
      %v627 = vor.u32 %v622, %v626
      %v629 = vshrl.u32 %v560, 16
      %v631 = vshll.u32 %v560, 16
      %v633 = vrot.slane %v631, 1
      %v634 = vor.u32 %v629, %v633
      %v636 = vshrl.u32 %v561, 16
      %v638 = vshll.u32 %v561, 16
      %v640 = vrot.slane %v638, 1
      %v641 = vor.u32 %v636, %v640
      %v652 = vrot.slane %v562, 1
      %v653 = vrot.slane %v563, 1
      %v654 = vrot.slane %v564, 1
      %v655 = vrot.slane %v565, 1
      %v656 = vrot.slane %v566, 1
      %v657 = vrot.slane %v567, 1
      %v658 = vrot.slane %v568, 1
      %v659 = vrot.slane %v569, 1
      %v660 = vrot.slane %v570, 1
      %v661 = vrot.slane %v571, 1
      %v672 = vunpack.c.l.b16 %v542
      %v673 = vunpack.c.l.b16 %v578
      %v674 = vunpack.c.l.b16 %v652
      %v675 = vunpack.c.l.b16 %v543
      %v676 = vunpack.c.l.b16 %v585
      %v677 = vunpack.c.l.b16 %v653
      %v678 = vunpack.c.l.b16 %v544
      %v679 = vunpack.c.l.b16 %v592
      %v680 = vunpack.c.l.b16 %v654
      %v681 = vunpack.c.l.b16 %v545
      %v682 = vunpack.c.l.b16 %v599
      %v683 = vunpack.c.l.b16 %v655
      %v684 = vunpack.c.l.b16 %v546
      %v685 = vunpack.c.l.b16 %v606
      %v686 = vunpack.c.l.b16 %v656
      %v687 = vunpack.c.l.b16 %v547
      %v688 = vunpack.c.l.b16 %v613
      %v689 = vunpack.c.l.b16 %v657
      %v690 = vunpack.c.l.b16 %v548
      %v691 = vunpack.c.l.b16 %v620
      %v692 = vunpack.c.l.b16 %v658
      %v693 = vunpack.c.l.b16 %v549
      %v694 = vunpack.c.l.b16 %v627
      %v695 = vunpack.c.l.b16 %v659
      %v696 = vunpack.c.l.b16 %v550
      %v697 = vunpack.c.l.b16 %v634
      %v698 = vunpack.c.l.b16 %v660
      %v699 = vunpack.c.l.b16 %v551
      %v700 = vunpack.c.l.b16 %v641
      %v701 = vunpack.c.l.b16 %v661
      %v702 = vld [vmem:[%s1] sm:$0xf]
      %v703 = vld [vmem:[%s1 + $0x4] sm:$0xf]
      %v704 = vld [vmem:[%s1 + $0x8] sm:$0xf]
      %v705 = vld [vmem:[%s1 + $0xc] sm:$0xf]
      %v706 = vld [vmem:[%s1 + $0x10] sm:$0xf]
      %v707 = vld [vmem:[%s1 + $0x14] sm:$0xf]
      %v708 = vld [vmem:[%s1 + $0x18] sm:$0xf]
      %v709 = vld [vmem:[%s1 + $0x1c] sm:$0xf]
      %v710 = vld [vmem:[%s1 + $0x20] sm:$0xf]
      %v711 = vld [vmem:[%s1 + $0x24] sm:$0xf]
      %v712 = vld [vmem:[%s1 + $0x28] sm:$0xf]
      %v713 = vld [vmem:[%s1 + $0x2c] sm:$0xf]
      %v714 = vld [vmem:[%s1 + $0x30] sm:$0xf]
      %v715 = vld [vmem:[%s1 + $0x34] sm:$0xf]
      %v716 = vld [vmem:[%s1 + $0x38] sm:$0xf]
      %v717 = vld [vmem:[%s1 + $0x3c] sm:$0xf]
      %v718 = vld [vmem:[%s1 + $0x40] sm:$0xf]
      %v719 = vld [vmem:[%s1 + $0x44] sm:$0xf]
      %v720 = vld [vmem:[%s1 + $0x48] sm:$0xf]
      %v721 = vld [vmem:[%s1 + $0x4c] sm:$0xf]
      %v722 = vld [vmem:[%s1 + $0x50] sm:$0xf]
      %v723 = vld [vmem:[%s1 + $0x54] sm:$0xf]
      %v724 = vld [vmem:[%s1 + $0x58] sm:$0xf]
      %v725 = vld [vmem:[%s1 + $0x5c] sm:$0xf]
      %v726 = vld [vmem:[%s1 + $0x60] sm:$0xf]
      %v727 = vld [vmem:[%s1 + $0x64] sm:$0xf]
      %v728 = vld [vmem:[%s1 + $0x68] sm:$0xf]
      %v729 = vld [vmem:[%s1 + $0x6c] sm:$0xf]
      %v730 = vld [vmem:[%s1 + $0x70] sm:$0xf]
      %v731 = vld [vmem:[%s1 + $0x74] sm:$0xf]
      %v732 = vld [vmem:[%s1 + $0x78] sm:$0xf]
      %v733 = vld [vmem:[%s1 + $0x7c] sm:$0xf]
      %v734 = vld [vmem:[%s1 + $0x80] sm:$0xf]
      %v735 = vld [vmem:[%s1 + $0x84] sm:$0xf]
      %v736 = vld [vmem:[%s1 + $0x88] sm:$0xf]
      %v737 = vld [vmem:[%s1 + $0x8c] sm:$0xf]
      %v738 = vld [vmem:[%s1 + $0x90] sm:$0xf]
      %v739 = vld [vmem:[%s1 + $0x94] sm:$0xf]
      %v740 = vld [vmem:[%s1 + $0x98] sm:$0xf]
      %v741 = vld [vmem:[%s1 + $0x9c] sm:$0xf]
      %v742 = vld [vmem:[%s1 + $0xa0] sm:$0xf]
      %v743 = vld [vmem:[%s1 + $0xa4] sm:$0xf]
      %v744 = vld [vmem:[%s1 + $0xa8] sm:$0xf]
      %v745 = vld [vmem:[%s1 + $0xac] sm:$0xf]
      %v746 = vld [vmem:[%s1 + $0xb0] sm:$0xf]
      %v747 = vld [vmem:[%s1 + $0xb4] sm:$0xf]
      %v748 = vld [vmem:[%s1 + $0xb8] sm:$0xf]
      %v749 = vld [vmem:[%s1 + $0xbc] sm:$0xf]
      %s750 = scalar_lea.vmem [#allocation2], 8
      %v751 = vld [vmem:[%s750] sm:$0xf]
      %v752 = vld [vmem:[%s750 + $0x8] sm:$0xf]
      %v753 = vld [vmem:[%s750 + $0x10] sm:$0xf]
      %v754 = vld [vmem:[%s750 + $0x18] sm:$0xf]
      %v755 = vld [vmem:[%s750 + $0x20] sm:$0xf]
      %v756 = vld [vmem:[%s750 + $0x28] sm:$0xf]
      %v757 = vld [vmem:[%s750 + $0x30] sm:$0xf]
      %v758 = vld [vmem:[%s750 + $0x38] sm:$0xf]
      %v759 = vld [vmem:[%s750 + $0x40] sm:$0xf]
      %v760 = vld [vmem:[%s750 + $0x48] sm:$0xf]
      %v761 = vld [vmem:[%s750] sm:$0x1f]
      %v762 = vld [vmem:[%s750 + $0x8] sm:$0x1f]
      %v763 = vld [vmem:[%s750 + $0x10] sm:$0x1f]
      %v764 = vld [vmem:[%s750 + $0x18] sm:$0x1f]
      %v765 = vld [vmem:[%s750 + $0x20] sm:$0x1f]
      %v766 = vld [vmem:[%s750 + $0x28] sm:$0x1f]
      %v767 = vld [vmem:[%s750 + $0x30] sm:$0x1f]
      %v768 = vld [vmem:[%s750 + $0x38] sm:$0x1f]
      %v769 = vld [vmem:[%s750 + $0x40] sm:$0x1f]
      %v770 = vld [vmem:[%s750 + $0x48] sm:$0x1f]
      %v771 = vld [vmem:[%s750] sm:$0x1e]
      %v772 = vld [vmem:[%s750 + $0x8] sm:$0x1e]
      %v773 = vld [vmem:[%s750 + $0x10] sm:$0x1e]
      %v774 = vld [vmem:[%s750 + $0x18] sm:$0x1e]
      %v775 = vld [vmem:[%s750 + $0x20] sm:$0x1e]
      %v776 = vld [vmem:[%s750 + $0x28] sm:$0x1e]
      %v777 = vld [vmem:[%s750 + $0x30] sm:$0x1e]
      %v778 = vld [vmem:[%s750 + $0x38] sm:$0x1e]
      %v779 = vld [vmem:[%s750 + $0x40] sm:$0x1e]
      %v780 = vld [vmem:[%s750 + $0x48] sm:$0x1e]
      %v782 = vshrl.u32 %v761, 16
      %v784 = vshll.u32 %v761, 16
      %v786 = vrot.slane %v784, 1
      %v787 = vor.u32 %v782, %v786
      %v789 = vshrl.u32 %v762, 16
      %v791 = vshll.u32 %v762, 16
      %v793 = vrot.slane %v791, 1
      %v794 = vor.u32 %v789, %v793
      %v796 = vshrl.u32 %v763, 16
      %v798 = vshll.u32 %v763, 16
      %v800 = vrot.slane %v798, 1
      %v801 = vor.u32 %v796, %v800
      %v803 = vshrl.u32 %v764, 16
      %v805 = vshll.u32 %v764, 16
      %v807 = vrot.slane %v805, 1
      %v808 = vor.u32 %v803, %v807
      %v810 = vshrl.u32 %v765, 16
      %v812 = vshll.u32 %v765, 16
      %v814 = vrot.slane %v812, 1
      %v815 = vor.u32 %v810, %v814
      %v817 = vshrl.u32 %v766, 16
      %v819 = vshll.u32 %v766, 16
      %v821 = vrot.slane %v819, 1
      %v822 = vor.u32 %v817, %v821
      %v824 = vshrl.u32 %v767, 16
      %v826 = vshll.u32 %v767, 16
      %v828 = vrot.slane %v826, 1
      %v829 = vor.u32 %v824, %v828
      %v831 = vshrl.u32 %v768, 16
      %v833 = vshll.u32 %v768, 16
      %v835 = vrot.slane %v833, 1
      %v836 = vor.u32 %v831, %v835
      %v838 = vshrl.u32 %v769, 16
      %v840 = vshll.u32 %v769, 16
      %v842 = vrot.slane %v840, 1
      %v843 = vor.u32 %v838, %v842
      %v845 = vshrl.u32 %v770, 16
      %v847 = vshll.u32 %v770, 16
      %v849 = vrot.slane %v847, 1
      %v850 = vor.u32 %v845, %v849
      %v861 = vrot.slane %v771, 1
      %v862 = vrot.slane %v772, 1
      %v863 = vrot.slane %v773, 1
      %v864 = vrot.slane %v774, 1
      %v865 = vrot.slane %v775, 1
      %v866 = vrot.slane %v776, 1
      %v867 = vrot.slane %v777, 1
      %v868 = vrot.slane %v778, 1
      %v869 = vrot.slane %v779, 1
      %v870 = vrot.slane %v780, 1
      %v881 = vunpack.c.l.b16 %v751
      %v882 = vunpack.c.l.b16 %v787
      %v883 = vunpack.c.l.b16 %v861
      %v884 = vunpack.c.l.b16 %v752
      %v885 = vunpack.c.l.b16 %v794
      %v886 = vunpack.c.l.b16 %v862
      %v887 = vunpack.c.l.b16 %v753
      %v888 = vunpack.c.l.b16 %v801
      %v889 = vunpack.c.l.b16 %v863
      %v890 = vunpack.c.l.b16 %v754
      %v891 = vunpack.c.l.b16 %v808
      %v892 = vunpack.c.l.b16 %v864
      %v893 = vunpack.c.l.b16 %v755
      %v894 = vunpack.c.l.b16 %v815
      %v895 = vunpack.c.l.b16 %v865
      %v896 = vunpack.c.l.b16 %v756
      %v897 = vunpack.c.l.b16 %v822
      %v898 = vunpack.c.l.b16 %v866
      %v899 = vunpack.c.l.b16 %v757
      %v900 = vunpack.c.l.b16 %v829
      %v901 = vunpack.c.l.b16 %v867
      %v902 = vunpack.c.l.b16 %v758
      %v903 = vunpack.c.l.b16 %v836
      %v904 = vunpack.c.l.b16 %v868
      %v905 = vunpack.c.l.b16 %v759
      %v906 = vunpack.c.l.b16 %v843
      %v907 = vunpack.c.l.b16 %v869
      %v908 = vunpack.c.l.b16 %v760
      %v909 = vunpack.c.l.b16 %v850
      %v910 = vunpack.c.l.b16 %v870
      %s911 = scalar_lea.vmem %s1, 192
      %v912 = vld [vmem:[%s911] sm:$0xf]
      %v913 = vld [vmem:[%s911 + $0x4] sm:$0xf]
      %v914 = vld [vmem:[%s911 + $0x8] sm:$0xf]
      %v915 = vld [vmem:[%s911 + $0xc] sm:$0xf]
      %v916 = vld [vmem:[%s911 + $0x10] sm:$0xf]
      %v917 = vld [vmem:[%s911 + $0x14] sm:$0xf]
      %v918 = vld [vmem:[%s911 + $0x18] sm:$0xf]
      %v919 = vld [vmem:[%s911 + $0x1c] sm:$0xf]
      %v920 = vld [vmem:[%s911 + $0x20] sm:$0xf]
      %v921 = vld [vmem:[%s911 + $0x24] sm:$0xf]
      %v922 = vld [vmem:[%s911 + $0x28] sm:$0xf]
      %v923 = vld [vmem:[%s911 + $0x2c] sm:$0xf]
      %v924 = vld [vmem:[%s911 + $0x30] sm:$0xf]
      %v925 = vld [vmem:[%s911 + $0x34] sm:$0xf]
      %v926 = vld [vmem:[%s911 + $0x38] sm:$0xf]
      %v927 = vld [vmem:[%s911 + $0x3c] sm:$0xf]
      %v928 = vld [vmem:[%s911 + $0x40] sm:$0xf]
      %v929 = vld [vmem:[%s911 + $0x44] sm:$0xf]
      %v930 = vld [vmem:[%s911 + $0x48] sm:$0xf]
      %v931 = vld [vmem:[%s911 + $0x4c] sm:$0xf]
      %v932 = vld [vmem:[%s911 + $0x50] sm:$0xf]
      %v933 = vld [vmem:[%s911 + $0x54] sm:$0xf]
      %v934 = vld [vmem:[%s911 + $0x58] sm:$0xf]
      %v935 = vld [vmem:[%s911 + $0x5c] sm:$0xf]
      %v936 = vld [vmem:[%s911 + $0x60] sm:$0xf]
      %v937 = vld [vmem:[%s911 + $0x64] sm:$0xf]
      %v938 = vld [vmem:[%s911 + $0x68] sm:$0xf]
      %v939 = vld [vmem:[%s911 + $0x6c] sm:$0xf]
      %v940 = vld [vmem:[%s911 + $0x70] sm:$0xf]
      %v941 = vld [vmem:[%s911 + $0x74] sm:$0xf]
      %v942 = vld [vmem:[%s911 + $0x78] sm:$0xf]
      %v943 = vld [vmem:[%s911 + $0x7c] sm:$0xf]
      %v944 = vld [vmem:[%s911 + $0x80] sm:$0xf]
      %v945 = vld [vmem:[%s911 + $0x84] sm:$0xf]
      %v946 = vld [vmem:[%s911 + $0x88] sm:$0xf]
      %v947 = vld [vmem:[%s911 + $0x8c] sm:$0xf]
      %v948 = vld [vmem:[%s911 + $0x90] sm:$0xf]
      %v949 = vld [vmem:[%s911 + $0x94] sm:$0xf]
      %v950 = vld [vmem:[%s911 + $0x98] sm:$0xf]
      %v951 = vld [vmem:[%s911 + $0x9c] sm:$0xf]
      %v952 = vld [vmem:[%s911 + $0xa0] sm:$0xf]
      %v953 = vld [vmem:[%s911 + $0xa4] sm:$0xf]
      %v954 = vld [vmem:[%s911 + $0xa8] sm:$0xf]
      %v955 = vld [vmem:[%s911 + $0xac] sm:$0xf]
      %v956 = vld [vmem:[%s911 + $0xb0] sm:$0xf]
      %v957 = vld [vmem:[%s911 + $0xb4] sm:$0xf]
      %v958 = vld [vmem:[%s911 + $0xb8] sm:$0xf]
      %v959 = vld [vmem:[%s911 + $0xbc] sm:$0xf]
      %v960 = vpack.c.b16 %v884, %v881
      %v961 = vpack.c.b16 %v885, %v882
      %v962 = vpack.c.b16 %v886, %v883
      %v963 = vpack.c.b16 %v890, %v887
      %v964 = vpack.c.b16 %v891, %v888
      %v965 = vpack.c.b16 %v892, %v889
      %v966 = vpack.c.b16 %v896, %v893
      %v967 = vpack.c.b16 %v897, %v894
      %v968 = vpack.c.b16 %v898, %v895
      %v969 = vpack.c.b16 %v902, %v899
      %v970 = vpack.c.b16 %v903, %v900
      %v971 = vpack.c.b16 %v904, %v901
      %v972 = vpack.c.b16 %v908, %v905
      %v973 = vpack.c.b16 %v909, %v906
      %v974 = vpack.c.b16 %v910, %v907
      %v1038 = vunpack.c.l.b16 %v912
      %v1039 = vunpack.c.l.b16 %v913
      %v1040 = vunpack.c.l.b16 %v914
      %v1041 = vunpack.c.l.b16 %v915
      %v1042 = vunpack.c.l.b16 %v916
      %v1043 = vunpack.c.l.b16 %v917
      %v1044 = vunpack.c.l.b16 %v918
      %v1045 = vunpack.c.l.b16 %v919
      %v1046 = vunpack.c.l.b16 %v920
      %v1047 = vunpack.c.l.b16 %v921
      %v1048 = vunpack.c.l.b16 %v922
      %v1049 = vunpack.c.l.b16 %v923
      %v1050 = vunpack.c.l.b16 %v924
      %v1051 = vunpack.c.l.b16 %v925
      %v1052 = vunpack.c.l.b16 %v926
      %v1053 = vunpack.c.l.b16 %v927
      %v1054 = vunpack.c.l.b16 %v928
      %v1055 = vunpack.c.l.b16 %v929
      %v1056 = vunpack.c.l.b16 %v930
      %v1057 = vunpack.c.l.b16 %v931
      %v1058 = vunpack.c.l.b16 %v932
      %v1059 = vunpack.c.l.b16 %v933
      %v1060 = vunpack.c.l.b16 %v934
      %v1061 = vunpack.c.l.b16 %v935
      %v1062 = vunpack.c.l.b16 %v936
      %v1063 = vunpack.c.l.b16 %v937
      %v1064 = vunpack.c.l.b16 %v938
      %v1065 = vunpack.c.l.b16 %v939
      %v1066 = vunpack.c.l.b16 %v940
      %v1067 = vunpack.c.l.b16 %v941
      %v1068 = vunpack.c.l.b16 %v942
      %v1069 = vunpack.c.l.b16 %v943
      %v1070 = vunpack.c.l.b16 %v944
      %v1071 = vunpack.c.l.b16 %v945
      %v1072 = vunpack.c.l.b16 %v946
      %v1073 = vunpack.c.l.b16 %v947
      %v1074 = vunpack.c.l.b16 %v948
      %v1075 = vunpack.c.l.b16 %v949
      %v1076 = vunpack.c.l.b16 %v950
      %v1077 = vunpack.c.l.b16 %v951
      %v1078 = vunpack.c.l.b16 %v952
      %v1079 = vunpack.c.l.b16 %v953
      %v1080 = vunpack.c.l.b16 %v954
      %v1081 = vunpack.c.l.b16 %v955
      %v1082 = vunpack.c.l.b16 %v956
      %v1083 = vunpack.c.l.b16 %v957
      %v1084 = vunpack.c.l.b16 %v958
      %v1085 = vunpack.c.l.b16 %v959
      %v1086 = vpack.c.b16 %v1039, %v1038
      %v1087 = vpack.c.b16 %v1041, %v1040
      %v1088 = vpack.c.b16 %v1043, %v1042
      %v1089 = vpack.c.b16 %v1045, %v1044
      %v1090 = vpack.c.b16 %v1047, %v1046
      %v1091 = vpack.c.b16 %v1049, %v1048
      %v1092 = vpack.c.b16 %v1051, %v1050
      %v1093 = vpack.c.b16 %v1053, %v1052
      %v1094 = vpack.c.b16 %v1055, %v1054
      %v1095 = vpack.c.b16 %v1057, %v1056
      %v1096 = vpack.c.b16 %v1059, %v1058
      %v1097 = vpack.c.b16 %v1061, %v1060
      %v1098 = vpack.c.b16 %v1063, %v1062
      %v1099 = vpack.c.b16 %v1065, %v1064
      %v1100 = vpack.c.b16 %v1067, %v1066
      %v1101 = vpack.c.b16 %v1069, %v1068
      %v1102 = vpack.c.b16 %v1071, %v1070
      %v1103 = vpack.c.b16 %v1073, %v1072
      %v1104 = vpack.c.b16 %v1075, %v1074
      %v1105 = vpack.c.b16 %v1077, %v1076
      %v1106 = vpack.c.b16 %v1079, %v1078
      %v1107 = vpack.c.b16 %v1081, %v1080
      %v1108 = vpack.c.b16 %v1083, %v1082
      %v1109 = vpack.c.b16 %v1085, %v1084
      %1134 = vmatprep.subr.bf16.mxu0 0
      %1135 = vmatpush1.bf16.msra.mxu0 %v1086
      %1136 = vmatprep.subr.bf16.mxu0 0
      %1137 = vmatpush1.bf16.msra.mxu0 %v1087
      %1138 = vmatprep.subr.bf16.mxu0 0
      %1139 = vmatpush1.bf16.msra.mxu0 %v1088
      %1140 = vmatprep.subr.bf16.mxu0 0
      %1141 = vmatpush1.bf16.msra.mxu0 %v1089
      %1142 = vmatprep.subr.bf16.mxu0 0
      %1143 = vmatpush1.bf16.msra.mxu0 %v1090
      %1144 = vmatprep.subr.bf16.mxu0 0
      %1145 = vmatpush1.bf16.msra.mxu0 %v1091
      %1146 = vmatprep.subr.bf16.mxu0 0
      %1147 = vmatpush1.bf16.msra.mxu0 %v1092
      %1148 = vmatprep.subr.bf16.mxu0 0
      %1149 = vmatpush1.bf16.msra.mxu0 %v1093
      %1150 = vmatprep.subr.bf16.mxu0 0
      %1151 = vmatpush1.bf16.msra.mxu0 %v1094
      %1152 = vmatprep.subr.bf16.mxu0 0
      %1153 = vmatpush1.bf16.msra.mxu0 %v1095
      %1154 = vmatprep.subr.bf16.mxu0 0
      %1155 = vmatpush1.bf16.msra.mxu0 %v1096
      %1156 = vmatprep.subr.bf16.mxu0 0
      %1157 = vmatpush1.bf16.msra.mxu0 %v1097
      %1158 = vmatprep.subr.bf16.mxu0 0
      %1159 = vmatpush1.bf16.msra.mxu0 %v1098
      %1160 = vmatprep.subr.bf16.mxu0 0
      %1161 = vmatpush1.bf16.msra.mxu0 %v1099
      %1162 = vmatprep.subr.bf16.mxu0 0
      %1163 = vmatpush1.bf16.msra.mxu0 %v1100
      %1164 = vmatprep.subr.bf16.mxu0 0
      %1165 = vmatpush1.bf16.msra.mxu0 %v1101
      %1166 = vmatprep.mubr.bf16.mxu0 %v961
      %1167 = vmatmul.mubr.bf16.gmra.mrb[0].mxu0 %v960
      %v1168 = vpop.f32.mrb[0].mxu0
      %v1169 = vadd.f32 0.0, %v1168
      %v1170 = vpop.f32.mrb[0].mxu0
      %v1171 = vpop.f32.mrb[0].mxu0
      %v1172 = vadd.f32 0.0, %v1171
      %v1173 = vpop.f32.mrb[0].mxu0
      %1174 = vmatprep.mubr.bf16.mxu0 %v964
      %1175 = vmatmul.mubr.bf16.gmra.mrb[0].mxu0 %v963
      %v1176 = vpop.f32.mrb[0].mxu0
      %v1177 = vadd.f32 0.0, %v1176
      %v1178 = vpop.f32.mrb[0].mxu0
      %v1179 = vpop.f32.mrb[0].mxu0
      %v1180 = vadd.f32 0.0, %v1179
      %v1181 = vpop.f32.mrb[0].mxu0
      %1182 = vmatprep.mubr.bf16.mxu0 %v967
      %1183 = vmatmul.mubr.bf16.gmra.mrb[0].mxu0 %v966
      %v1184 = vpop.f32.mrb[0].mxu0
      %v1185 = vadd.f32 0.0, %v1184
      %v1186 = vpop.f32.mrb[0].mxu0
      %v1187 = vpop.f32.mrb[0].mxu0
      %v1188 = vadd.f32 0.0, %v1187
      %v1189 = vpop.f32.mrb[0].mxu0
      %1190 = vmatprep.mubr.bf16.mxu0 %v970
      %1191 = vmatmul.mubr.bf16.gmra.mrb[0].mxu0 %v969
      %v1192 = vpop.f32.mrb[0].mxu0
      %v1193 = vadd.f32 0.0, %v1192
      %v1194 = vpop.f32.mrb[0].mxu0
      %v1195 = vpop.f32.mrb[0].mxu0
      %v1196 = vadd.f32 0.0, %v1195
      %v1197 = vpop.f32.mrb[0].mxu0
      %1198 = vmatprep.mubr.bf16.mxu0 %v973
      %1199 = vmatmul.mubr.bf16.gmra.mrb[0].mxu0 %v972
      %v1200 = vpop.f32.mrb[0].mxu0
      %v1201 = vadd.f32 0.0, %v1200
      %v1202 = vpop.f32.mrb[0].mxu0
      %v1203 = vpop.f32.mrb[0].mxu0
      %v1204 = vadd.f32 0.0, %v1203
      %v1205 = vpop.f32.mrb[0].mxu0
      %1206 = vdwg.mxu0
      %1207 = vmatprep.subr.bf16.mxu0 0
      %1208 = vmatpush1.bf16.msra.mxu0 %v1102
      %1209 = vmatprep.subr.bf16.mxu0 0
      %1210 = vmatpush1.bf16.msra.mxu0 %v1103
      %1211 = vmatprep.subr.bf16.mxu0 0
      %1212 = vmatpush1.bf16.msra.mxu0 %v1104
      %1213 = vmatprep.subr.bf16.mxu0 0
      %1214 = vmatpush1.bf16.msra.mxu0 %v1105
      %1215 = vmatprep.subr.bf16.mxu0 0
      %1216 = vmatpush1.bf16.msra.mxu0 %v1106
      %1217 = vmatprep.subr.bf16.mxu0 0
      %1218 = vmatpush1.bf16.msra.mxu0 %v1107
      %1219 = vmatprep.subr.bf16.mxu0 0
      %1220 = vmatpush1.bf16.msra.mxu0 %v1108
      %1221 = vmatprep.subr.bf16.mxu0 0
      %1222 = vmatpush1.bf16.msra.mxu0 %v1109
      %1223 = vmatprep.subr.bf16.mxu0 0
      %1224 = vmatpush1.bf16.msra.mxu0 0
      %1225 = vmatprep.subr.bf16.mxu0 0
      %1226 = vmatpush1.bf16.msra.mxu0 0
      %1227 = vmatprep.subr.bf16.mxu0 0
      %1228 = vmatpush1.bf16.msra.mxu0 0
      %1229 = vmatprep.subr.bf16.mxu0 0
      %1230 = vmatpush1.bf16.msra.mxu0 0
      %1231 = vmatprep.subr.bf16.mxu0 0
      %1232 = vmatpush1.bf16.msra.mxu0 0
      %1233 = vmatprep.subr.bf16.mxu0 0
      %1234 = vmatpush1.bf16.msra.mxu0 0
      %1235 = vmatprep.subr.bf16.mxu0 0
      %1236 = vmatpush1.bf16.msra.mxu0 0
      %1237 = vmatprep.subr.bf16.mxu0 0
      %1238 = vmatpush1.bf16.msra.mxu0 0
      %1239 = vmatprep.mubr.bf16.mxu0 0
      %1240 = vmatmul.mubr.bf16.gmra.mrb[0].mxu0 %v962
      %v1241 = vpop.f32.mrb[0].mxu0
      %v1242 = vadd.f32 %v1169, %v1241
      %v1243 = vpop.f32.mrb[0].mxu0
      %v1244 = vpop.f32.mrb[0].mxu0
      %v1245 = vadd.f32 %v1172, %v1244
      %v1246 = vpop.f32.mrb[0].mxu0
      %1247 = vmatprep.mubr.bf16.mxu0 0
      %1248 = vmatmul.mubr.bf16.gmra.mrb[0].mxu0 %v965
      %v1249 = vpop.f32.mrb[0].mxu0
      %v1250 = vadd.f32 %v1177, %v1249
      %v1251 = vpop.f32.mrb[0].mxu0
      %v1252 = vpop.f32.mrb[0].mxu0
      %v1253 = vadd.f32 %v1180, %v1252
      %v1254 = vpop.f32.mrb[0].mxu0
      %1255 = vmatprep.mubr.bf16.mxu0 0
      %1256 = vmatmul.mubr.bf16.gmra.mrb[0].mxu0 %v968
      %v1257 = vpop.f32.mrb[0].mxu0
      %v1258 = vadd.f32 %v1185, %v1257
      %v1259 = vpop.f32.mrb[0].mxu0
      %v1260 = vpop.f32.mrb[0].mxu0
      %v1261 = vadd.f32 %v1188, %v1260
      %v1262 = vpop.f32.mrb[0].mxu0
      %1263 = vmatprep.mubr.bf16.mxu0 0
      %1264 = vmatmul.mubr.bf16.gmra.mrb[0].mxu0 %v971
      %v1265 = vpop.f32.mrb[0].mxu0
      %v1266 = vadd.f32 %v1193, %v1265
      %v1267 = vpop.f32.mrb[0].mxu0
      %v1268 = vpop.f32.mrb[0].mxu0
      %v1269 = vadd.f32 %v1196, %v1268
      %v1270 = vpop.f32.mrb[0].mxu0
      %1271 = vmatprep.mubr.bf16.mxu0 0
      %1272 = vmatmul.mubr.bf16.gmra.mrb[0].mxu0 %v974
      %v1273 = vpop.f32.mrb[0].mxu0
      %v1274 = vadd.f32 %v1201, %v1273
      %v1275 = vpop.f32.mrb[0].mxu0
      %v1276 = vpop.f32.mrb[0].mxu0
      %v1277 = vadd.f32 %v1204, %v1276
      %v1278 = vpop.f32.mrb[0].mxu0
      %1279 = vdwg.mxu0
      %v1280 = vpack.c.b16 %v675, %v672
      %v1281 = vpack.c.b16 %v676, %v673
      %v1282 = vpack.c.b16 %v677, %v674
      %v1283 = vpack.c.b16 %v681, %v678
      %v1284 = vpack.c.b16 %v682, %v679
      %v1285 = vpack.c.b16 %v683, %v680
      %v1286 = vpack.c.b16 %v687, %v684
      %v1287 = vpack.c.b16 %v688, %v685
      %v1288 = vpack.c.b16 %v689, %v686
      %v1289 = vpack.c.b16 %v693, %v690
      %v1290 = vpack.c.b16 %v694, %v691
      %v1291 = vpack.c.b16 %v695, %v692
      %v1292 = vpack.c.b16 %v699, %v696
      %v1293 = vpack.c.b16 %v700, %v697
      %v1294 = vpack.c.b16 %v701, %v698
      %v1358 = vunpack.c.l.b16 %v702
      %v1359 = vunpack.c.l.b16 %v703
      %v1360 = vunpack.c.l.b16 %v704
      %v1361 = vunpack.c.l.b16 %v705
      %v1362 = vunpack.c.l.b16 %v706
      %v1363 = vunpack.c.l.b16 %v707
      %v1364 = vunpack.c.l.b16 %v708
      %v1365 = vunpack.c.l.b16 %v709
      %v1366 = vunpack.c.l.b16 %v710
      %v1367 = vunpack.c.l.b16 %v711
      %v1368 = vunpack.c.l.b16 %v712
      %v1369 = vunpack.c.l.b16 %v713
      %v1370 = vunpack.c.l.b16 %v714
      %v1371 = vunpack.c.l.b16 %v715
      %v1372 = vunpack.c.l.b16 %v716
      %v1373 = vunpack.c.l.b16 %v717
      %v1374 = vunpack.c.l.b16 %v718
      %v1375 = vunpack.c.l.b16 %v719
      %v1376 = vunpack.c.l.b16 %v720
      %v1377 = vunpack.c.l.b16 %v721
      %v1378 = vunpack.c.l.b16 %v722
      %v1379 = vunpack.c.l.b16 %v723
      %v1380 = vunpack.c.l.b16 %v724
      %v1381 = vunpack.c.l.b16 %v725
      %v1382 = vunpack.c.l.b16 %v726
      %v1383 = vunpack.c.l.b16 %v727
      %v1384 = vunpack.c.l.b16 %v728
      %v1385 = vunpack.c.l.b16 %v729
      %v1386 = vunpack.c.l.b16 %v730
      %v1387 = vunpack.c.l.b16 %v731
      %v1388 = vunpack.c.l.b16 %v732
      %v1389 = vunpack.c.l.b16 %v733
      %v1390 = vunpack.c.l.b16 %v734
      %v1391 = vunpack.c.l.b16 %v735
      %v1392 = vunpack.c.l.b16 %v736
      %v1393 = vunpack.c.l.b16 %v737
      %v1394 = vunpack.c.l.b16 %v738
      %v1395 = vunpack.c.l.b16 %v739
      %v1396 = vunpack.c.l.b16 %v740
      %v1397 = vunpack.c.l.b16 %v741
      %v1398 = vunpack.c.l.b16 %v742
      %v1399 = vunpack.c.l.b16 %v743
      %v1400 = vunpack.c.l.b16 %v744
      %v1401 = vunpack.c.l.b16 %v745
      %v1402 = vunpack.c.l.b16 %v746
      %v1403 = vunpack.c.l.b16 %v747
      %v1404 = vunpack.c.l.b16 %v748
      %v1405 = vunpack.c.l.b16 %v749
      %v1406 = vpack.c.b16 %v1359, %v1358
      %v1407 = vpack.c.b16 %v1361, %v1360
      %v1408 = vpack.c.b16 %v1363, %v1362
      %v1409 = vpack.c.b16 %v1365, %v1364
      %v1410 = vpack.c.b16 %v1367, %v1366
      %v1411 = vpack.c.b16 %v1369, %v1368
      %v1412 = vpack.c.b16 %v1371, %v1370
      %v1413 = vpack.c.b16 %v1373, %v1372
      %v1414 = vpack.c.b16 %v1375, %v1374
      %v1415 = vpack.c.b16 %v1377, %v1376
      %v1416 = vpack.c.b16 %v1379, %v1378
      %v1417 = vpack.c.b16 %v1381, %v1380
      %v1418 = vpack.c.b16 %v1383, %v1382
      %v1419 = vpack.c.b16 %v1385, %v1384
      %v1420 = vpack.c.b16 %v1387, %v1386
      %v1421 = vpack.c.b16 %v1389, %v1388
      %v1422 = vpack.c.b16 %v1391, %v1390
      %v1423 = vpack.c.b16 %v1393, %v1392
      %v1424 = vpack.c.b16 %v1395, %v1394
      %v1425 = vpack.c.b16 %v1397, %v1396
      %v1426 = vpack.c.b16 %v1399, %v1398
      %v1427 = vpack.c.b16 %v1401, %v1400
      %v1428 = vpack.c.b16 %v1403, %v1402
      %v1429 = vpack.c.b16 %v1405, %v1404
      %1454 = vmatprep.subr.bf16.mxu0 0
      %1455 = vmatpush1.bf16.msra.mxu0 %v1406
      %1456 = vmatprep.subr.bf16.mxu0 0
      %1457 = vmatpush1.bf16.msra.mxu0 %v1407
      %1458 = vmatprep.subr.bf16.mxu0 0
      %1459 = vmatpush1.bf16.msra.mxu0 %v1408
      %1460 = vmatprep.subr.bf16.mxu0 0
      %1461 = vmatpush1.bf16.msra.mxu0 %v1409
      %1462 = vmatprep.subr.bf16.mxu0 0
      %1463 = vmatpush1.bf16.msra.mxu0 %v1410
      %1464 = vmatprep.subr.bf16.mxu0 0
      %1465 = vmatpush1.bf16.msra.mxu0 %v1411
      %1466 = vmatprep.subr.bf16.mxu0 0
      %1467 = vmatpush1.bf16.msra.mxu0 %v1412
      %1468 = vmatprep.subr.bf16.mxu0 0
      %1469 = vmatpush1.bf16.msra.mxu0 %v1413
      %1470 = vmatprep.subr.bf16.mxu0 0
      %1471 = vmatpush1.bf16.msra.mxu0 %v1414
      %1472 = vmatprep.subr.bf16.mxu0 0
      %1473 = vmatpush1.bf16.msra.mxu0 %v1415
      %1474 = vmatprep.subr.bf16.mxu0 0
      %1475 = vmatpush1.bf16.msra.mxu0 %v1416
      %1476 = vmatprep.subr.bf16.mxu0 0
      %1477 = vmatpush1.bf16.msra.mxu0 %v1417
      %1478 = vmatprep.subr.bf16.mxu0 0
      %1479 = vmatpush1.bf16.msra.mxu0 %v1418
      %1480 = vmatprep.subr.bf16.mxu0 0
      %1481 = vmatpush1.bf16.msra.mxu0 %v1419
      %1482 = vmatprep.subr.bf16.mxu0 0
      %1483 = vmatpush1.bf16.msra.mxu0 %v1420
      %1484 = vmatprep.subr.bf16.mxu0 0
      %1485 = vmatpush1.bf16.msra.mxu0 %v1421
      %1486 = vmatprep.mubr.bf16.mxu0 %v1281
      %1487 = vmatmul.mubr.bf16.gmra.mrb[0].mxu0 %v1280
      %v1488 = vpop.f32.mrb[0].mxu0
      %v1489 = vadd.f32 %v1242, %v1488
      %v1490 = vpop.f32.mrb[0].mxu0
      %v1491 = vpop.f32.mrb[0].mxu0
      %v1492 = vadd.f32 %v1245, %v1491
      %v1493 = vpop.f32.mrb[0].mxu0
      %1494 = vmatprep.mubr.bf16.mxu0 %v1284
      %1495 = vmatmul.mubr.bf16.gmra.mrb[0].mxu0 %v1283
      %v1496 = vpop.f32.mrb[0].mxu0
      %v1497 = vadd.f32 %v1250, %v1496
      %v1498 = vpop.f32.mrb[0].mxu0
      %v1499 = vpop.f32.mrb[0].mxu0
      %v1500 = vadd.f32 %v1253, %v1499
      %v1501 = vpop.f32.mrb[0].mxu0
      %1502 = vmatprep.mubr.bf16.mxu0 %v1287
      %1503 = vmatmul.mubr.bf16.gmra.mrb[0].mxu0 %v1286
      %v1504 = vpop.f32.mrb[0].mxu0
      %v1505 = vadd.f32 %v1258, %v1504
      %v1506 = vpop.f32.mrb[0].mxu0
      %v1507 = vpop.f32.mrb[0].mxu0
      %v1508 = vadd.f32 %v1261, %v1507
      %v1509 = vpop.f32.mrb[0].mxu0
      %1510 = vmatprep.mubr.bf16.mxu0 %v1290
      %1511 = vmatmul.mubr.bf16.gmra.mrb[0].mxu0 %v1289
      %v1512 = vpop.f32.mrb[0].mxu0
      %v1513 = vadd.f32 %v1266, %v1512
      %v1514 = vpop.f32.mrb[0].mxu0
      %v1515 = vpop.f32.mrb[0].mxu0
      %v1516 = vadd.f32 %v1269, %v1515
      %v1517 = vpop.f32.mrb[0].mxu0
      %1518 = vmatprep.mubr.bf16.mxu0 %v1293
      %1519 = vmatmul.mubr.bf16.gmra.mrb[0].mxu0 %v1292
      %v1520 = vpop.f32.mrb[0].mxu0
      %v1521 = vadd.f32 %v1274, %v1520
      %v1522 = vpop.f32.mrb[0].mxu0
      %v1523 = vpop.f32.mrb[0].mxu0
      %v1524 = vadd.f32 %v1277, %v1523
      %v1525 = vpop.f32.mrb[0].mxu0
      %1526 = vdwg.mxu0
      %1527 = vmatprep.subr.bf16.mxu0 0
      %1528 = vmatpush1.bf16.msra.mxu0 %v1422
      %1529 = vmatprep.subr.bf16.mxu0 0
      %1530 = vmatpush1.bf16.msra.mxu0 %v1423
      %1531 = vmatprep.subr.bf16.mxu0 0
      %1532 = vmatpush1.bf16.msra.mxu0 %v1424
      %1533 = vmatprep.subr.bf16.mxu0 0
      %1534 = vmatpush1.bf16.msra.mxu0 %v1425
      %1535 = vmatprep.subr.bf16.mxu0 0
      %1536 = vmatpush1.bf16.msra.mxu0 %v1426
      %1537 = vmatprep.subr.bf16.mxu0 0
      %1538 = vmatpush1.bf16.msra.mxu0 %v1427
      %1539 = vmatprep.subr.bf16.mxu0 0
      %1540 = vmatpush1.bf16.msra.mxu0 %v1428
      %1541 = vmatprep.subr.bf16.mxu0 0
      %1542 = vmatpush1.bf16.msra.mxu0 %v1429
      %1543 = vmatprep.subr.bf16.mxu0 0
      %1544 = vmatpush1.bf16.msra.mxu0 0
      %1545 = vmatprep.subr.bf16.mxu0 0
      %1546 = vmatpush1.bf16.msra.mxu0 0
      %1547 = vmatprep.subr.bf16.mxu0 0
      %1548 = vmatpush1.bf16.msra.mxu0 0
      %1549 = vmatprep.subr.bf16.mxu0 0
      %1550 = vmatpush1.bf16.msra.mxu0 0
      %1551 = vmatprep.subr.bf16.mxu0 0
      %1552 = vmatpush1.bf16.msra.mxu0 0
      %1553 = vmatprep.subr.bf16.mxu0 0
      %1554 = vmatpush1.bf16.msra.mxu0 0
      %1555 = vmatprep.subr.bf16.mxu0 0
      %1556 = vmatpush1.bf16.msra.mxu0 0
      %1557 = vmatprep.subr.bf16.mxu0 0
      %1558 = vmatpush1.bf16.msra.mxu0 0
      %1559 = vmatprep.mubr.bf16.mxu0 0
      %1560 = vmatmul.mubr.bf16.gmra.mrb[0].mxu0 %v1282
      %v1561 = vpop.f32.mrb[0].mxu0
      %v1562 = vadd.f32 %v1489, %v1561
      %v1563 = vpop.f32.mrb[0].mxu0
      %v1564 = vpop.f32.mrb[0].mxu0
      %v1565 = vadd.f32 %v1492, %v1564
      %v1566 = vpop.f32.mrb[0].mxu0
      %1567 = vmatprep.mubr.bf16.mxu0 0
      %1568 = vmatmul.mubr.bf16.gmra.mrb[0].mxu0 %v1285
      %v1569 = vpop.f32.mrb[0].mxu0
      %v1570 = vadd.f32 %v1497, %v1569
      %v1571 = vpop.f32.mrb[0].mxu0
      %v1572 = vpop.f32.mrb[0].mxu0
      %v1573 = vadd.f32 %v1500, %v1572
      %v1574 = vpop.f32.mrb[0].mxu0
      %1575 = vmatprep.mubr.bf16.mxu0 0
      %1576 = vmatmul.mubr.bf16.gmra.mrb[0].mxu0 %v1288
      %v1577 = vpop.f32.mrb[0].mxu0
      %v1578 = vadd.f32 %v1505, %v1577
      %v1579 = vpop.f32.mrb[0].mxu0
      %v1580 = vpop.f32.mrb[0].mxu0
      %v1581 = vadd.f32 %v1508, %v1580
      %v1582 = vpop.f32.mrb[0].mxu0
      %1583 = vmatprep.mubr.bf16.mxu0 0
      %1584 = vmatmul.mubr.bf16.gmra.mrb[0].mxu0 %v1291
      %v1585 = vpop.f32.mrb[0].mxu0
      %v1586 = vadd.f32 %v1513, %v1585
      %v1587 = vpop.f32.mrb[0].mxu0
      %v1588 = vpop.f32.mrb[0].mxu0
      %v1589 = vadd.f32 %v1516, %v1588
      %v1590 = vpop.f32.mrb[0].mxu0
      %1591 = vmatprep.mubr.bf16.mxu0 0
      %1592 = vmatmul.mubr.bf16.gmra.mrb[0].mxu0 %v1294
      %v1593 = vpop.f32.mrb[0].mxu0
      %v1594 = vadd.f32 %v1521, %v1593
      %v1595 = vpop.f32.mrb[0].mxu0
      %v1596 = vpop.f32.mrb[0].mxu0
      %v1597 = vadd.f32 %v1524, %v1596
      %v1598 = vpop.f32.mrb[0].mxu0
      %1599 = vdwg.mxu0
      %s1600 = scalar_lea.vmem [#allocation2], 16
      %v1601 = vld [vmem:[%s1600] sm:$0xf]
      %v1602 = vld [vmem:[%s1600 + $0x8] sm:$0xf]
      %v1603 = vld [vmem:[%s1600 + $0x10] sm:$0xf]
      %v1604 = vld [vmem:[%s1600 + $0x18] sm:$0xf]
      %v1605 = vld [vmem:[%s1600 + $0x20] sm:$0xf]
      %v1606 = vld [vmem:[%s1600 + $0x28] sm:$0xf]
      %v1607 = vld [vmem:[%s1600 + $0x30] sm:$0xf]
      %v1608 = vld [vmem:[%s1600 + $0x38] sm:$0xf]
      %v1609 = vld [vmem:[%s1600 + $0x40] sm:$0xf]
      %v1610 = vld [vmem:[%s1600 + $0x48] sm:$0xf]
      %v1611 = vld [vmem:[%s1600] sm:$0x1f]
      %v1612 = vld [vmem:[%s1600 + $0x8] sm:$0x1f]
      %v1613 = vld [vmem:[%s1600 + $0x10] sm:$0x1f]
      %v1614 = vld [vmem:[%s1600 + $0x18] sm:$0x1f]
      %v1615 = vld [vmem:[%s1600 + $0x20] sm:$0x1f]
      %v1616 = vld [vmem:[%s1600 + $0x28] sm:$0x1f]
      %v1617 = vld [vmem:[%s1600 + $0x30] sm:$0x1f]
      %v1618 = vld [vmem:[%s1600 + $0x38] sm:$0x1f]
      %v1619 = vld [vmem:[%s1600 + $0x40] sm:$0x1f]
      %v1620 = vld [vmem:[%s1600 + $0x48] sm:$0x1f]
      %v1621 = vld [vmem:[%s1600] sm:$0x1e]
      %v1622 = vld [vmem:[%s1600 + $0x8] sm:$0x1e]
      %v1623 = vld [vmem:[%s1600 + $0x10] sm:$0x1e]
      %v1624 = vld [vmem:[%s1600 + $0x18] sm:$0x1e]
      %v1625 = vld [vmem:[%s1600 + $0x20] sm:$0x1e]
      %v1626 = vld [vmem:[%s1600 + $0x28] sm:$0x1e]
      %v1627 = vld [vmem:[%s1600 + $0x30] sm:$0x1e]
      %v1628 = vld [vmem:[%s1600 + $0x38] sm:$0x1e]
      %v1629 = vld [vmem:[%s1600 + $0x40] sm:$0x1e]
      %v1630 = vld [vmem:[%s1600 + $0x48] sm:$0x1e]
      %v1632 = vshrl.u32 %v1611, 16
      %v1634 = vshll.u32 %v1611, 16
      %v1636 = vrot.slane %v1634, 1
      %v1637 = vor.u32 %v1632, %v1636
      %v1639 = vshrl.u32 %v1612, 16
      %v1641 = vshll.u32 %v1612, 16
      %v1643 = vrot.slane %v1641, 1
      %v1644 = vor.u32 %v1639, %v1643
      %v1646 = vshrl.u32 %v1613, 16
      %v1648 = vshll.u32 %v1613, 16
      %v1650 = vrot.slane %v1648, 1
      %v1651 = vor.u32 %v1646, %v1650
      %v1653 = vshrl.u32 %v1614, 16
      %v1655 = vshll.u32 %v1614, 16
      %v1657 = vrot.slane %v1655, 1
      %v1658 = vor.u32 %v1653, %v1657
      %v1660 = vshrl.u32 %v1615, 16
      %v1662 = vshll.u32 %v1615, 16
      %v1664 = vrot.slane %v1662, 1
      %v1665 = vor.u32 %v1660, %v1664
      %v1667 = vshrl.u32 %v1616, 16
      %v1669 = vshll.u32 %v1616, 16
      %v1671 = vrot.slane %v1669, 1
      %v1672 = vor.u32 %v1667, %v1671
      %v1674 = vshrl.u32 %v1617, 16
      %v1676 = vshll.u32 %v1617, 16
      %v1678 = vrot.slane %v1676, 1
      %v1679 = vor.u32 %v1674, %v1678
      %v1681 = vshrl.u32 %v1618, 16
      %v1683 = vshll.u32 %v1618, 16
      %v1685 = vrot.slane %v1683, 1
      %v1686 = vor.u32 %v1681, %v1685
      %v1688 = vshrl.u32 %v1619, 16
      %v1690 = vshll.u32 %v1619, 16
      %v1692 = vrot.slane %v1690, 1
      %v1693 = vor.u32 %v1688, %v1692
      %v1695 = vshrl.u32 %v1620, 16
      %v1697 = vshll.u32 %v1620, 16
      %v1699 = vrot.slane %v1697, 1
      %v1700 = vor.u32 %v1695, %v1699
      %v1711 = vrot.slane %v1621, 1
      %v1712 = vrot.slane %v1622, 1
      %v1713 = vrot.slane %v1623, 1
      %v1714 = vrot.slane %v1624, 1
      %v1715 = vrot.slane %v1625, 1
      %v1716 = vrot.slane %v1626, 1
      %v1717 = vrot.slane %v1627, 1
      %v1718 = vrot.slane %v1628, 1
      %v1719 = vrot.slane %v1629, 1
      %v1720 = vrot.slane %v1630, 1
      %v1731 = vunpack.c.l.b16 %v1601
      %v1732 = vunpack.c.l.b16 %v1637
      %v1733 = vunpack.c.l.b16 %v1711
      %v1734 = vunpack.c.l.b16 %v1602
      %v1735 = vunpack.c.l.b16 %v1644
      %v1736 = vunpack.c.l.b16 %v1712
      %v1737 = vunpack.c.l.b16 %v1603
      %v1738 = vunpack.c.l.b16 %v1651
      %v1739 = vunpack.c.l.b16 %v1713
      %v1740 = vunpack.c.l.b16 %v1604
      %v1741 = vunpack.c.l.b16 %v1658
      %v1742 = vunpack.c.l.b16 %v1714
      %v1743 = vunpack.c.l.b16 %v1605
      %v1744 = vunpack.c.l.b16 %v1665
      %v1745 = vunpack.c.l.b16 %v1715
      %v1746 = vunpack.c.l.b16 %v1606
      %v1747 = vunpack.c.l.b16 %v1672
      %v1748 = vunpack.c.l.b16 %v1716
      %v1749 = vunpack.c.l.b16 %v1607
      %v1750 = vunpack.c.l.b16 %v1679
      %v1751 = vunpack.c.l.b16 %v1717
      %v1752 = vunpack.c.l.b16 %v1608
      %v1753 = vunpack.c.l.b16 %v1686
      %v1754 = vunpack.c.l.b16 %v1718
      %v1755 = vunpack.c.l.b16 %v1609
      %v1756 = vunpack.c.l.b16 %v1693
      %v1757 = vunpack.c.l.b16 %v1719
      %v1758 = vunpack.c.l.b16 %v1610
      %v1759 = vunpack.c.l.b16 %v1700
      %v1760 = vunpack.c.l.b16 %v1720
      %s1761 = scalar_lea.vmem %s1, 384
      %v1762 = vld [vmem:[%s1761] sm:$0xf]
      %v1763 = vld [vmem:[%s1761 + $0x4] sm:$0xf]
      %v1764 = vld [vmem:[%s1761 + $0x8] sm:$0xf]
      %v1765 = vld [vmem:[%s1761 + $0xc] sm:$0xf]
      %v1766 = vld [vmem:[%s1761 + $0x10] sm:$0xf]
      %v1767 = vld [vmem:[%s1761 + $0x14] sm:$0xf]
      %v1768 = vld [vmem:[%s1761 + $0x18] sm:$0xf]
      %v1769 = vld [vmem:[%s1761 + $0x1c] sm:$0xf]
      %v1770 = vld [vmem:[%s1761 + $0x20] sm:$0xf]
      %v1771 = vld [vmem:[%s1761 + $0x24] sm:$0xf]
      %v1772 = vld [vmem:[%s1761 + $0x28] sm:$0xf]
      %v1773 = vld [vmem:[%s1761 + $0x2c] sm:$0xf]
      %v1774 = vld [vmem:[%s1761 + $0x30] sm:$0xf]
      %v1775 = vld [vmem:[%s1761 + $0x34] sm:$0xf]
      %v1776 = vld [vmem:[%s1761 + $0x38] sm:$0xf]
      %v1777 = vld [vmem:[%s1761 + $0x3c] sm:$0xf]
      %v1778 = vld [vmem:[%s1761 + $0x40] sm:$0xf]
      %v1779 = vld [vmem:[%s1761 + $0x44] sm:$0xf]
      %v1780 = vld [vmem:[%s1761 + $0x48] sm:$0xf]
      %v1781 = vld [vmem:[%s1761 + $0x4c] sm:$0xf]
      %v1782 = vld [vmem:[%s1761 + $0x50] sm:$0xf]
      %v1783 = vld [vmem:[%s1761 + $0x54] sm:$0xf]
      %v1784 = vld [vmem:[%s1761 + $0x58] sm:$0xf]
      %v1785 = vld [vmem:[%s1761 + $0x5c] sm:$0xf]
      %v1786 = vld [vmem:[%s1761 + $0x60] sm:$0xf]
      %v1787 = vld [vmem:[%s1761 + $0x64] sm:$0xf]
      %v1788 = vld [vmem:[%s1761 + $0x68] sm:$0xf]
      %v1789 = vld [vmem:[%s1761 + $0x6c] sm:$0xf]
      %v1790 = vld [vmem:[%s1761 + $0x70] sm:$0xf]
      %v1791 = vld [vmem:[%s1761 + $0x74] sm:$0xf]
      %v1792 = vld [vmem:[%s1761 + $0x78] sm:$0xf]
      %v1793 = vld [vmem:[%s1761 + $0x7c] sm:$0xf]
      %v1794 = vld [vmem:[%s1761 + $0x80] sm:$0xf]
      %v1795 = vld [vmem:[%s1761 + $0x84] sm:$0xf]
      %v1796 = vld [vmem:[%s1761 + $0x88] sm:$0xf]
      %v1797 = vld [vmem:[%s1761 + $0x8c] sm:$0xf]
      %v1798 = vld [vmem:[%s1761 + $0x90] sm:$0xf]
      %v1799 = vld [vmem:[%s1761 + $0x94] sm:$0xf]
      %v1800 = vld [vmem:[%s1761 + $0x98] sm:$0xf]
      %v1801 = vld [vmem:[%s1761 + $0x9c] sm:$0xf]
      %v1802 = vld [vmem:[%s1761 + $0xa0] sm:$0xf]
      %v1803 = vld [vmem:[%s1761 + $0xa4] sm:$0xf]
      %v1804 = vld [vmem:[%s1761 + $0xa8] sm:$0xf]
      %v1805 = vld [vmem:[%s1761 + $0xac] sm:$0xf]
      %v1806 = vld [vmem:[%s1761 + $0xb0] sm:$0xf]
      %v1807 = vld [vmem:[%s1761 + $0xb4] sm:$0xf]
      %v1808 = vld [vmem:[%s1761 + $0xb8] sm:$0xf]
      %v1809 = vld [vmem:[%s1761 + $0xbc] sm:$0xf]
      %v1810 = vpack.c.b16 %v1734, %v1731
      %v1811 = vpack.c.b16 %v1735, %v1732
      %v1812 = vpack.c.b16 %v1736, %v1733
      %v1813 = vpack.c.b16 %v1740, %v1737
      %v1814 = vpack.c.b16 %v1741, %v1738
      %v1815 = vpack.c.b16 %v1742, %v1739
      %v1816 = vpack.c.b16 %v1746, %v1743
      %v1817 = vpack.c.b16 %v1747, %v1744
      %v1818 = vpack.c.b16 %v1748, %v1745
      %v1819 = vpack.c.b16 %v1752, %v1749
      %v1820 = vpack.c.b16 %v1753, %v1750
      %v1821 = vpack.c.b16 %v1754, %v1751
      %v1822 = vpack.c.b16 %v1758, %v1755
      %v1823 = vpack.c.b16 %v1759, %v1756
      %v1824 = vpack.c.b16 %v1760, %v1757
      %v1888 = vunpack.c.l.b16 %v1762
      %v1889 = vunpack.c.l.b16 %v1763
      %v1890 = vunpack.c.l.b16 %v1764
      %v1891 = vunpack.c.l.b16 %v1765
      %v1892 = vunpack.c.l.b16 %v1766
      %v1893 = vunpack.c.l.b16 %v1767
      %v1894 = vunpack.c.l.b16 %v1768
      %v1895 = vunpack.c.l.b16 %v1769
      %v1896 = vunpack.c.l.b16 %v1770
      %v1897 = vunpack.c.l.b16 %v1771
      %v1898 = vunpack.c.l.b16 %v1772
      %v1899 = vunpack.c.l.b16 %v1773
      %v1900 = vunpack.c.l.b16 %v1774
      %v1901 = vunpack.c.l.b16 %v1775
      %v1902 = vunpack.c.l.b16 %v1776
      %v1903 = vunpack.c.l.b16 %v1777
      %v1904 = vunpack.c.l.b16 %v1778
      %v1905 = vunpack.c.l.b16 %v1779
      %v1906 = vunpack.c.l.b16 %v1780
      %v1907 = vunpack.c.l.b16 %v1781
      %v1908 = vunpack.c.l.b16 %v1782
      %v1909 = vunpack.c.l.b16 %v1783
      %v1910 = vunpack.c.l.b16 %v1784
      %v1911 = vunpack.c.l.b16 %v1785
      %v1912 = vunpack.c.l.b16 %v1786
      %v1913 = vunpack.c.l.b16 %v1787
      %v1914 = vunpack.c.l.b16 %v1788
      %v1915 = vunpack.c.l.b16 %v1789
      %v1916 = vunpack.c.l.b16 %v1790
      %v1917 = vunpack.c.l.b16 %v1791
      %v1918 = vunpack.c.l.b16 %v1792
      %v1919 = vunpack.c.l.b16 %v1793
      %v1920 = vunpack.c.l.b16 %v1794
      %v1921 = vunpack.c.l.b16 %v1795
      %v1922 = vunpack.c.l.b16 %v1796
      %v1923 = vunpack.c.l.b16 %v1797
      %v1924 = vunpack.c.l.b16 %v1798
      %v1925 = vunpack.c.l.b16 %v1799
      %v1926 = vunpack.c.l.b16 %v1800
      %v1927 = vunpack.c.l.b16 %v1801
      %v1928 = vunpack.c.l.b16 %v1802
      %v1929 = vunpack.c.l.b16 %v1803
      %v1930 = vunpack.c.l.b16 %v1804
      %v1931 = vunpack.c.l.b16 %v1805
      %v1932 = vunpack.c.l.b16 %v1806
      %v1933 = vunpack.c.l.b16 %v1807
      %v1934 = vunpack.c.l.b16 %v1808
      %v1935 = vunpack.c.l.b16 %v1809
      %v1936 = vpack.c.b16 %v1889, %v1888
      %v1937 = vpack.c.b16 %v1891, %v1890
      %v1938 = vpack.c.b16 %v1893, %v1892
      %v1939 = vpack.c.b16 %v1895, %v1894
      %v1940 = vpack.c.b16 %v1897, %v1896
      %v1941 = vpack.c.b16 %v1899, %v1898
      %v1942 = vpack.c.b16 %v1901, %v1900
      %v1943 = vpack.c.b16 %v1903, %v1902
      %v1944 = vpack.c.b16 %v1905, %v1904
      %v1945 = vpack.c.b16 %v1907, %v1906
      %v1946 = vpack.c.b16 %v1909, %v1908
      %v1947 = vpack.c.b16 %v1911, %v1910
      %v1948 = vpack.c.b16 %v1913, %v1912
      %v1949 = vpack.c.b16 %v1915, %v1914
      %v1950 = vpack.c.b16 %v1917, %v1916
      %v1951 = vpack.c.b16 %v1919, %v1918
      %v1952 = vpack.c.b16 %v1921, %v1920
      %v1953 = vpack.c.b16 %v1923, %v1922
      %v1954 = vpack.c.b16 %v1925, %v1924
      %v1955 = vpack.c.b16 %v1927, %v1926
      %v1956 = vpack.c.b16 %v1929, %v1928
      %v1957 = vpack.c.b16 %v1931, %v1930
      %v1958 = vpack.c.b16 %v1933, %v1932
      %v1959 = vpack.c.b16 %v1935, %v1934
      %1984 = vmatprep.subr.bf16.mxu0 0
      %1985 = vmatpush1.bf16.msra.mxu0 %v1936
      %1986 = vmatprep.subr.bf16.mxu0 0
      %1987 = vmatpush1.bf16.msra.mxu0 %v1937
      %1988 = vmatprep.subr.bf16.mxu0 0
      %1989 = vmatpush1.bf16.msra.mxu0 %v1938
      %1990 = vmatprep.subr.bf16.mxu0 0
      %1991 = vmatpush1.bf16.msra.mxu0 %v1939
      %1992 = vmatprep.subr.bf16.mxu0 0
      %1993 = vmatpush1.bf16.msra.mxu0 %v1940
      %1994 = vmatprep.subr.bf16.mxu0 0
      %1995 = vmatpush1.bf16.msra.mxu0 %v1941
      %1996 = vmatprep.subr.bf16.mxu0 0
      %1997 = vmatpush1.bf16.msra.mxu0 %v1942
      %1998 = vmatprep.subr.bf16.mxu0 0
      %1999 = vmatpush1.bf16.msra.mxu0 %v1943
      %2000 = vmatprep.subr.bf16.mxu0 0
      %2001 = vmatpush1.bf16.msra.mxu0 %v1944
      %2002 = vmatprep.subr.bf16.mxu0 0
      %2003 = vmatpush1.bf16.msra.mxu0 %v1945
      %2004 = vmatprep.subr.bf16.mxu0 0
      %2005 = vmatpush1.bf16.msra.mxu0 %v1946
      %2006 = vmatprep.subr.bf16.mxu0 0
      %2007 = vmatpush1.bf16.msra.mxu0 %v1947
      %2008 = vmatprep.subr.bf16.mxu0 0
      %2009 = vmatpush1.bf16.msra.mxu0 %v1948
      %2010 = vmatprep.subr.bf16.mxu0 0
      %2011 = vmatpush1.bf16.msra.mxu0 %v1949
      %2012 = vmatprep.subr.bf16.mxu0 0
      %2013 = vmatpush1.bf16.msra.mxu0 %v1950
      %2014 = vmatprep.subr.bf16.mxu0 0
      %2015 = vmatpush1.bf16.msra.mxu0 %v1951
      %2016 = vmatprep.mubr.bf16.mxu0 %v1811
      %2017 = vmatmul.mubr.bf16.gmra.mrb[0].mxu0 %v1810
      %v2018 = vpop.f32.mrb[0].mxu0
      %v2019 = vadd.f32 0.0, %v2018
      %v2020 = vpop.f32.mrb[0].mxu0
      %v2021 = vpop.f32.mrb[0].mxu0
      %v2022 = vadd.f32 0.0, %v2021
      %v2023 = vpop.f32.mrb[0].mxu0
      %2024 = vmatprep.mubr.bf16.mxu0 %v1814
      %2025 = vmatmul.mubr.bf16.gmra.mrb[0].mxu0 %v1813
      %v2026 = vpop.f32.mrb[0].mxu0
      %v2027 = vadd.f32 0.0, %v2026
      %v2028 = vpop.f32.mrb[0].mxu0
      %v2029 = vpop.f32.mrb[0].mxu0
      %v2030 = vadd.f32 0.0, %v2029
      %v2031 = vpop.f32.mrb[0].mxu0
      %2032 = vmatprep.mubr.bf16.mxu0 %v1817
      %2033 = vmatmul.mubr.bf16.gmra.mrb[0].mxu0 %v1816
      %v2034 = vpop.f32.mrb[0].mxu0
      %v2035 = vadd.f32 0.0, %v2034
      %v2036 = vpop.f32.mrb[0].mxu0
      %v2037 = vpop.f32.mrb[0].mxu0
      %v2038 = vadd.f32 0.0, %v2037
      %v2039 = vpop.f32.mrb[0].mxu0
      %2040 = vmatprep.mubr.bf16.mxu0 %v1820
      %2041 = vmatmul.mubr.bf16.gmra.mrb[0].mxu0 %v1819
      %v2042 = vpop.f32.mrb[0].mxu0
      %v2043 = vadd.f32 0.0, %v2042
      %v2044 = vpop.f32.mrb[0].mxu0
      %v2045 = vpop.f32.mrb[0].mxu0
      %v2046 = vadd.f32 0.0, %v2045
      %v2047 = vpop.f32.mrb[0].mxu0
      %2048 = vmatprep.mubr.bf16.mxu0 %v1823
      %2049 = vmatmul.mubr.bf16.gmra.mrb[0].mxu0 %v1822
      %v2050 = vpop.f32.mrb[0].mxu0
      %v2051 = vadd.f32 0.0, %v2050
      %v2052 = vpop.f32.mrb[0].mxu0
      %v2053 = vpop.f32.mrb[0].mxu0
      %v2054 = vadd.f32 0.0, %v2053
      %v2055 = vpop.f32.mrb[0].mxu0
      %2056 = vdwg.mxu0
      %2057 = vmatprep.subr.bf16.mxu0 0
      %2058 = vmatpush1.bf16.msra.mxu0 %v1952
      %2059 = vmatprep.subr.bf16.mxu0 0
      %2060 = vmatpush1.bf16.msra.mxu0 %v1953
      %2061 = vmatprep.subr.bf16.mxu0 0
      %2062 = vmatpush1.bf16.msra.mxu0 %v1954
      %2063 = vmatprep.subr.bf16.mxu0 0
      %2064 = vmatpush1.bf16.msra.mxu0 %v1955
      %2065 = vmatprep.subr.bf16.mxu0 0
      %2066 = vmatpush1.bf16.msra.mxu0 %v1956
      %2067 = vmatprep.subr.bf16.mxu0 0
      %2068 = vmatpush1.bf16.msra.mxu0 %v1957
      %2069 = vmatprep.subr.bf16.mxu0 0
      %2070 = vmatpush1.bf16.msra.mxu0 %v1958
      %2071 = vmatprep.subr.bf16.mxu0 0
      %2072 = vmatpush1.bf16.msra.mxu0 %v1959
      %2073 = vmatprep.subr.bf16.mxu0 0
      %2074 = vmatpush1.bf16.msra.mxu0 0
      %2075 = vmatprep.subr.bf16.mxu0 0
      %2076 = vmatpush1.bf16.msra.mxu0 0
      %2077 = vmatprep.subr.bf16.mxu0 0
      %2078 = vmatpush1.bf16.msra.mxu0 0
      %2079 = vmatprep.subr.bf16.mxu0 0
      %2080 = vmatpush1.bf16.msra.mxu0 0
      %2081 = vmatprep.subr.bf16.mxu0 0
      %2082 = vmatpush1.bf16.msra.mxu0 0
      %2083 = vmatprep.subr.bf16.mxu0 0
      %2084 = vmatpush1.bf16.msra.mxu0 0
      %2085 = vmatprep.subr.bf16.mxu0 0
      %2086 = vmatpush1.bf16.msra.mxu0 0
      %2087 = vmatprep.subr.bf16.mxu0 0
      %2088 = vmatpush1.bf16.msra.mxu0 0
      %2089 = vmatprep.mubr.bf16.mxu0 0
      %2090 = vmatmul.mubr.bf16.gmra.mrb[0].mxu0 %v1812
      %v2091 = vpop.f32.mrb[0].mxu0
      %v2092 = vadd.f32 %v2019, %v2091
      %v2093 = vpop.f32.mrb[0].mxu0
      %v2094 = vpop.f32.mrb[0].mxu0
      %v2095 = vadd.f32 %v2022, %v2094
      %v2096 = vpop.f32.mrb[0].mxu0
      %2097 = vmatprep.mubr.bf16.mxu0 0
      %2098 = vmatmul.mubr.bf16.gmra.mrb[0].mxu0 %v1815
      %v2099 = vpop.f32.mrb[0].mxu0
      %v2100 = vadd.f32 %v2027, %v2099
      %v2101 = vpop.f32.mrb[0].mxu0
      %v2102 = vpop.f32.mrb[0].mxu0
      %v2103 = vadd.f32 %v2030, %v2102
      %v2104 = vpop.f32.mrb[0].mxu0
      %2105 = vmatprep.mubr.bf16.mxu0 0
      %2106 = vmatmul.mubr.bf16.gmra.mrb[0].mxu0 %v1818
      %v2107 = vpop.f32.mrb[0].mxu0
      %v2108 = vadd.f32 %v2035, %v2107
      %v2109 = vpop.f32.mrb[0].mxu0
      %v2110 = vpop.f32.mrb[0].mxu0
      %v2111 = vadd.f32 %v2038, %v2110
      %v2112 = vpop.f32.mrb[0].mxu0
      %2113 = vmatprep.mubr.bf16.mxu0 0
      %2114 = vmatmul.mubr.bf16.gmra.mrb[0].mxu0 %v1821
      %v2115 = vpop.f32.mrb[0].mxu0
      %v2116 = vadd.f32 %v2043, %v2115
      %v2117 = vpop.f32.mrb[0].mxu0
      %v2118 = vpop.f32.mrb[0].mxu0
      %v2119 = vadd.f32 %v2046, %v2118
      %v2120 = vpop.f32.mrb[0].mxu0
      %2121 = vmatprep.mubr.bf16.mxu0 0
      %2122 = vmatmul.mubr.bf16.gmra.mrb[0].mxu0 %v1824
      %v2123 = vpop.f32.mrb[0].mxu0
      %v2124 = vadd.f32 %v2051, %v2123
      %v2125 = vpop.f32.mrb[0].mxu0
      %v2126 = vpop.f32.mrb[0].mxu0
      %v2127 = vadd.f32 %v2054, %v2126
      %v2128 = vpop.f32.mrb[0].mxu0
      %2129 = vdwg.mxu0
      %v2130 = vadd.f32 %v1562, %v2092
      %v2131 = vadd.f32 %v1565, %v2095
      %v2132 = vadd.f32 %v1570, %v2100
      %v2133 = vadd.f32 %v1573, %v2103
      %v2134 = vadd.f32 %v1578, %v2108
      %v2135 = vadd.f32 %v1581, %v2111
      %v2136 = vadd.f32 %v1586, %v2116
      %v2137 = vadd.f32 %v1589, %v2119
      %v2138 = vadd.f32 %v1594, %v2124
      %v2139 = vadd.f32 %v1597, %v2127
      %v2140 = vld [vmem:[%s2] sm:$0x1]
      %v2142 = vlaneseq
      %v2143 = vshrl.u32 %v2142, 7
      %v2144 = vsub.s32 0, %v2143
      %v2145 = vrot.slane %v2140, %v2144
      %v2147 = vadd.f32 %v2130, %v2145
      %v2148 = vadd.f32 %v2131, %v2145
      %v2149 = vadd.f32 %v2132, %v2145
      %v2150 = vadd.f32 %v2133, %v2145
      %v2151 = vadd.f32 %v2134, %v2145
      %v2152 = vadd.f32 %v2135, %v2145
      %v2153 = vadd.f32 %v2136, %v2145
      %v2154 = vadd.f32 %v2137, %v2145
      %v2155 = vadd.f32 %v2138, %v2145
      %v2156 = vadd.f32 %v2139, %v2145
      %v2157 = vmax.f32 %v2147, 0.0
      %v2158 = vmax.f32 %v2148, 0.0
      %v2159 = vmax.f32 %v2149, 0.0
      %v2160 = vmax.f32 %v2150, 0.0
      %v2161 = vmax.f32 %v2151, 0.0
      %v2162 = vmax.f32 %v2152, 0.0
      %v2163 = vmax.f32 %v2153, 0.0
      %v2164 = vmax.f32 %v2154, 0.0
      %v2165 = vmax.f32 %v2155, 0.0
      %v2166 = vmax.f32 %v2156, 0.0
      %vm2167 = vcmask 1040384
      %vm2168 = vsmask.f32 256
      %vm2169 = vmand %vm2167, %vm2168
      %v2170 = vld [vmem:[#allocation3] sm:$0x1]
      %v2171 = vsel %vm2169, 0, %v2170
      %2172 = vst [vmem:[#allocation3] sm:$0x1] %v2171
      %v2173 = vld [vmem:[#allocation3 + $0x8] sm:$0x1]
      %v2174 = vsel %vm2169, 0, %v2173
      %2175 = vst [vmem:[#allocation3 + $0x8] sm:$0x1] %v2174
      %v2176 = vld [vmem:[#allocation3 + $0x10] sm:$0x1]
      %v2177 = vsel %vm2169, 0, %v2176
      %2178 = vst [vmem:[#allocation3 + $0x10] sm:$0x1] %v2177
      %v2179 = vld [vmem:[#allocation3 + $0x18] sm:$0x1]
      %v2180 = vsel %vm2169, 0, %v2179
      %2181 = vst [vmem:[#allocation3 + $0x18] sm:$0x1] %v2180
      %v2182 = vld [vmem:[#allocation3 + $0x20] sm:$0x1]
      %v2183 = vsel %vm2169, 0, %v2182
      %2184 = vst [vmem:[#allocation3 + $0x20] sm:$0x1] %v2183
      %v2185 = vld [vmem:[#allocation3 + $0x28] sm:$0x1]
      %v2186 = vsel %vm2169, 0, %v2185
      %2187 = vst [vmem:[#allocation3 + $0x28] sm:$0x1] %v2186
      %v2188 = vld [vmem:[#allocation3 + $0x30] sm:$0x1]
      %v2189 = vsel %vm2169, 0, %v2188
      %2190 = vst [vmem:[#allocation3 + $0x30] sm:$0x1] %v2189
      %v2191 = vld [vmem:[#allocation3 + $0x38] sm:$0x1]
      %v2192 = vsel %vm2169, 0, %v2191
      %2193 = vst [vmem:[#allocation3 + $0x38] sm:$0x1] %v2192
      %v2194 = vld [vmem:[#allocation3 + $0x40] sm:$0x1]
      %v2195 = vsel %vm2169, 0, %v2194
      %2196 = vst [vmem:[#allocation3 + $0x40] sm:$0x1] %v2195
      %v2197 = vld [vmem:[#allocation3 + $0x48] sm:$0x1]
      %v2198 = vsel %vm2169, 0, %v2197
      %2199 = vst [vmem:[#allocation3 + $0x48] sm:$0x1] %v2198
      %vm2200 = vcmask 1044484
      %vm2201 = vsmask.f32 7954
      %vm2202 = vmand %vm2200, %vm2201
      %v2203 = vld [vmem:[#allocation3] sm:$0x10]
      %v2204 = vsel %vm2202, 0, %v2203
      %2205 = vst [vmem:[#allocation3] sm:$0x10] %v2204
      %v2206 = vld [vmem:[#allocation3 + $0x8] sm:$0x10]
      %v2207 = vsel %vm2202, 0, %v2206
      %2208 = vst [vmem:[#allocation3 + $0x8] sm:$0x10] %v2207
      %v2209 = vld [vmem:[#allocation3 + $0x10] sm:$0x10]
      %v2210 = vsel %vm2202, 0, %v2209
      %2211 = vst [vmem:[#allocation3 + $0x10] sm:$0x10] %v2210
      %v2212 = vld [vmem:[#allocation3 + $0x18] sm:$0x10]
      %v2213 = vsel %vm2202, 0, %v2212
      %2214 = vst [vmem:[#allocation3 + $0x18] sm:$0x10] %v2213
      %v2215 = vld [vmem:[#allocation3 + $0x20] sm:$0x10]
      %v2216 = vsel %vm2202, 0, %v2215
      %2217 = vst [vmem:[#allocation3 + $0x20] sm:$0x10] %v2216
      %v2218 = vld [vmem:[#allocation3 + $0x28] sm:$0x10]
      %v2219 = vsel %vm2202, 0, %v2218
      %2220 = vst [vmem:[#allocation3 + $0x28] sm:$0x10] %v2219
      %v2221 = vld [vmem:[#allocation3 + $0x30] sm:$0x10]
      %v2222 = vsel %vm2202, 0, %v2221
      %2223 = vst [vmem:[#allocation3 + $0x30] sm:$0x10] %v2222
      %v2224 = vld [vmem:[#allocation3 + $0x38] sm:$0x10]
      %v2225 = vsel %vm2202, 0, %v2224
      %2226 = vst [vmem:[#allocation3 + $0x38] sm:$0x10] %v2225
      %v2227 = vld [vmem:[#allocation3 + $0x40] sm:$0x10]
      %v2228 = vsel %vm2202, 0, %v2227
      %2229 = vst [vmem:[#allocation3 + $0x40] sm:$0x10] %v2228
      %v2230 = vld [vmem:[#allocation3 + $0x48] sm:$0x10]
      %v2231 = vsel %vm2202, 0, %v2230
      %2232 = vst [vmem:[#allocation3 + $0x48] sm:$0x10] %v2231
      %v2233 = vpack.c.bf16 %v2157, %v2157
      %v2234 = vpack.c.bf16 %v2158, %v2158
      %v2235 = vpack.c.bf16 %v2159, %v2159
      %v2236 = vpack.c.bf16 %v2160, %v2160
      %v2237 = vpack.c.bf16 %v2161, %v2161
      %v2238 = vpack.c.bf16 %v2162, %v2162
      %v2239 = vpack.c.bf16 %v2163, %v2163
      %v2240 = vpack.c.bf16 %v2164, %v2164
      %v2241 = vpack.c.bf16 %v2165, %v2165
      %v2242 = vpack.c.bf16 %v2166, %v2166
      %v2244 = vshrl.u32 %v2233, 16
      %v2246 = vrot.slane %v2244, 7
      %v2247 = vshll.u32 %v2233, 16
      %v2249 = vor.u32 %v2246, %v2247
      %v2251 = vshrl.u32 %v2234, 16
      %v2253 = vrot.slane %v2251, 7
      %v2254 = vshll.u32 %v2234, 16
      %v2256 = vor.u32 %v2253, %v2254
      %v2258 = vshrl.u32 %v2235, 16
      %v2260 = vrot.slane %v2258, 7
      %v2261 = vshll.u32 %v2235, 16
      %v2263 = vor.u32 %v2260, %v2261
      %v2265 = vshrl.u32 %v2236, 16
      %v2267 = vrot.slane %v2265, 7
      %v2268 = vshll.u32 %v2236, 16
      %v2270 = vor.u32 %v2267, %v2268
      %v2272 = vshrl.u32 %v2237, 16
      %v2274 = vrot.slane %v2272, 7
      %v2275 = vshll.u32 %v2237, 16
      %v2277 = vor.u32 %v2274, %v2275
      %v2279 = vshrl.u32 %v2238, 16
      %v2281 = vrot.slane %v2279, 7
      %v2282 = vshll.u32 %v2238, 16
      %v2284 = vor.u32 %v2281, %v2282
      %v2286 = vshrl.u32 %v2239, 16
      %v2288 = vrot.slane %v2286, 7
      %v2289 = vshll.u32 %v2239, 16
      %v2291 = vor.u32 %v2288, %v2289
      %v2293 = vshrl.u32 %v2240, 16
      %v2295 = vrot.slane %v2293, 7
      %v2296 = vshll.u32 %v2240, 16
      %v2298 = vor.u32 %v2295, %v2296
      %v2300 = vshrl.u32 %v2241, 16
      %v2302 = vrot.slane %v2300, 7
      %v2303 = vshll.u32 %v2241, 16
      %v2305 = vor.u32 %v2302, %v2303
      %v2307 = vshrl.u32 %v2242, 16
      %v2309 = vrot.slane %v2307, 7
      %v2310 = vshll.u32 %v2242, 16
      %v2312 = vor.u32 %v2309, %v2310
      %vm2323 = vcmask 1044480
      %vm2324 = vmand %vm2323, %vm504
      %v2325 = vld [vmem:[#allocation3] sm:$0x1f]
      %v2326 = vsel %vm2324, %v2249, %v2325
      %2327 = vst [vmem:[#allocation3] sm:$0x1f] %v2326
      %v2328 = vld [vmem:[#allocation3 + $0x8] sm:$0x1f]
      %v2329 = vsel %vm2324, %v2256, %v2328
      %2330 = vst [vmem:[#allocation3 + $0x8] sm:$0x1f] %v2329
      %v2331 = vld [vmem:[#allocation3 + $0x10] sm:$0x1f]
      %v2332 = vsel %vm2324, %v2263, %v2331
      %2333 = vst [vmem:[#allocation3 + $0x10] sm:$0x1f] %v2332
      %v2334 = vld [vmem:[#allocation3 + $0x18] sm:$0x1f]
      %v2335 = vsel %vm2324, %v2270, %v2334
      %2336 = vst [vmem:[#allocation3 + $0x18] sm:$0x1f] %v2335
      %v2337 = vld [vmem:[#allocation3 + $0x20] sm:$0x1f]
      %v2338 = vsel %vm2324, %v2277, %v2337
      %2339 = vst [vmem:[#allocation3 + $0x20] sm:$0x1f] %v2338
      %v2340 = vld [vmem:[#allocation3 + $0x28] sm:$0x1f]
      %v2341 = vsel %vm2324, %v2284, %v2340
      %2342 = vst [vmem:[#allocation3 + $0x28] sm:$0x1f] %v2341
      %v2343 = vld [vmem:[#allocation3 + $0x30] sm:$0x1f]
      %v2344 = vsel %vm2324, %v2291, %v2343
      %2345 = vst [vmem:[#allocation3 + $0x30] sm:$0x1f] %v2344
      %v2346 = vld [vmem:[#allocation3 + $0x38] sm:$0x1f]
      %v2347 = vsel %vm2324, %v2298, %v2346
      %2348 = vst [vmem:[#allocation3 + $0x38] sm:$0x1f] %v2347
      %v2349 = vld [vmem:[#allocation3 + $0x40] sm:$0x1f]
      %v2350 = vsel %vm2324, %v2305, %v2349
      %2351 = vst [vmem:[#allocation3 + $0x40] sm:$0x1f] %v2350
      %v2352 = vld [vmem:[#allocation3 + $0x48] sm:$0x1f]
      %v2353 = vsel %vm2324, %v2312, %v2352
      %2354 = vst [vmem:[#allocation3 + $0x48] sm:$0x1f] %v2353
      %p2355 = scmp.eq.s32.totalorder %s21, 0
      // Predicated region
      $region41: #{down_forward.1} parent=39 // pred_check
        %p2356 = pneg %p2355
      $region42: #{down_forward.1} parent=39 // pred_check_branch
        %2358 = sbr.rel (%p2356) target = $region44
      $region43: #{down_forward.1} parent=39 // pred_region
        %2359 = vst [vmem:[#allocation3] sm:$0xff] 0
        %s2360 = scalar_lea.vmem [#allocation3], 72
        %2361 = vst [vmem:[%s2360] sm:$0xff] 0
      $region44: #{down_forward.1} parent=39 // pred_fallthru
        _
      %v2362 = vld [vmem:[#allocation3] sm:$0xf]
      %v2363 = vld [vmem:[#allocation3 + $0x8] sm:$0xf]
      %v2364 = vld [vmem:[#allocation3 + $0x10] sm:$0xf]
      %v2365 = vld [vmem:[#allocation3 + $0x18] sm:$0xf]
      %v2366 = vld [vmem:[#allocation3 + $0x20] sm:$0xf]
      %v2367 = vld [vmem:[#allocation3 + $0x28] sm:$0xf]
      %v2368 = vld [vmem:[#allocation3 + $0x30] sm:$0xf]
      %v2369 = vld [vmem:[#allocation3 + $0x38] sm:$0xf]
      %v2370 = vld [vmem:[#allocation3] sm:$0x1f]
      %v2371 = vld [vmem:[#allocation3 + $0x8] sm:$0x1f]
      %v2372 = vld [vmem:[#allocation3 + $0x10] sm:$0x1f]
      %v2373 = vld [vmem:[#allocation3 + $0x18] sm:$0x1f]
      %v2374 = vld [vmem:[#allocation3 + $0x20] sm:$0x1f]
      %v2375 = vld [vmem:[#allocation3 + $0x28] sm:$0x1f]
      %v2376 = vld [vmem:[#allocation3 + $0x30] sm:$0x1f]
      %v2377 = vld [vmem:[#allocation3 + $0x38] sm:$0x1f]
      %v2378 = vld [vmem:[#allocation3] sm:$0x1e]
      %v2379 = vld [vmem:[#allocation3 + $0x8] sm:$0x1e]
      %v2380 = vld [vmem:[#allocation3 + $0x10] sm:$0x1e]
      %v2381 = vld [vmem:[#allocation3 + $0x18] sm:$0x1e]
      %v2382 = vld [vmem:[#allocation3 + $0x20] sm:$0x1e]
      %v2383 = vld [vmem:[#allocation3 + $0x28] sm:$0x1e]
      %v2384 = vld [vmem:[#allocation3 + $0x30] sm:$0x1e]
      %v2385 = vld [vmem:[#allocation3 + $0x38] sm:$0x1e]
      %v2387 = vshrl.u32 %v2370, 16
      %v2389 = vshll.u32 %v2370, 16
      %v2391 = vrot.slane %v2389, 1
      %v2392 = vor.u32 %v2387, %v2391
      %v2394 = vshrl.u32 %v2371, 16
      %v2396 = vshll.u32 %v2371, 16
      %v2398 = vrot.slane %v2396, 1
      %v2399 = vor.u32 %v2394, %v2398
      %v2401 = vshrl.u32 %v2372, 16
      %v2403 = vshll.u32 %v2372, 16
      %v2405 = vrot.slane %v2403, 1
      %v2406 = vor.u32 %v2401, %v2405
      %v2408 = vshrl.u32 %v2373, 16
      %v2410 = vshll.u32 %v2373, 16
      %v2412 = vrot.slane %v2410, 1
      %v2413 = vor.u32 %v2408, %v2412
      %v2415 = vshrl.u32 %v2374, 16
      %v2417 = vshll.u32 %v2374, 16
      %v2419 = vrot.slane %v2417, 1
      %v2420 = vor.u32 %v2415, %v2419
      %v2422 = vshrl.u32 %v2375, 16
      %v2424 = vshll.u32 %v2375, 16
      %v2426 = vrot.slane %v2424, 1
      %v2427 = vor.u32 %v2422, %v2426
      %v2429 = vshrl.u32 %v2376, 16
      %v2431 = vshll.u32 %v2376, 16
      %v2433 = vrot.slane %v2431, 1
      %v2434 = vor.u32 %v2429, %v2433
      %v2436 = vshrl.u32 %v2377, 16
      %v2438 = vshll.u32 %v2377, 16
      %v2440 = vrot.slane %v2438, 1
      %v2441 = vor.u32 %v2436, %v2440
      %v2450 = vrot.slane %v2378, 1
      %v2451 = vrot.slane %v2379, 1
      %v2452 = vrot.slane %v2380, 1
      %v2453 = vrot.slane %v2381, 1
      %v2454 = vrot.slane %v2382, 1
      %v2455 = vrot.slane %v2383, 1
      %v2456 = vrot.slane %v2384, 1
      %v2457 = vrot.slane %v2385, 1
      %v2466 = vunpack.c.l.b16 %v2362
      %v2467 = vunpack.c.l.b16 %v2392
      %v2468 = vunpack.c.l.b16 %v2450
      %v2469 = vunpack.c.l.b16 %v2363
      %v2470 = vunpack.c.l.b16 %v2399
      %v2471 = vunpack.c.l.b16 %v2451
      %v2472 = vunpack.c.l.b16 %v2364
      %v2473 = vunpack.c.l.b16 %v2406
      %v2474 = vunpack.c.l.b16 %v2452
      %v2475 = vunpack.c.l.b16 %v2365
      %v2476 = vunpack.c.l.b16 %v2413
      %v2477 = vunpack.c.l.b16 %v2453
      %v2478 = vunpack.c.l.b16 %v2366
      %v2479 = vunpack.c.l.b16 %v2420
      %v2480 = vunpack.c.l.b16 %v2454
      %v2481 = vunpack.c.l.b16 %v2367
      %v2482 = vunpack.c.l.b16 %v2427
      %v2483 = vunpack.c.l.b16 %v2455
      %v2484 = vunpack.c.l.b16 %v2368
      %v2485 = vunpack.c.l.b16 %v2434
      %v2486 = vunpack.c.l.b16 %v2456
      %v2487 = vunpack.c.l.b16 %v2369
      %v2488 = vunpack.c.l.b16 %v2441
      %v2489 = vunpack.c.l.b16 %v2457
      %v2490 = vld [vmem:[%s3] sm:$0xf]
      %v2491 = vld [vmem:[%s3 + $0x4] sm:$0xf]
      %v2492 = vld [vmem:[%s3 + $0x8] sm:$0xf]
      %v2493 = vld [vmem:[%s3 + $0xc] sm:$0xf]
      %v2494 = vld [vmem:[%s3 + $0x10] sm:$0xf]
      %v2495 = vld [vmem:[%s3 + $0x14] sm:$0xf]
      %v2496 = vld [vmem:[%s3 + $0x18] sm:$0xf]
      %v2497 = vld [vmem:[%s3 + $0x1c] sm:$0xf]
      %v2498 = vld [vmem:[%s3 + $0x20] sm:$0xf]
      %v2499 = vld [vmem:[%s3 + $0x24] sm:$0xf]
      %v2500 = vld [vmem:[%s3 + $0x28] sm:$0xf]
      %v2501 = vld [vmem:[%s3 + $0x2c] sm:$0xf]
      %v2502 = vld [vmem:[%s3 + $0x30] sm:$0xf]
      %v2503 = vld [vmem:[%s3 + $0x34] sm:$0xf]
      %v2504 = vld [vmem:[%s3 + $0x38] sm:$0xf]
      %v2505 = vld [vmem:[%s3 + $0x3c] sm:$0xf]
      %v2506 = vld [vmem:[%s3 + $0x40] sm:$0xf]
      %v2507 = vld [vmem:[%s3 + $0x44] sm:$0xf]
      %v2508 = vld [vmem:[%s3 + $0x48] sm:$0xf]
      %v2509 = vld [vmem:[%s3 + $0x4c] sm:$0xf]
      %v2510 = vld [vmem:[%s3 + $0x50] sm:$0xf]
      %v2511 = vld [vmem:[%s3 + $0x54] sm:$0xf]
      %v2512 = vld [vmem:[%s3 + $0x58] sm:$0xf]
      %v2513 = vld [vmem:[%s3 + $0x5c] sm:$0xf]
      %v2514 = vld [vmem:[%s3 + $0x60] sm:$0xf]
      %v2515 = vld [vmem:[%s3 + $0x64] sm:$0xf]
      %v2516 = vld [vmem:[%s3 + $0x68] sm:$0xf]
      %v2517 = vld [vmem:[%s3 + $0x6c] sm:$0xf]
      %v2518 = vld [vmem:[%s3 + $0x70] sm:$0xf]
      %v2519 = vld [vmem:[%s3 + $0x74] sm:$0xf]
      %v2520 = vld [vmem:[%s3 + $0x78] sm:$0xf]
      %v2521 = vld [vmem:[%s3 + $0x7c] sm:$0xf]
      %v2522 = vld [vmem:[%s3 + $0x80] sm:$0xf]
      %v2523 = vld [vmem:[%s3 + $0x84] sm:$0xf]
      %v2524 = vld [vmem:[%s3 + $0x88] sm:$0xf]
      %v2525 = vld [vmem:[%s3 + $0x8c] sm:$0xf]
      %v2526 = vld [vmem:[%s3 + $0x90] sm:$0xf]
      %v2527 = vld [vmem:[%s3 + $0x94] sm:$0xf]
      %v2528 = vld [vmem:[%s3 + $0x98] sm:$0xf]
      %v2529 = vld [vmem:[%s3 + $0x9c] sm:$0xf]
      %v2530 = vld [vmem:[%s3 + $0xa0] sm:$0xf]
      %v2531 = vld [vmem:[%s3 + $0xa4] sm:$0xf]
      %v2532 = vld [vmem:[%s3 + $0xa8] sm:$0xf]
      %v2533 = vld [vmem:[%s3 + $0xac] sm:$0xf]
      %v2534 = vld [vmem:[%s3 + $0xb0] sm:$0xf]
      %v2535 = vld [vmem:[%s3 + $0xb4] sm:$0xf]
      %v2536 = vld [vmem:[%s3 + $0xb8] sm:$0xf]
      %v2537 = vld [vmem:[%s3 + $0xbc] sm:$0xf]
      %s2538 = scalar_lea.vmem [#allocation3], 8
      %v2539 = vld [vmem:[%s2538] sm:$0xf]
      %v2540 = vld [vmem:[%s2538 + $0x8] sm:$0xf]
      %v2541 = vld [vmem:[%s2538 + $0x10] sm:$0xf]
      %v2542 = vld [vmem:[%s2538 + $0x18] sm:$0xf]
      %v2543 = vld [vmem:[%s2538 + $0x20] sm:$0xf]
      %v2544 = vld [vmem:[%s2538 + $0x28] sm:$0xf]
      %v2545 = vld [vmem:[%s2538 + $0x30] sm:$0xf]
      %v2546 = vld [vmem:[%s2538 + $0x38] sm:$0xf]
      %v2547 = vld [vmem:[%s2538] sm:$0x1f]
      %v2548 = vld [vmem:[%s2538 + $0x8] sm:$0x1f]
      %v2549 = vld [vmem:[%s2538 + $0x10] sm:$0x1f]
      %v2550 = vld [vmem:[%s2538 + $0x18] sm:$0x1f]
      %v2551 = vld [vmem:[%s2538 + $0x20] sm:$0x1f]
      %v2552 = vld [vmem:[%s2538 + $0x28] sm:$0x1f]
      %v2553 = vld [vmem:[%s2538 + $0x30] sm:$0x1f]
      %v2554 = vld [vmem:[%s2538 + $0x38] sm:$0x1f]
      %v2555 = vld [vmem:[%s2538] sm:$0x1e]
      %v2556 = vld [vmem:[%s2538 + $0x8] sm:$0x1e]
      %v2557 = vld [vmem:[%s2538 + $0x10] sm:$0x1e]
      %v2558 = vld [vmem:[%s2538 + $0x18] sm:$0x1e]
      %v2559 = vld [vmem:[%s2538 + $0x20] sm:$0x1e]
      %v2560 = vld [vmem:[%s2538 + $0x28] sm:$0x1e]
      %v2561 = vld [vmem:[%s2538 + $0x30] sm:$0x1e]
      %v2562 = vld [vmem:[%s2538 + $0x38] sm:$0x1e]
      %v2564 = vshrl.u32 %v2547, 16
      %v2566 = vshll.u32 %v2547, 16
      %v2568 = vrot.slane %v2566, 1
      %v2569 = vor.u32 %v2564, %v2568
      %v2571 = vshrl.u32 %v2548, 16
      %v2573 = vshll.u32 %v2548, 16
      %v2575 = vrot.slane %v2573, 1
      %v2576 = vor.u32 %v2571, %v2575
      %v2578 = vshrl.u32 %v2549, 16
      %v2580 = vshll.u32 %v2549, 16
      %v2582 = vrot.slane %v2580, 1
      %v2583 = vor.u32 %v2578, %v2582
      %v2585 = vshrl.u32 %v2550, 16
      %v2587 = vshll.u32 %v2550, 16
      %v2589 = vrot.slane %v2587, 1
      %v2590 = vor.u32 %v2585, %v2589
      %v2592 = vshrl.u32 %v2551, 16
      %v2594 = vshll.u32 %v2551, 16
      %v2596 = vrot.slane %v2594, 1
      %v2597 = vor.u32 %v2592, %v2596
      %v2599 = vshrl.u32 %v2552, 16
      %v2601 = vshll.u32 %v2552, 16
      %v2603 = vrot.slane %v2601, 1
      %v2604 = vor.u32 %v2599, %v2603
      %v2606 = vshrl.u32 %v2553, 16
      %v2608 = vshll.u32 %v2553, 16
      %v2610 = vrot.slane %v2608, 1
      %v2611 = vor.u32 %v2606, %v2610
      %v2613 = vshrl.u32 %v2554, 16
      %v2615 = vshll.u32 %v2554, 16
      %v2617 = vrot.slane %v2615, 1
      %v2618 = vor.u32 %v2613, %v2617
      %v2627 = vrot.slane %v2555, 1
      %v2628 = vrot.slane %v2556, 1
      %v2629 = vrot.slane %v2557, 1
      %v2630 = vrot.slane %v2558, 1
      %v2631 = vrot.slane %v2559, 1
      %v2632 = vrot.slane %v2560, 1
      %v2633 = vrot.slane %v2561, 1
      %v2634 = vrot.slane %v2562, 1
      %v2643 = vunpack.c.l.b16 %v2539
      %v2644 = vunpack.c.l.b16 %v2569
      %v2645 = vunpack.c.l.b16 %v2627
      %v2646 = vunpack.c.l.b16 %v2540
      %v2647 = vunpack.c.l.b16 %v2576
      %v2648 = vunpack.c.l.b16 %v2628
      %v2649 = vunpack.c.l.b16 %v2541
      %v2650 = vunpack.c.l.b16 %v2583
      %v2651 = vunpack.c.l.b16 %v2629
      %v2652 = vunpack.c.l.b16 %v2542
      %v2653 = vunpack.c.l.b16 %v2590
      %v2654 = vunpack.c.l.b16 %v2630
      %v2655 = vunpack.c.l.b16 %v2543
      %v2656 = vunpack.c.l.b16 %v2597
      %v2657 = vunpack.c.l.b16 %v2631
      %v2658 = vunpack.c.l.b16 %v2544
      %v2659 = vunpack.c.l.b16 %v2604
      %v2660 = vunpack.c.l.b16 %v2632
      %v2661 = vunpack.c.l.b16 %v2545
      %v2662 = vunpack.c.l.b16 %v2611
      %v2663 = vunpack.c.l.b16 %v2633
      %v2664 = vunpack.c.l.b16 %v2546
      %v2665 = vunpack.c.l.b16 %v2618
      %v2666 = vunpack.c.l.b16 %v2634
      %s2667 = scalar_lea.vmem %s3, 192
      %v2668 = vld [vmem:[%s2667] sm:$0xf]
      %v2669 = vld [vmem:[%s2667 + $0x4] sm:$0xf]
      %v2670 = vld [vmem:[%s2667 + $0x8] sm:$0xf]
      %v2671 = vld [vmem:[%s2667 + $0xc] sm:$0xf]
      %v2672 = vld [vmem:[%s2667 + $0x10] sm:$0xf]
      %v2673 = vld [vmem:[%s2667 + $0x14] sm:$0xf]
      %v2674 = vld [vmem:[%s2667 + $0x18] sm:$0xf]
      %v2675 = vld [vmem:[%s2667 + $0x1c] sm:$0xf]
      %v2676 = vld [vmem:[%s2667 + $0x20] sm:$0xf]
      %v2677 = vld [vmem:[%s2667 + $0x24] sm:$0xf]
      %v2678 = vld [vmem:[%s2667 + $0x28] sm:$0xf]
      %v2679 = vld [vmem:[%s2667 + $0x2c] sm:$0xf]
      %v2680 = vld [vmem:[%s2667 + $0x30] sm:$0xf]
      %v2681 = vld [vmem:[%s2667 + $0x34] sm:$0xf]
      %v2682 = vld [vmem:[%s2667 + $0x38] sm:$0xf]
      %v2683 = vld [vmem:[%s2667 + $0x3c] sm:$0xf]
      %v2684 = vld [vmem:[%s2667 + $0x40] sm:$0xf]
      %v2685 = vld [vmem:[%s2667 + $0x44] sm:$0xf]
      %v2686 = vld [vmem:[%s2667 + $0x48] sm:$0xf]
      %v2687 = vld [vmem:[%s2667 + $0x4c] sm:$0xf]
      %v2688 = vld [vmem:[%s2667 + $0x50] sm:$0xf]
      %v2689 = vld [vmem:[%s2667 + $0x54] sm:$0xf]
      %v2690 = vld [vmem:[%s2667 + $0x58] sm:$0xf]
      %v2691 = vld [vmem:[%s2667 + $0x5c] sm:$0xf]
      %v2692 = vld [vmem:[%s2667 + $0x60] sm:$0xf]
      %v2693 = vld [vmem:[%s2667 + $0x64] sm:$0xf]
      %v2694 = vld [vmem:[%s2667 + $0x68] sm:$0xf]
      %v2695 = vld [vmem:[%s2667 + $0x6c] sm:$0xf]
      %v2696 = vld [vmem:[%s2667 + $0x70] sm:$0xf]
      %v2697 = vld [vmem:[%s2667 + $0x74] sm:$0xf]
      %v2698 = vld [vmem:[%s2667 + $0x78] sm:$0xf]
      %v2699 = vld [vmem:[%s2667 + $0x7c] sm:$0xf]
      %v2700 = vld [vmem:[%s2667 + $0x80] sm:$0xf]
      %v2701 = vld [vmem:[%s2667 + $0x84] sm:$0xf]
      %v2702 = vld [vmem:[%s2667 + $0x88] sm:$0xf]
      %v2703 = vld [vmem:[%s2667 + $0x8c] sm:$0xf]
      %v2704 = vld [vmem:[%s2667 + $0x90] sm:$0xf]
      %v2705 = vld [vmem:[%s2667 + $0x94] sm:$0xf]
      %v2706 = vld [vmem:[%s2667 + $0x98] sm:$0xf]
      %v2707 = vld [vmem:[%s2667 + $0x9c] sm:$0xf]
      %v2708 = vld [vmem:[%s2667 + $0xa0] sm:$0xf]
      %v2709 = vld [vmem:[%s2667 + $0xa4] sm:$0xf]
      %v2710 = vld [vmem:[%s2667 + $0xa8] sm:$0xf]
      %v2711 = vld [vmem:[%s2667 + $0xac] sm:$0xf]
      %v2712 = vld [vmem:[%s2667 + $0xb0] sm:$0xf]
      %v2713 = vld [vmem:[%s2667 + $0xb4] sm:$0xf]
      %v2714 = vld [vmem:[%s2667 + $0xb8] sm:$0xf]
      %v2715 = vld [vmem:[%s2667 + $0xbc] sm:$0xf]
      %v2716 = vpack.c.b16 %v2646, %v2643
      %v2717 = vpack.c.b16 %v2647, %v2644
      %v2718 = vpack.c.b16 %v2648, %v2645
      %v2719 = vpack.c.b16 %v2652, %v2649
      %v2720 = vpack.c.b16 %v2653, %v2650
      %v2721 = vpack.c.b16 %v2654, %v2651
      %v2722 = vpack.c.b16 %v2658, %v2655
      %v2723 = vpack.c.b16 %v2659, %v2656
      %v2724 = vpack.c.b16 %v2660, %v2657
      %v2725 = vpack.c.b16 %v2664, %v2661
      %v2726 = vpack.c.b16 %v2665, %v2662
      %v2727 = vpack.c.b16 %v2666, %v2663
      %v2788 = vunpack.c.l.b16 %v2668
      %v2789 = vunpack.c.l.b16 %v2669
      %v2790 = vunpack.c.l.b16 %v2670
      %v2791 = vunpack.c.l.b16 %v2671
      %v2792 = vunpack.c.l.b16 %v2672
      %v2793 = vunpack.c.l.b16 %v2673
      %v2794 = vunpack.c.l.b16 %v2674
      %v2795 = vunpack.c.l.b16 %v2675
      %v2796 = vunpack.c.l.b16 %v2676
      %v2797 = vunpack.c.l.b16 %v2677
      %v2798 = vunpack.c.l.b16 %v2678
      %v2799 = vunpack.c.l.b16 %v2679
      %v2800 = vunpack.c.l.b16 %v2680
      %v2801 = vunpack.c.l.b16 %v2681
      %v2802 = vunpack.c.l.b16 %v2682
      %v2803 = vunpack.c.l.b16 %v2683
      %v2804 = vunpack.c.l.b16 %v2684
      %v2805 = vunpack.c.l.b16 %v2685
      %v2806 = vunpack.c.l.b16 %v2686
      %v2807 = vunpack.c.l.b16 %v2687
      %v2808 = vunpack.c.l.b16 %v2688
      %v2809 = vunpack.c.l.b16 %v2689
      %v2810 = vunpack.c.l.b16 %v2690
      %v2811 = vunpack.c.l.b16 %v2691
      %v2812 = vunpack.c.l.b16 %v2692
      %v2813 = vunpack.c.l.b16 %v2693
      %v2814 = vunpack.c.l.b16 %v2694
      %v2815 = vunpack.c.l.b16 %v2695
      %v2816 = vunpack.c.l.b16 %v2696
      %v2817 = vunpack.c.l.b16 %v2697
      %v2818 = vunpack.c.l.b16 %v2698
      %v2819 = vunpack.c.l.b16 %v2699
      %v2820 = vunpack.c.l.b16 %v2700
      %v2821 = vunpack.c.l.b16 %v2701
      %v2822 = vunpack.c.l.b16 %v2702
      %v2823 = vunpack.c.l.b16 %v2703
      %v2824 = vunpack.c.l.b16 %v2704
      %v2825 = vunpack.c.l.b16 %v2705
      %v2826 = vunpack.c.l.b16 %v2706
      %v2827 = vunpack.c.l.b16 %v2707
      %v2828 = vunpack.c.l.b16 %v2708
      %v2829 = vunpack.c.l.b16 %v2709
      %v2830 = vunpack.c.l.b16 %v2710
      %v2831 = vunpack.c.l.b16 %v2711
      %v2832 = vunpack.c.l.b16 %v2712
      %v2833 = vunpack.c.l.b16 %v2713
      %v2834 = vunpack.c.l.b16 %v2714
      %v2835 = vunpack.c.l.b16 %v2715
      %v2836 = vpack.c.b16 %v2789, %v2788
      %v2837 = vpack.c.b16 %v2791, %v2790
      %v2838 = vpack.c.b16 %v2793, %v2792
      %v2839 = vpack.c.b16 %v2795, %v2794
      %v2840 = vpack.c.b16 %v2797, %v2796
      %v2841 = vpack.c.b16 %v2799, %v2798
      %v2842 = vpack.c.b16 %v2801, %v2800
      %v2843 = vpack.c.b16 %v2803, %v2802
      %v2844 = vpack.c.b16 %v2805, %v2804
      %v2845 = vpack.c.b16 %v2807, %v2806
      %v2846 = vpack.c.b16 %v2809, %v2808
      %v2847 = vpack.c.b16 %v2811, %v2810
      %v2848 = vpack.c.b16 %v2813, %v2812
      %v2849 = vpack.c.b16 %v2815, %v2814
      %v2850 = vpack.c.b16 %v2817, %v2816
      %v2851 = vpack.c.b16 %v2819, %v2818
      %v2852 = vpack.c.b16 %v2821, %v2820
      %v2853 = vpack.c.b16 %v2823, %v2822
      %v2854 = vpack.c.b16 %v2825, %v2824
      %v2855 = vpack.c.b16 %v2827, %v2826
      %v2856 = vpack.c.b16 %v2829, %v2828
      %v2857 = vpack.c.b16 %v2831, %v2830
      %v2858 = vpack.c.b16 %v2833, %v2832
      %v2859 = vpack.c.b16 %v2835, %v2834
      %2884 = vmatprep.subr.bf16.mxu0 0
      %2885 = vmatpush1.bf16.msra.mxu0 %v2836
      %2886 = vmatprep.subr.bf16.mxu0 0
      %2887 = vmatpush1.bf16.msra.mxu0 %v2837
      %2888 = vmatprep.subr.bf16.mxu0 0
      %2889 = vmatpush1.bf16.msra.mxu0 %v2838
      %2890 = vmatprep.subr.bf16.mxu0 0
      %2891 = vmatpush1.bf16.msra.mxu0 %v2839
      %2892 = vmatprep.subr.bf16.mxu0 0
      %2893 = vmatpush1.bf16.msra.mxu0 %v2840
      %2894 = vmatprep.subr.bf16.mxu0 0
      %2895 = vmatpush1.bf16.msra.mxu0 %v2841
      %2896 = vmatprep.subr.bf16.mxu0 0
      %2897 = vmatpush1.bf16.msra.mxu0 %v2842
      %2898 = vmatprep.subr.bf16.mxu0 0
      %2899 = vmatpush1.bf16.msra.mxu0 %v2843
      %2900 = vmatprep.subr.bf16.mxu0 0
      %2901 = vmatpush1.bf16.msra.mxu0 %v2844
      %2902 = vmatprep.subr.bf16.mxu0 0
      %2903 = vmatpush1.bf16.msra.mxu0 %v2845
      %2904 = vmatprep.subr.bf16.mxu0 0
      %2905 = vmatpush1.bf16.msra.mxu0 %v2846
      %2906 = vmatprep.subr.bf16.mxu0 0
      %2907 = vmatpush1.bf16.msra.mxu0 %v2847
      %2908 = vmatprep.subr.bf16.mxu0 0
      %2909 = vmatpush1.bf16.msra.mxu0 %v2848
      %2910 = vmatprep.subr.bf16.mxu0 0
      %2911 = vmatpush1.bf16.msra.mxu0 %v2849
      %2912 = vmatprep.subr.bf16.mxu0 0
      %2913 = vmatpush1.bf16.msra.mxu0 %v2850
      %2914 = vmatprep.subr.bf16.mxu0 0
      %2915 = vmatpush1.bf16.msra.mxu0 %v2851
      %2916 = vmatprep.mubr.bf16.mxu0 %v2717
      %2917 = vmatmul.mubr.bf16.gmra.mrb[0].mxu0 %v2716
      %v2918 = vpop.f32.mrb[0].mxu0
      %v2919 = vadd.f32 0.0, %v2918
      %v2920 = vpop.f32.mrb[0].mxu0
      %v2921 = vpop.f32.mrb[0].mxu0
      %v2922 = vadd.f32 0.0, %v2921
      %v2923 = vpop.f32.mrb[0].mxu0
      %2924 = vmatprep.mubr.bf16.mxu0 %v2720
      %2925 = vmatmul.mubr.bf16.gmra.mrb[0].mxu0 %v2719
      %v2926 = vpop.f32.mrb[0].mxu0
      %v2927 = vadd.f32 0.0, %v2926
      %v2928 = vpop.f32.mrb[0].mxu0
      %v2929 = vpop.f32.mrb[0].mxu0
      %v2930 = vadd.f32 0.0, %v2929
      %v2931 = vpop.f32.mrb[0].mxu0
      %2932 = vmatprep.mubr.bf16.mxu0 %v2723
      %2933 = vmatmul.mubr.bf16.gmra.mrb[0].mxu0 %v2722
      %v2934 = vpop.f32.mrb[0].mxu0
      %v2935 = vadd.f32 0.0, %v2934
      %v2936 = vpop.f32.mrb[0].mxu0
      %v2937 = vpop.f32.mrb[0].mxu0
      %v2938 = vadd.f32 0.0, %v2937
      %v2939 = vpop.f32.mrb[0].mxu0
      %2940 = vmatprep.mubr.bf16.mxu0 %v2726
      %2941 = vmatmul.mubr.bf16.gmra.mrb[0].mxu0 %v2725
      %v2942 = vpop.f32.mrb[0].mxu0
      %v2943 = vadd.f32 0.0, %v2942
      %v2944 = vpop.f32.mrb[0].mxu0
      %v2945 = vpop.f32.mrb[0].mxu0
      %v2946 = vadd.f32 0.0, %v2945
      %v2947 = vpop.f32.mrb[0].mxu0
      %2948 = vdwg.mxu0
      %2949 = vmatprep.subr.bf16.mxu0 0
      %2950 = vmatpush1.bf16.msra.mxu0 %v2852
      %2951 = vmatprep.subr.bf16.mxu0 0
      %2952 = vmatpush1.bf16.msra.mxu0 %v2853
      %2953 = vmatprep.subr.bf16.mxu0 0
      %2954 = vmatpush1.bf16.msra.mxu0 %v2854
      %2955 = vmatprep.subr.bf16.mxu0 0
      %2956 = vmatpush1.bf16.msra.mxu0 %v2855
      %2957 = vmatprep.subr.bf16.mxu0 0
      %2958 = vmatpush1.bf16.msra.mxu0 %v2856
      %2959 = vmatprep.subr.bf16.mxu0 0
      %2960 = vmatpush1.bf16.msra.mxu0 %v2857
      %2961 = vmatprep.subr.bf16.mxu0 0
      %2962 = vmatpush1.bf16.msra.mxu0 %v2858
      %2963 = vmatprep.subr.bf16.mxu0 0
      %2964 = vmatpush1.bf16.msra.mxu0 %v2859
      %2965 = vmatprep.subr.bf16.mxu0 0
      %2966 = vmatpush1.bf16.msra.mxu0 0
      %2967 = vmatprep.subr.bf16.mxu0 0
      %2968 = vmatpush1.bf16.msra.mxu0 0
      %2969 = vmatprep.subr.bf16.mxu0 0
      %2970 = vmatpush1.bf16.msra.mxu0 0
      %2971 = vmatprep.subr.bf16.mxu0 0
      %2972 = vmatpush1.bf16.msra.mxu0 0
      %2973 = vmatprep.subr.bf16.mxu0 0
      %2974 = vmatpush1.bf16.msra.mxu0 0
      %2975 = vmatprep.subr.bf16.mxu0 0
      %2976 = vmatpush1.bf16.msra.mxu0 0
      %2977 = vmatprep.subr.bf16.mxu0 0
      %2978 = vmatpush1.bf16.msra.mxu0 0
      %2979 = vmatprep.subr.bf16.mxu0 0
      %2980 = vmatpush1.bf16.msra.mxu0 0
      %2981 = vmatprep.mubr.bf16.mxu0 0
      %2982 = vmatmul.mubr.bf16.gmra.mrb[0].mxu0 %v2718
      %v2983 = vpop.f32.mrb[0].mxu0
      %v2984 = vadd.f32 %v2919, %v2983
      %v2985 = vpop.f32.mrb[0].mxu0
      %v2986 = vpop.f32.mrb[0].mxu0
      %v2987 = vadd.f32 %v2922, %v2986
      %v2988 = vpop.f32.mrb[0].mxu0
      %2989 = vmatprep.mubr.bf16.mxu0 0
      %2990 = vmatmul.mubr.bf16.gmra.mrb[0].mxu0 %v2721
      %v2991 = vpop.f32.mrb[0].mxu0
      %v2992 = vadd.f32 %v2927, %v2991
      %v2993 = vpop.f32.mrb[0].mxu0
      %v2994 = vpop.f32.mrb[0].mxu0
      %v2995 = vadd.f32 %v2930, %v2994
      %v2996 = vpop.f32.mrb[0].mxu0
      %2997 = vmatprep.mubr.bf16.mxu0 0
      %2998 = vmatmul.mubr.bf16.gmra.mrb[0].mxu0 %v2724
      %v2999 = vpop.f32.mrb[0].mxu0
      %v3000 = vadd.f32 %v2935, %v2999
      %v3001 = vpop.f32.mrb[0].mxu0
      %v3002 = vpop.f32.mrb[0].mxu0
      %v3003 = vadd.f32 %v2938, %v3002
      %v3004 = vpop.f32.mrb[0].mxu0
      %3005 = vmatprep.mubr.bf16.mxu0 0
      %3006 = vmatmul.mubr.bf16.gmra.mrb[0].mxu0 %v2727
      %v3007 = vpop.f32.mrb[0].mxu0
      %v3008 = vadd.f32 %v2943, %v3007
      %v3009 = vpop.f32.mrb[0].mxu0
      %v3010 = vpop.f32.mrb[0].mxu0
      %v3011 = vadd.f32 %v2946, %v3010
      %v3012 = vpop.f32.mrb[0].mxu0
      %3013 = vdwg.mxu0
      %v3014 = vpack.c.b16 %v2469, %v2466
      %v3015 = vpack.c.b16 %v2470, %v2467
      %v3016 = vpack.c.b16 %v2471, %v2468
      %v3017 = vpack.c.b16 %v2475, %v2472
      %v3018 = vpack.c.b16 %v2476, %v2473
      %v3019 = vpack.c.b16 %v2477, %v2474
      %v3020 = vpack.c.b16 %v2481, %v2478
      %v3021 = vpack.c.b16 %v2482, %v2479
      %v3022 = vpack.c.b16 %v2483, %v2480
      %v3023 = vpack.c.b16 %v2487, %v2484
      %v3024 = vpack.c.b16 %v2488, %v2485
      %v3025 = vpack.c.b16 %v2489, %v2486
      %v3086 = vunpack.c.l.b16 %v2490
      %v3087 = vunpack.c.l.b16 %v2491
      %v3088 = vunpack.c.l.b16 %v2492
      %v3089 = vunpack.c.l.b16 %v2493
      %v3090 = vunpack.c.l.b16 %v2494
      %v3091 = vunpack.c.l.b16 %v2495
      %v3092 = vunpack.c.l.b16 %v2496
      %v3093 = vunpack.c.l.b16 %v2497
      %v3094 = vunpack.c.l.b16 %v2498
      %v3095 = vunpack.c.l.b16 %v2499
      %v3096 = vunpack.c.l.b16 %v2500
      %v3097 = vunpack.c.l.b16 %v2501
      %v3098 = vunpack.c.l.b16 %v2502
      %v3099 = vunpack.c.l.b16 %v2503
      %v3100 = vunpack.c.l.b16 %v2504
      %v3101 = vunpack.c.l.b16 %v2505
      %v3102 = vunpack.c.l.b16 %v2506
      %v3103 = vunpack.c.l.b16 %v2507
      %v3104 = vunpack.c.l.b16 %v2508
      %v3105 = vunpack.c.l.b16 %v2509
      %v3106 = vunpack.c.l.b16 %v2510
      %v3107 = vunpack.c.l.b16 %v2511
      %v3108 = vunpack.c.l.b16 %v2512
      %v3109 = vunpack.c.l.b16 %v2513
      %v3110 = vunpack.c.l.b16 %v2514
      %v3111 = vunpack.c.l.b16 %v2515
      %v3112 = vunpack.c.l.b16 %v2516
      %v3113 = vunpack.c.l.b16 %v2517
      %v3114 = vunpack.c.l.b16 %v2518
      %v3115 = vunpack.c.l.b16 %v2519
      %v3116 = vunpack.c.l.b16 %v2520
      %v3117 = vunpack.c.l.b16 %v2521
      %v3118 = vunpack.c.l.b16 %v2522
      %v3119 = vunpack.c.l.b16 %v2523
      %v3120 = vunpack.c.l.b16 %v2524
      %v3121 = vunpack.c.l.b16 %v2525
      %v3122 = vunpack.c.l.b16 %v2526
      %v3123 = vunpack.c.l.b16 %v2527
      %v3124 = vunpack.c.l.b16 %v2528
      %v3125 = vunpack.c.l.b16 %v2529
      %v3126 = vunpack.c.l.b16 %v2530
      %v3127 = vunpack.c.l.b16 %v2531
      %v3128 = vunpack.c.l.b16 %v2532
      %v3129 = vunpack.c.l.b16 %v2533
      %v3130 = vunpack.c.l.b16 %v2534
      %v3131 = vunpack.c.l.b16 %v2535
      %v3132 = vunpack.c.l.b16 %v2536
      %v3133 = vunpack.c.l.b16 %v2537
      %v3134 = vpack.c.b16 %v3087, %v3086
      %v3135 = vpack.c.b16 %v3089, %v3088
      %v3136 = vpack.c.b16 %v3091, %v3090
      %v3137 = vpack.c.b16 %v3093, %v3092
      %v3138 = vpack.c.b16 %v3095, %v3094
      %v3139 = vpack.c.b16 %v3097, %v3096
      %v3140 = vpack.c.b16 %v3099, %v3098
      %v3141 = vpack.c.b16 %v3101, %v3100
      %v3142 = vpack.c.b16 %v3103, %v3102
      %v3143 = vpack.c.b16 %v3105, %v3104
      %v3144 = vpack.c.b16 %v3107, %v3106
      %v3145 = vpack.c.b16 %v3109, %v3108
      %v3146 = vpack.c.b16 %v3111, %v3110
      %v3147 = vpack.c.b16 %v3113, %v3112
      %v3148 = vpack.c.b16 %v3115, %v3114
      %v3149 = vpack.c.b16 %v3117, %v3116
      %v3150 = vpack.c.b16 %v3119, %v3118
      %v3151 = vpack.c.b16 %v3121, %v3120
      %v3152 = vpack.c.b16 %v3123, %v3122
      %v3153 = vpack.c.b16 %v3125, %v3124
      %v3154 = vpack.c.b16 %v3127, %v3126
      %v3155 = vpack.c.b16 %v3129, %v3128
      %v3156 = vpack.c.b16 %v3131, %v3130
      %v3157 = vpack.c.b16 %v3133, %v3132
      %3182 = vmatprep.subr.bf16.mxu0 0
      %3183 = vmatpush1.bf16.msra.mxu0 %v3134
      %3184 = vmatprep.subr.bf16.mxu0 0
      %3185 = vmatpush1.bf16.msra.mxu0 %v3135
      %3186 = vmatprep.subr.bf16.mxu0 0
      %3187 = vmatpush1.bf16.msra.mxu0 %v3136
      %3188 = vmatprep.subr.bf16.mxu0 0
      %3189 = vmatpush1.bf16.msra.mxu0 %v3137
      %3190 = vmatprep.subr.bf16.mxu0 0
      %3191 = vmatpush1.bf16.msra.mxu0 %v3138
      %3192 = vmatprep.subr.bf16.mxu0 0
      %3193 = vmatpush1.bf16.msra.mxu0 %v3139
      %3194 = vmatprep.subr.bf16.mxu0 0
      %3195 = vmatpush1.bf16.msra.mxu0 %v3140
      %3196 = vmatprep.subr.bf16.mxu0 0
      %3197 = vmatpush1.bf16.msra.mxu0 %v3141
      %3198 = vmatprep.subr.bf16.mxu0 0
      %3199 = vmatpush1.bf16.msra.mxu0 %v3142
      %3200 = vmatprep.subr.bf16.mxu0 0
      %3201 = vmatpush1.bf16.msra.mxu0 %v3143
      %3202 = vmatprep.subr.bf16.mxu0 0
      %3203 = vmatpush1.bf16.msra.mxu0 %v3144
      %3204 = vmatprep.subr.bf16.mxu0 0
      %3205 = vmatpush1.bf16.msra.mxu0 %v3145
      %3206 = vmatprep.subr.bf16.mxu0 0
      %3207 = vmatpush1.bf16.msra.mxu0 %v3146
      %3208 = vmatprep.subr.bf16.mxu0 0
      %3209 = vmatpush1.bf16.msra.mxu0 %v3147
      %3210 = vmatprep.subr.bf16.mxu0 0
      %3211 = vmatpush1.bf16.msra.mxu0 %v3148
      %3212 = vmatprep.subr.bf16.mxu0 0
      %3213 = vmatpush1.bf16.msra.mxu0 %v3149
      %3214 = vmatprep.mubr.bf16.mxu0 %v3015
      %3215 = vmatmul.mubr.bf16.gmra.mrb[0].mxu0 %v3014
      %v3216 = vpop.f32.mrb[0].mxu0
      %v3217 = vadd.f32 %v2984, %v3216
      %v3218 = vpop.f32.mrb[0].mxu0
      %v3219 = vpop.f32.mrb[0].mxu0
      %v3220 = vadd.f32 %v2987, %v3219
      %v3221 = vpop.f32.mrb[0].mxu0
      %3222 = vmatprep.mubr.bf16.mxu0 %v3018
      %3223 = vmatmul.mubr.bf16.gmra.mrb[0].mxu0 %v3017
      %v3224 = vpop.f32.mrb[0].mxu0
      %v3225 = vadd.f32 %v2992, %v3224
      %v3226 = vpop.f32.mrb[0].mxu0
      %v3227 = vpop.f32.mrb[0].mxu0
      %v3228 = vadd.f32 %v2995, %v3227
      %v3229 = vpop.f32.mrb[0].mxu0
      %3230 = vmatprep.mubr.bf16.mxu0 %v3021
      %3231 = vmatmul.mubr.bf16.gmra.mrb[0].mxu0 %v3020
      %v3232 = vpop.f32.mrb[0].mxu0
      %v3233 = vadd.f32 %v3000, %v3232
      %v3234 = vpop.f32.mrb[0].mxu0
      %v3235 = vpop.f32.mrb[0].mxu0
      %v3236 = vadd.f32 %v3003, %v3235
      %v3237 = vpop.f32.mrb[0].mxu0
      %3238 = vmatprep.mubr.bf16.mxu0 %v3024
      %3239 = vmatmul.mubr.bf16.gmra.mrb[0].mxu0 %v3023
      %v3240 = vpop.f32.mrb[0].mxu0
      %v3241 = vadd.f32 %v3008, %v3240
      %v3242 = vpop.f32.mrb[0].mxu0
      %v3243 = vpop.f32.mrb[0].mxu0
      %v3244 = vadd.f32 %v3011, %v3243
      %v3245 = vpop.f32.mrb[0].mxu0
      %3246 = vdwg.mxu0
      %3247 = vmatprep.subr.bf16.mxu0 0
      %3248 = vmatpush1.bf16.msra.mxu0 %v3150
      %3249 = vmatprep.subr.bf16.mxu0 0
      %3250 = vmatpush1.bf16.msra.mxu0 %v3151
      %3251 = vmatprep.subr.bf16.mxu0 0
      %3252 = vmatpush1.bf16.msra.mxu0 %v3152
      %3253 = vmatprep.subr.bf16.mxu0 0
      %3254 = vmatpush1.bf16.msra.mxu0 %v3153
      %3255 = vmatprep.subr.bf16.mxu0 0
      %3256 = vmatpush1.bf16.msra.mxu0 %v3154
      %3257 = vmatprep.subr.bf16.mxu0 0
      %3258 = vmatpush1.bf16.msra.mxu0 %v3155
      %3259 = vmatprep.subr.bf16.mxu0 0
      %3260 = vmatpush1.bf16.msra.mxu0 %v3156
      %3261 = vmatprep.subr.bf16.mxu0 0
      %3262 = vmatpush1.bf16.msra.mxu0 %v3157
      %3263 = vmatprep.subr.bf16.mxu0 0
      %3264 = vmatpush1.bf16.msra.mxu0 0
      %3265 = vmatprep.subr.bf16.mxu0 0
      %3266 = vmatpush1.bf16.msra.mxu0 0
      %3267 = vmatprep.subr.bf16.mxu0 0
      %3268 = vmatpush1.bf16.msra.mxu0 0
      %3269 = vmatprep.subr.bf16.mxu0 0
      %3270 = vmatpush1.bf16.msra.mxu0 0
      %3271 = vmatprep.subr.bf16.mxu0 0
      %3272 = vmatpush1.bf16.msra.mxu0 0
      %3273 = vmatprep.subr.bf16.mxu0 0
      %3274 = vmatpush1.bf16.msra.mxu0 0
      %3275 = vmatprep.subr.bf16.mxu0 0
      %3276 = vmatpush1.bf16.msra.mxu0 0
      %3277 = vmatprep.subr.bf16.mxu0 0
      %3278 = vmatpush1.bf16.msra.mxu0 0
      %3279 = vmatprep.mubr.bf16.mxu0 0
      %3280 = vmatmul.mubr.bf16.gmra.mrb[0].mxu0 %v3016
      %v3281 = vpop.f32.mrb[0].mxu0
      %v3282 = vadd.f32 %v3217, %v3281
      %v3283 = vpop.f32.mrb[0].mxu0
      %v3284 = vpop.f32.mrb[0].mxu0
      %v3285 = vadd.f32 %v3220, %v3284
      %v3286 = vpop.f32.mrb[0].mxu0
      %3287 = vmatprep.mubr.bf16.mxu0 0
      %3288 = vmatmul.mubr.bf16.gmra.mrb[0].mxu0 %v3019
      %v3289 = vpop.f32.mrb[0].mxu0
      %v3290 = vadd.f32 %v3225, %v3289
      %v3291 = vpop.f32.mrb[0].mxu0
      %v3292 = vpop.f32.mrb[0].mxu0
      %v3293 = vadd.f32 %v3228, %v3292
      %v3294 = vpop.f32.mrb[0].mxu0
      %3295 = vmatprep.mubr.bf16.mxu0 0
      %3296 = vmatmul.mubr.bf16.gmra.mrb[0].mxu0 %v3022
      %v3297 = vpop.f32.mrb[0].mxu0
      %v3298 = vadd.f32 %v3233, %v3297
      %v3299 = vpop.f32.mrb[0].mxu0
      %v3300 = vpop.f32.mrb[0].mxu0
      %v3301 = vadd.f32 %v3236, %v3300
      %v3302 = vpop.f32.mrb[0].mxu0
      %3303 = vmatprep.mubr.bf16.mxu0 0
      %3304 = vmatmul.mubr.bf16.gmra.mrb[0].mxu0 %v3025
      %v3305 = vpop.f32.mrb[0].mxu0
      %v3306 = vadd.f32 %v3241, %v3305
      %v3307 = vpop.f32.mrb[0].mxu0
      %v3308 = vpop.f32.mrb[0].mxu0
      %v3309 = vadd.f32 %v3244, %v3308
      %v3310 = vpop.f32.mrb[0].mxu0
      %3311 = vdwg.mxu0
      %s3312 = scalar_lea.vmem [#allocation3], 16
      %v3313 = vld [vmem:[%s3312] sm:$0xf]
      %v3314 = vld [vmem:[%s3312 + $0x8] sm:$0xf]
      %v3315 = vld [vmem:[%s3312 + $0x10] sm:$0xf]
      %v3316 = vld [vmem:[%s3312 + $0x18] sm:$0xf]
      %v3317 = vld [vmem:[%s3312 + $0x20] sm:$0xf]
      %v3318 = vld [vmem:[%s3312 + $0x28] sm:$0xf]
      %v3319 = vld [vmem:[%s3312 + $0x30] sm:$0xf]
      %v3320 = vld [vmem:[%s3312 + $0x38] sm:$0xf]
      %v3321 = vld [vmem:[%s3312] sm:$0x1f]
      %v3322 = vld [vmem:[%s3312 + $0x8] sm:$0x1f]
      %v3323 = vld [vmem:[%s3312 + $0x10] sm:$0x1f]
      %v3324 = vld [vmem:[%s3312 + $0x18] sm:$0x1f]
      %v3325 = vld [vmem:[%s3312 + $0x20] sm:$0x1f]
      %v3326 = vld [vmem:[%s3312 + $0x28] sm:$0x1f]
      %v3327 = vld [vmem:[%s3312 + $0x30] sm:$0x1f]
      %v3328 = vld [vmem:[%s3312 + $0x38] sm:$0x1f]
      %v3329 = vld [vmem:[%s3312] sm:$0x1e]
      %v3330 = vld [vmem:[%s3312 + $0x8] sm:$0x1e]
      %v3331 = vld [vmem:[%s3312 + $0x10] sm:$0x1e]
      %v3332 = vld [vmem:[%s3312 + $0x18] sm:$0x1e]
      %v3333 = vld [vmem:[%s3312 + $0x20] sm:$0x1e]
      %v3334 = vld [vmem:[%s3312 + $0x28] sm:$0x1e]
      %v3335 = vld [vmem:[%s3312 + $0x30] sm:$0x1e]
      %v3336 = vld [vmem:[%s3312 + $0x38] sm:$0x1e]
      %v3338 = vshrl.u32 %v3321, 16
      %v3340 = vshll.u32 %v3321, 16
      %v3342 = vrot.slane %v3340, 1
      %v3343 = vor.u32 %v3338, %v3342
      %v3345 = vshrl.u32 %v3322, 16
      %v3347 = vshll.u32 %v3322, 16
      %v3349 = vrot.slane %v3347, 1
      %v3350 = vor.u32 %v3345, %v3349
      %v3352 = vshrl.u32 %v3323, 16
      %v3354 = vshll.u32 %v3323, 16
      %v3356 = vrot.slane %v3354, 1
      %v3357 = vor.u32 %v3352, %v3356
      %v3359 = vshrl.u32 %v3324, 16
      %v3361 = vshll.u32 %v3324, 16
      %v3363 = vrot.slane %v3361, 1
      %v3364 = vor.u32 %v3359, %v3363
      %v3366 = vshrl.u32 %v3325, 16
      %v3368 = vshll.u32 %v3325, 16
      %v3370 = vrot.slane %v3368, 1
      %v3371 = vor.u32 %v3366, %v3370
      %v3373 = vshrl.u32 %v3326, 16
      %v3375 = vshll.u32 %v3326, 16
      %v3377 = vrot.slane %v3375, 1
      %v3378 = vor.u32 %v3373, %v3377
      %v3380 = vshrl.u32 %v3327, 16
      %v3382 = vshll.u32 %v3327, 16
      %v3384 = vrot.slane %v3382, 1
      %v3385 = vor.u32 %v3380, %v3384
      %v3387 = vshrl.u32 %v3328, 16
      %v3389 = vshll.u32 %v3328, 16
      %v3391 = vrot.slane %v3389, 1
      %v3392 = vor.u32 %v3387, %v3391
      %v3401 = vrot.slane %v3329, 1
      %v3402 = vrot.slane %v3330, 1
      %v3403 = vrot.slane %v3331, 1
      %v3404 = vrot.slane %v3332, 1
      %v3405 = vrot.slane %v3333, 1
      %v3406 = vrot.slane %v3334, 1
      %v3407 = vrot.slane %v3335, 1
      %v3408 = vrot.slane %v3336, 1
      %v3417 = vunpack.c.l.b16 %v3313
      %v3418 = vunpack.c.l.b16 %v3343
      %v3419 = vunpack.c.l.b16 %v3401
      %v3420 = vunpack.c.l.b16 %v3314
      %v3421 = vunpack.c.l.b16 %v3350
      %v3422 = vunpack.c.l.b16 %v3402
      %v3423 = vunpack.c.l.b16 %v3315
      %v3424 = vunpack.c.l.b16 %v3357
      %v3425 = vunpack.c.l.b16 %v3403
      %v3426 = vunpack.c.l.b16 %v3316
      %v3427 = vunpack.c.l.b16 %v3364
      %v3428 = vunpack.c.l.b16 %v3404
      %v3429 = vunpack.c.l.b16 %v3317
      %v3430 = vunpack.c.l.b16 %v3371
      %v3431 = vunpack.c.l.b16 %v3405
      %v3432 = vunpack.c.l.b16 %v3318
      %v3433 = vunpack.c.l.b16 %v3378
      %v3434 = vunpack.c.l.b16 %v3406
      %v3435 = vunpack.c.l.b16 %v3319
      %v3436 = vunpack.c.l.b16 %v3385
      %v3437 = vunpack.c.l.b16 %v3407
      %v3438 = vunpack.c.l.b16 %v3320
      %v3439 = vunpack.c.l.b16 %v3392
      %v3440 = vunpack.c.l.b16 %v3408
      %s3441 = scalar_lea.vmem %s3, 384
      %v3442 = vld [vmem:[%s3441] sm:$0xf]
      %v3443 = vld [vmem:[%s3441 + $0x4] sm:$0xf]
      %v3444 = vld [vmem:[%s3441 + $0x8] sm:$0xf]
      %v3445 = vld [vmem:[%s3441 + $0xc] sm:$0xf]
      %v3446 = vld [vmem:[%s3441 + $0x10] sm:$0xf]
      %v3447 = vld [vmem:[%s3441 + $0x14] sm:$0xf]
      %v3448 = vld [vmem:[%s3441 + $0x18] sm:$0xf]
      %v3449 = vld [vmem:[%s3441 + $0x1c] sm:$0xf]
      %v3450 = vld [vmem:[%s3441 + $0x20] sm:$0xf]
      %v3451 = vld [vmem:[%s3441 + $0x24] sm:$0xf]
      %v3452 = vld [vmem:[%s3441 + $0x28] sm:$0xf]
      %v3453 = vld [vmem:[%s3441 + $0x2c] sm:$0xf]
      %v3454 = vld [vmem:[%s3441 + $0x30] sm:$0xf]
      %v3455 = vld [vmem:[%s3441 + $0x34] sm:$0xf]
      %v3456 = vld [vmem:[%s3441 + $0x38] sm:$0xf]
      %v3457 = vld [vmem:[%s3441 + $0x3c] sm:$0xf]
      %v3458 = vld [vmem:[%s3441 + $0x40] sm:$0xf]
      %v3459 = vld [vmem:[%s3441 + $0x44] sm:$0xf]
      %v3460 = vld [vmem:[%s3441 + $0x48] sm:$0xf]
      %v3461 = vld [vmem:[%s3441 + $0x4c] sm:$0xf]
      %v3462 = vld [vmem:[%s3441 + $0x50] sm:$0xf]
      %v3463 = vld [vmem:[%s3441 + $0x54] sm:$0xf]
      %v3464 = vld [vmem:[%s3441 + $0x58] sm:$0xf]
      %v3465 = vld [vmem:[%s3441 + $0x5c] sm:$0xf]
      %v3466 = vld [vmem:[%s3441 + $0x60] sm:$0xf]
      %v3467 = vld [vmem:[%s3441 + $0x64] sm:$0xf]
      %v3468 = vld [vmem:[%s3441 + $0x68] sm:$0xf]
      %v3469 = vld [vmem:[%s3441 + $0x6c] sm:$0xf]
      %v3470 = vld [vmem:[%s3441 + $0x70] sm:$0xf]
      %v3471 = vld [vmem:[%s3441 + $0x74] sm:$0xf]
      %v3472 = vld [vmem:[%s3441 + $0x78] sm:$0xf]
      %v3473 = vld [vmem:[%s3441 + $0x7c] sm:$0xf]
      %v3474 = vld [vmem:[%s3441 + $0x80] sm:$0xf]
      %v3475 = vld [vmem:[%s3441 + $0x84] sm:$0xf]
      %v3476 = vld [vmem:[%s3441 + $0x88] sm:$0xf]
      %v3477 = vld [vmem:[%s3441 + $0x8c] sm:$0xf]
      %v3478 = vld [vmem:[%s3441 + $0x90] sm:$0xf]
      %v3479 = vld [vmem:[%s3441 + $0x94] sm:$0xf]
      %v3480 = vld [vmem:[%s3441 + $0x98] sm:$0xf]
      %v3481 = vld [vmem:[%s3441 + $0x9c] sm:$0xf]
      %v3482 = vld [vmem:[%s3441 + $0xa0] sm:$0xf]
      %v3483 = vld [vmem:[%s3441 + $0xa4] sm:$0xf]
      %v3484 = vld [vmem:[%s3441 + $0xa8] sm:$0xf]
      %v3485 = vld [vmem:[%s3441 + $0xac] sm:$0xf]
      %v3486 = vld [vmem:[%s3441 + $0xb0] sm:$0xf]
      %v3487 = vld [vmem:[%s3441 + $0xb4] sm:$0xf]
      %v3488 = vld [vmem:[%s3441 + $0xb8] sm:$0xf]
      %v3489 = vld [vmem:[%s3441 + $0xbc] sm:$0xf]
      %v3490 = vpack.c.b16 %v3420, %v3417
      %v3491 = vpack.c.b16 %v3421, %v3418
      %v3492 = vpack.c.b16 %v3422, %v3419
      %v3493 = vpack.c.b16 %v3426, %v3423
      %v3494 = vpack.c.b16 %v3427, %v3424
      %v3495 = vpack.c.b16 %v3428, %v3425
      %v3496 = vpack.c.b16 %v3432, %v3429
      %v3497 = vpack.c.b16 %v3433, %v3430
      %v3498 = vpack.c.b16 %v3434, %v3431
      %v3499 = vpack.c.b16 %v3438, %v3435
      %v3500 = vpack.c.b16 %v3439, %v3436
      %v3501 = vpack.c.b16 %v3440, %v3437
      %v3562 = vunpack.c.l.b16 %v3442
      %v3563 = vunpack.c.l.b16 %v3443
      %v3564 = vunpack.c.l.b16 %v3444
      %v3565 = vunpack.c.l.b16 %v3445
      %v3566 = vunpack.c.l.b16 %v3446
      %v3567 = vunpack.c.l.b16 %v3447
      %v3568 = vunpack.c.l.b16 %v3448
      %v3569 = vunpack.c.l.b16 %v3449
      %v3570 = vunpack.c.l.b16 %v3450
      %v3571 = vunpack.c.l.b16 %v3451
      %v3572 = vunpack.c.l.b16 %v3452
      %v3573 = vunpack.c.l.b16 %v3453
      %v3574 = vunpack.c.l.b16 %v3454
      %v3575 = vunpack.c.l.b16 %v3455
      %v3576 = vunpack.c.l.b16 %v3456
      %v3577 = vunpack.c.l.b16 %v3457
      %v3578 = vunpack.c.l.b16 %v3458
      %v3579 = vunpack.c.l.b16 %v3459
      %v3580 = vunpack.c.l.b16 %v3460
      %v3581 = vunpack.c.l.b16 %v3461
      %v3582 = vunpack.c.l.b16 %v3462
      %v3583 = vunpack.c.l.b16 %v3463
      %v3584 = vunpack.c.l.b16 %v3464
      %v3585 = vunpack.c.l.b16 %v3465
      %v3586 = vunpack.c.l.b16 %v3466
      %v3587 = vunpack.c.l.b16 %v3467
      %v3588 = vunpack.c.l.b16 %v3468
      %v3589 = vunpack.c.l.b16 %v3469
      %v3590 = vunpack.c.l.b16 %v3470
      %v3591 = vunpack.c.l.b16 %v3471
      %v3592 = vunpack.c.l.b16 %v3472
      %v3593 = vunpack.c.l.b16 %v3473
      %v3594 = vunpack.c.l.b16 %v3474
      %v3595 = vunpack.c.l.b16 %v3475
      %v3596 = vunpack.c.l.b16 %v3476
      %v3597 = vunpack.c.l.b16 %v3477
      %v3598 = vunpack.c.l.b16 %v3478
      %v3599 = vunpack.c.l.b16 %v3479
      %v3600 = vunpack.c.l.b16 %v3480
      %v3601 = vunpack.c.l.b16 %v3481
      %v3602 = vunpack.c.l.b16 %v3482
      %v3603 = vunpack.c.l.b16 %v3483
      %v3604 = vunpack.c.l.b16 %v3484
      %v3605 = vunpack.c.l.b16 %v3485
      %v3606 = vunpack.c.l.b16 %v3486
      %v3607 = vunpack.c.l.b16 %v3487
      %v3608 = vunpack.c.l.b16 %v3488
      %v3609 = vunpack.c.l.b16 %v3489
      %v3610 = vpack.c.b16 %v3563, %v3562
      %v3611 = vpack.c.b16 %v3565, %v3564
      %v3612 = vpack.c.b16 %v3567, %v3566
      %v3613 = vpack.c.b16 %v3569, %v3568
      %v3614 = vpack.c.b16 %v3571, %v3570
      %v3615 = vpack.c.b16 %v3573, %v3572
      %v3616 = vpack.c.b16 %v3575, %v3574
      %v3617 = vpack.c.b16 %v3577, %v3576
      %v3618 = vpack.c.b16 %v3579, %v3578
      %v3619 = vpack.c.b16 %v3581, %v3580
      %v3620 = vpack.c.b16 %v3583, %v3582
      %v3621 = vpack.c.b16 %v3585, %v3584
      %v3622 = vpack.c.b16 %v3587, %v3586
      %v3623 = vpack.c.b16 %v3589, %v3588
      %v3624 = vpack.c.b16 %v3591, %v3590
      %v3625 = vpack.c.b16 %v3593, %v3592
      %v3626 = vpack.c.b16 %v3595, %v3594
      %v3627 = vpack.c.b16 %v3597, %v3596
      %v3628 = vpack.c.b16 %v3599, %v3598
      %v3629 = vpack.c.b16 %v3601, %v3600
      %v3630 = vpack.c.b16 %v3603, %v3602
      %v3631 = vpack.c.b16 %v3605, %v3604
      %v3632 = vpack.c.b16 %v3607, %v3606
      %v3633 = vpack.c.b16 %v3609, %v3608
      %3658 = vmatprep.subr.bf16.mxu0 0
      %3659 = vmatpush1.bf16.msra.mxu0 %v3610
      %3660 = vmatprep.subr.bf16.mxu0 0
      %3661 = vmatpush1.bf16.msra.mxu0 %v3611
      %3662 = vmatprep.subr.bf16.mxu0 0
      %3663 = vmatpush1.bf16.msra.mxu0 %v3612
      %3664 = vmatprep.subr.bf16.mxu0 0
      %3665 = vmatpush1.bf16.msra.mxu0 %v3613
      %3666 = vmatprep.subr.bf16.mxu0 0
      %3667 = vmatpush1.bf16.msra.mxu0 %v3614
      %3668 = vmatprep.subr.bf16.mxu0 0
      %3669 = vmatpush1.bf16.msra.mxu0 %v3615
      %3670 = vmatprep.subr.bf16.mxu0 0
      %3671 = vmatpush1.bf16.msra.mxu0 %v3616
      %3672 = vmatprep.subr.bf16.mxu0 0
      %3673 = vmatpush1.bf16.msra.mxu0 %v3617
      %3674 = vmatprep.subr.bf16.mxu0 0
      %3675 = vmatpush1.bf16.msra.mxu0 %v3618
      %3676 = vmatprep.subr.bf16.mxu0 0
      %3677 = vmatpush1.bf16.msra.mxu0 %v3619
      %3678 = vmatprep.subr.bf16.mxu0 0
      %3679 = vmatpush1.bf16.msra.mxu0 %v3620
      %3680 = vmatprep.subr.bf16.mxu0 0
      %3681 = vmatpush1.bf16.msra.mxu0 %v3621
      %3682 = vmatprep.subr.bf16.mxu0 0
      %3683 = vmatpush1.bf16.msra.mxu0 %v3622
      %3684 = vmatprep.subr.bf16.mxu0 0
      %3685 = vmatpush1.bf16.msra.mxu0 %v3623
      %3686 = vmatprep.subr.bf16.mxu0 0
      %3687 = vmatpush1.bf16.msra.mxu0 %v3624
      %3688 = vmatprep.subr.bf16.mxu0 0
      %3689 = vmatpush1.bf16.msra.mxu0 %v3625
      %3690 = vmatprep.mubr.bf16.mxu0 %v3491
      %3691 = vmatmul.mubr.bf16.gmra.mrb[0].mxu0 %v3490
      %v3692 = vpop.f32.mrb[0].mxu0
      %v3693 = vadd.f32 0.0, %v3692
      %v3694 = vpop.f32.mrb[0].mxu0
      %v3695 = vpop.f32.mrb[0].mxu0
      %v3696 = vadd.f32 0.0, %v3695
      %v3697 = vpop.f32.mrb[0].mxu0
      %3698 = vmatprep.mubr.bf16.mxu0 %v3494
      %3699 = vmatmul.mubr.bf16.gmra.mrb[0].mxu0 %v3493
      %v3700 = vpop.f32.mrb[0].mxu0
      %v3701 = vadd.f32 0.0, %v3700
      %v3702 = vpop.f32.mrb[0].mxu0
      %v3703 = vpop.f32.mrb[0].mxu0
      %v3704 = vadd.f32 0.0, %v3703
      %v3705 = vpop.f32.mrb[0].mxu0
      %3706 = vmatprep.mubr.bf16.mxu0 %v3497
      %3707 = vmatmul.mubr.bf16.gmra.mrb[0].mxu0 %v3496
      %v3708 = vpop.f32.mrb[0].mxu0
      %v3709 = vadd.f32 0.0, %v3708
      %v3710 = vpop.f32.mrb[0].mxu0
      %v3711 = vpop.f32.mrb[0].mxu0
      %v3712 = vadd.f32 0.0, %v3711
      %v3713 = vpop.f32.mrb[0].mxu0
      %3714 = vmatprep.mubr.bf16.mxu0 %v3500
      %3715 = vmatmul.mubr.bf16.gmra.mrb[0].mxu0 %v3499
      %v3716 = vpop.f32.mrb[0].mxu0
      %v3717 = vadd.f32 0.0, %v3716
      %v3718 = vpop.f32.mrb[0].mxu0
      %v3719 = vpop.f32.mrb[0].mxu0
      %v3720 = vadd.f32 0.0, %v3719
      %v3721 = vpop.f32.mrb[0].mxu0
      %3722 = vdwg.mxu0
      %3723 = vmatprep.subr.bf16.mxu0 0
      %3724 = vmatpush1.bf16.msra.mxu0 %v3626
      %3725 = vmatprep.subr.bf16.mxu0 0
      %3726 = vmatpush1.bf16.msra.mxu0 %v3627
      %3727 = vmatprep.subr.bf16.mxu0 0
      %3728 = vmatpush1.bf16.msra.mxu0 %v3628
      %3729 = vmatprep.subr.bf16.mxu0 0
      %3730 = vmatpush1.bf16.msra.mxu0 %v3629
      %3731 = vmatprep.subr.bf16.mxu0 0
      %3732 = vmatpush1.bf16.msra.mxu0 %v3630
      %3733 = vmatprep.subr.bf16.mxu0 0
      %3734 = vmatpush1.bf16.msra.mxu0 %v3631
      %3735 = vmatprep.subr.bf16.mxu0 0
      %3736 = vmatpush1.bf16.msra.mxu0 %v3632
      %3737 = vmatprep.subr.bf16.mxu0 0
      %3738 = vmatpush1.bf16.msra.mxu0 %v3633
      %3739 = vmatprep.subr.bf16.mxu0 0
      %3740 = vmatpush1.bf16.msra.mxu0 0
      %3741 = vmatprep.subr.bf16.mxu0 0
      %3742 = vmatpush1.bf16.msra.mxu0 0
      %3743 = vmatprep.subr.bf16.mxu0 0
      %3744 = vmatpush1.bf16.msra.mxu0 0
      %3745 = vmatprep.subr.bf16.mxu0 0
      %3746 = vmatpush1.bf16.msra.mxu0 0
      %3747 = vmatprep.subr.bf16.mxu0 0
      %3748 = vmatpush1.bf16.msra.mxu0 0
      %3749 = vmatprep.subr.bf16.mxu0 0
      %3750 = vmatpush1.bf16.msra.mxu0 0
      %3751 = vmatprep.subr.bf16.mxu0 0
      %3752 = vmatpush1.bf16.msra.mxu0 0
      %3753 = vmatprep.subr.bf16.mxu0 0
      %3754 = vmatpush1.bf16.msra.mxu0 0
      %3755 = vmatprep.mubr.bf16.mxu0 0
      %3756 = vmatmul.mubr.bf16.gmra.mrb[0].mxu0 %v3492
      %v3757 = vpop.f32.mrb[0].mxu0
      %v3758 = vadd.f32 %v3693, %v3757
      %v3759 = vpop.f32.mrb[0].mxu0
      %v3760 = vpop.f32.mrb[0].mxu0
      %v3761 = vadd.f32 %v3696, %v3760
      %v3762 = vpop.f32.mrb[0].mxu0
      %3763 = vmatprep.mubr.bf16.mxu0 0
      %3764 = vmatmul.mubr.bf16.gmra.mrb[0].mxu0 %v3495
      %v3765 = vpop.f32.mrb[0].mxu0
      %v3766 = vadd.f32 %v3701, %v3765
      %v3767 = vpop.f32.mrb[0].mxu0
      %v3768 = vpop.f32.mrb[0].mxu0
      %v3769 = vadd.f32 %v3704, %v3768
      %v3770 = vpop.f32.mrb[0].mxu0
      %3771 = vmatprep.mubr.bf16.mxu0 0
      %3772 = vmatmul.mubr.bf16.gmra.mrb[0].mxu0 %v3498
      %v3773 = vpop.f32.mrb[0].mxu0
      %v3774 = vadd.f32 %v3709, %v3773
      %v3775 = vpop.f32.mrb[0].mxu0
      %v3776 = vpop.f32.mrb[0].mxu0
      %v3777 = vadd.f32 %v3712, %v3776
      %v3778 = vpop.f32.mrb[0].mxu0
      %3779 = vmatprep.mubr.bf16.mxu0 0
      %3780 = vmatmul.mubr.bf16.gmra.mrb[0].mxu0 %v3501
      %v3781 = vpop.f32.mrb[0].mxu0
      %v3782 = vadd.f32 %v3717, %v3781
      %v3783 = vpop.f32.mrb[0].mxu0
      %v3784 = vpop.f32.mrb[0].mxu0
      %v3785 = vadd.f32 %v3720, %v3784
      %v3786 = vpop.f32.mrb[0].mxu0
      %3787 = vdwg.mxu0
      %v3788 = vadd.f32 %v3282, %v3758
      %v3789 = vadd.f32 %v3285, %v3761
      %v3790 = vadd.f32 %v3290, %v3766
      %v3791 = vadd.f32 %v3293, %v3769
      %v3792 = vadd.f32 %v3298, %v3774
      %v3793 = vadd.f32 %v3301, %v3777
      %v3794 = vadd.f32 %v3306, %v3782
      %v3795 = vadd.f32 %v3309, %v3785
      %v3796 = vld [vmem:[%s4] sm:$0x1]
      %v3798 = vlaneseq
      %v3799 = vshrl.u32 %v3798, 7
      %v3800 = vsub.s32 0, %v3799
      %v3801 = vrot.slane %v3796, %v3800
      %v3803 = vadd.f32 %v3788, %v3801
      %v3804 = vadd.f32 %v3789, %v3801
      %v3805 = vadd.f32 %v3790, %v3801
      %v3806 = vadd.f32 %v3791, %v3801
      %v3807 = vadd.f32 %v3792, %v3801
      %v3808 = vadd.f32 %v3793, %v3801
      %v3809 = vadd.f32 %v3794, %v3801
      %v3810 = vadd.f32 %v3795, %v3801
      %v3811 = vmax.f32 %v3803, 0.0
      %v3812 = vmax.f32 %v3804, 0.0
      %v3813 = vmax.f32 %v3805, 0.0
      %v3814 = vmax.f32 %v3806, 0.0
      %v3815 = vmax.f32 %v3807, 0.0
      %v3816 = vmax.f32 %v3808, 0.0
      %v3817 = vmax.f32 %v3809, 0.0
      %v3818 = vmax.f32 %v3810, 0.0
      %v3819 = vpack.c.bf16 %v3811, %v3811
      %v3820 = vpack.c.bf16 %v3812, %v3812
      %v3821 = vpack.c.bf16 %v3813, %v3813
      %v3822 = vpack.c.bf16 %v3814, %v3814
      %v3823 = vpack.c.bf16 %v3815, %v3815
      %v3824 = vpack.c.bf16 %v3816, %v3816
      %v3825 = vpack.c.bf16 %v3817, %v3817
      %v3826 = vpack.c.bf16 %v3818, %v3818
      %3827 = vst [vmem:[%s260] sm:$0xf] %v3819
      %3828 = vst [vmem:[%s260 + $0x4] sm:$0xf] %v3820
      %3829 = vst [vmem:[%s260 + $0x8] sm:$0xf] %v3821
      %3830 = vst [vmem:[%s260 + $0xc] sm:$0xf] %v3822
      %3831 = vst [vmem:[%s260 + $0x10] sm:$0xf] %v3823
      %3832 = vst [vmem:[%s260 + $0x14] sm:$0xf] %v3824
      %3833 = vst [vmem:[%s260 + $0x18] sm:$0xf] %v3825
      %3834 = vst [vmem:[%s260 + $0x1c] sm:$0xf] %v3826
      %s3835 = smul.u32 8, %s21
      %p3836 = scmp.lt.s32.totalorder %s20, 1
      %s3837 = scalar_select %p3836, %s20, 1
      %p3838 = scmp.lt.s32.totalorder %s3835, 7
      %s3839 = scalar_select %p3838, %s3835, 7
      %s3840 = smul.addr %s3837, 8
      %s3841 = sadd.s32 %s3839, %s3840
      %s3842 = smul.addr %s3841, 4
      %s3843 = scalar_lea.vmem %s5, %s3842
      // Predicated region
      $region45: #{down_forward.1} parent=39 // pred_check
        %p3844 = pneg %p160
      $region46: #{down_forward.1} parent=39 // pred_check_branch
        %3846 = sbr.rel (%p3844) target = $region48
      $region47: #{down_forward.1} parent=39 // pred_region
        %s3847 = smul.u32 8, %s21
      $region48: #{down_forward.1} parent=39 // pred_fallthru
        _
    $region40: #{down_forward.1} parent=5 // pred_fallthru
      _
    %p3848 = scmp.le.s32.totalorder 2, %s11
    // Predicated region
    $region49: #{down_forward.1} parent=5 // pred_check
      %p3849 = pneg %p3848
    $region50: #{down_forward.1} parent=5 // pred_check_branch
      %3851 = sbr.rel (%p3849) target = $region52
    $region51: #{down_forward.1} parent=5 // pred_region
      %s3852 = ssub.s32 %s11, 2
      // Predicated region
      $region53: #{down_forward.1} parent=51 // pred_check
        %p3853 = pneg %p166
      $region54: #{down_forward.1} parent=51 // pred_check_branch
        %3855 = sbr.rel (%p3853) target = $region56
      $region55: #{down_forward.1} parent=51 // pred_region
        %s3856 = smul.u32 8, %s23
        %p3857 = scmp.lt.s32.totalorder %s22, 1
        %s3858 = scalar_select %p3857, %s22, 1
        %p3859 = scmp.lt.s32.totalorder %s3856, 7
        %s3860 = scalar_select %p3859, %s3856, 7
        %s3861 = smul.addr %s3858, 8
        %s3862 = sadd.s32 %s3860, %s3861
        %s3863 = smul.addr %s3862, 4
        %s3864 = scalar_lea.vmem %s5, %s3863
      $region56: #{down_forward.1} parent=51 // pred_fallthru
        _
    $region52: #{down_forward.1} parent=5 // pred_fallthru
      _
  $region6: #{down_forward.1} parent=0 // loop_footer
    %s15 = sadd.s32 1, %s11
  $region7: #{down_forward.1} parent=0 // loop_footer_branch
    %10 = sbr.rel target = $region3
  $region8: #{down_forward.1} parent=0 // loop_exit
    _

</llo_original>
